<compile_context>
chip_gen: v7x
topology: tpu7x:2x2x1
jax: 0.10.0
libtpu: 0.0.40
codegen_flags: <defaults>
</compile_context>

<pallas_src>
import functools

import numpy as np
import jax
import jax.numpy as jnp
from jax import lax
from jax.experimental import pallas as pl
from jax.experimental.pallas import tpu as pltpu


def _round_up(x, m):
    return ((x + m - 1) // m) * m


# ----------------------------------------------------------------------------
# Fused per-head kernel (one grid step == one head)
# ----------------------------------------------------------------------------
def _fused_head_kernel(n_batch, spatial2, n_pool_off, n_conv2_off, c1_pad, logits,
                       patch_ref, w1_ref, b1_ref, w2_ref, b2_ref,
                       f1w_ref, f1b_ref, f2w_ref, f2b_ref, f3w_ref, f3b_ref,
                       out_ref, pack_ref):
    f32, bf16 = jnp.float32, jnp.bfloat16

    # conv1 + folded BN1 + ReLU: one bf16 MXU matmul over pre-gathered patches.
    # Output channels are padded 32 -> 128 (zero weights / zero bias), so every
    # downstream chunk is a full 128-lane tile.
    h1 = jnp.dot(patch_ref[...], w1_ref[0], preferred_element_type=f32)
    h1 = jnp.maximum(h1 + b1_ref[0], 0.0).astype(bf16)        # (R, 128)

    # maxpool1 (k=3, s=2): the 9 window taps are equal, contiguous row chunks.
    # (Same 8 VPU maxes the reshape+reduce form would emit, now in bf16.)
    chunk = n_conv2_off * n_batch * spatial2                  # rows per pool tap
    p1 = h1[0:chunk]
    for k in range(1, n_pool_off):
        p1 = jnp.maximum(p1, h1[k * chunk:(k + 1) * chunk])   # (chunk, 128) bf16

    # conv2 + folded BN2 + ReLU as ONE MXU contraction: pack the 9 conv2 taps
    # side-by-side along the K (lane) axis in VMEM scratch via full-tile,
    # lane-aligned stores, then a single (rows2, 9*128) @ (9*128, 64) matmul.
    rows2 = n_batch * spatial2
    for k in range(n_conv2_off):
        pack_ref[:, k * c1_pad:(k + 1) * c1_pad] = p1[k * rows2:(k + 1) * rows2]
    h2 = jnp.dot(pack_ref[...], w2_ref[0], preferred_element_type=f32)
    h2 = jnp.maximum(h2 + b2_ref[0], 0.0)                     # (rows2, 64) f32

    # maxpool2 (k=4, s=2) covers the whole 4x4 conv2 output -> per-sample reduce.
    flat = jnp.concatenate(
        [jnp.max(h2[n * spatial2:(n + 1) * spatial2], axis=0, keepdims=True)
         for n in range(n_batch)], axis=0).astype(bf16)       # (N, 64)

    # FC head (Dropout(0.1) is identity in eval mode).
    z = jnp.dot(flat, f1w_ref[0], preferred_element_type=f32)
    z = jnp.maximum(z + f1b_ref[0], 0.0).astype(bf16)         # (N, 768)
    z = jnp.dot(z, f2w_ref[0], preferred_element_type=f32)
    z = jnp.maximum(z + f2b_ref[0], 0.0).astype(bf16)         # (N, 128)
    z = jnp.dot(z, f3w_ref[0], preferred_element_type=f32) + f3b_ref[0]
    if not logits:
        # Padded logit lanes carry a -1e30 bias, so they vanish under softmax.
        # Exact divide (review correctness concern); epilogue-only, negligible.
        z = z - jnp.max(z, axis=-1, keepdims=True)
        e = jnp.exp(z)
        z = e / jnp.sum(e, axis=-1, keepdims=True)
    out_ref[0] = z.astype(out_ref.dtype)                      # (N, 128) lane-dense


# ----------------------------------------------------------------------------
# Static geometry: conv1 patch row ordering that makes every downstream stage
# a contiguous-chunk operation inside the kernel.
# Row order: (pool1 tap ip,jp) x (conv2 tap i2,j2) x (batch n) x (conv2 out u,v)
# ----------------------------------------------------------------------------
def build_geometry(n_batch, in_channels, height, width):
    oh1, ow1 = (height - 5) // 2 + 1, (width - 5) // 2 + 1     # conv1 (k=5,s=2)
    p1h, p1w = (oh1 - 3) // 2 + 1, (ow1 - 3) // 2 + 1          # pool1 (k=3,s=2)
    oh2, ow2 = (p1h - 3) // 2 + 1, (p1w - 3) // 2 + 1          # conv2 (k=3,s=2)
    f2h, f2w = (oh2 - 4) // 2 + 1, (ow2 - 4) // 2 + 1          # pool2 (k=4,s=2)
    assert f2h == 1 and f2w == 1, (
        "fused kernel assumes the final MaxPool reduces the conv2 output to 1x1")

    ip, jp, i2, j2, nn, u, v = np.meshgrid(
        np.arange(3), np.arange(3), np.arange(3), np.arange(3),
        np.arange(n_batch), np.arange(oh2), np.arange(ow2), indexing="ij")
    h_out = 2 * (2 * u + i2) + ip      # conv1 output row for this patch row
    w_out = 2 * (2 * v + j2) + jp      # conv1 output col for this patch row
    k1 = in_channels * 25
    return dict(
        n_idx=nn.reshape(-1), r0=(2 * h_out).reshape(-1), c0=(2 * w_out).reshape(-1),
        R=int(nn.size), K1=k1, K1_pad=_round_up(k1, 128), C1_pad=128,
        spatial2=oh2 * ow2, n_pool_off=9, n_conv2_off=9, in_channels=in_channels)


def conv1_patches(x, geom):
    """x: (N, Cin, H, W) -> zero-padded im2col patches (R, K1_pad), bf16."""
    xh = jnp.transpose(x, (0, 2, 3, 1)).astype(jnp.float32)   # NHWC
    n, r0, c0 = geom["n_idx"], geom["r0"], geom["c0"]
    kh, kw = np.arange(5), np.arange(5)
    rows = r0[:, None, None] + kh[None, :, None]              # (R, 5, 1)
    cols = c0[:, None, None] + kw[None, None, :]              # (R, 1, 5)
    win = xh[n[:, None, None], rows, cols, :]                 # (R, 5, 5, Cin)
    p = win.reshape(geom["R"], geom["K1"])
    pad = geom["K1_pad"] - geom["K1"]
    if pad:
        p = jnp.pad(p, ((0, 0), (0, pad)))
    return p.astype(jnp.bfloat16)


# ----------------------------------------------------------------------------
# Parameter prep: PyTorch-layout params -> folded / padded / bf16 kernel operands.
# ----------------------------------------------------------------------------
def init_head_params(key, in_channels, num_classes):
    ks = jax.random.split(key, 16)

    def nrm(k, shape, fan_in):
        return jax.random.normal(k, shape, jnp.float32) / jnp.sqrt(float(fan_in))

    p = {}
    p["conv1_w"] = nrm(ks[0], (32, in_channels, 5, 5), in_channels * 25)
    p["bn1_gamma"] = 1.0 + 0.1 * jax.random.normal(ks[1], (32,), jnp.float32)
    p["bn1_beta"] = 0.1 * jax.random.normal(ks[2], (32,), jnp.float32)
    p["bn1_mean"] = 0.1 * jax.random.normal(ks[3], (32,), jnp.float32)
    p["bn1_var"] = jnp.abs(1.0 + 0.1 * jax.random.normal(ks[4], (32,), jnp.float32))
    p["conv2_w"] = nrm(ks[5], (64, 32, 3, 3), 32 * 9)
    p["bn2_gamma"] = 1.0 + 0.1 * jax.random.normal(ks[6], (64,), jnp.float32)
    p["bn2_beta"] = 0.1 * jax.random.normal(ks[7], (64,), jnp.float32)
    p["bn2_mean"] = 0.1 * jax.random.normal(ks[8], (64,), jnp.float32)
    p["bn2_var"] = jnp.abs(1.0 + 0.1 * jax.random.normal(ks[9], (64,), jnp.float32))
    p["fc1_w"] = nrm(ks[10], (750, 64), 64)                   # torch Linear: (out, in)
    p["fc1_b"] = 0.01 * jax.random.normal(ks[11], (750,), jnp.float32)
    p["fc2_w"] = nrm(ks[12], (100, 750), 750)
    p["fc2_b"] = 0.01 * jax.random.normal(ks[13], (100,), jnp.float32)
    p["fc3_w"] = nrm(ks[14], (num_classes, 100), 100)
    p["fc3_b"] = 0.01 * jax.random.normal(ks[15], (num_classes,), jnp.float32)
    return p


def fold_and_pad_head(p, geom, num_classes, eps=1e-5):
    bf16 = jnp.bfloat16
    k1, k1p, c1p = geom["K1"], geom["K1_pad"], geom["C1_pad"]

    # conv1 + BN1 folded; output channels padded 32 -> 128 (zeros).
    c1 = p["conv1_w"].shape[0]
    s1 = p["bn1_gamma"] * lax.rsqrt(p["bn1_var"] + eps)
    w1 = jnp.transpose(p["conv1_w"], (2, 3, 1, 0)).reshape(k1, c1) * s1[None, :]
    w1 = jnp.pad(w1, ((0, k1p - k1), (0, c1p - c1))).astype(bf16)        # (128, 128)
    b1 = jnp.pad(p["bn1_beta"] - p["bn1_mean"] * s1, (0, c1p - c1))[None, :]

    # conv2 + BN2 folded; laid out as (9 taps * 128 padded channels, 64) so the
    # single in-kernel contraction matches the lane-packed taps.
    c2, cin2 = p["conv2_w"].shape[0], p["conv2_w"].shape[1]
    s2 = p["bn2_gamma"] * lax.rsqrt(p["bn2_var"] + eps)
    w2 = (jnp.transpose(p["conv2_w"], (2, 3, 1, 0)).reshape(9, cin2, c2)
          * s2[None, None, :])
    w2 = jnp.pad(w2, ((0, 0), (0, c1p - cin2), (0, 0)))                  # (9,128,64)
    w2 = w2.reshape(9 * c1p, c2).astype(bf16)                            # (1152, 64)
    b2 = (p["bn2_beta"] - p["bn2_mean"] * s2)[None, :]

    d1, d2 = p["fc1_w"].shape[0], p["fc2_w"].shape[0]
    d1p, d2p = _round_up(d1, 128), _round_up(d2, 128)
    cp = _round_up(num_classes, 128)
    f1w = jnp.pad(p["fc1_w"].T, ((0, 0), (0, d1p - d1))).astype(bf16)            # (64,768)
    f1b = jnp.pad(p["fc1_b"], (0, d1p - d1))[None, :]
    f2w = jnp.pad(p["fc2_w"].T, ((0, d1p - d1), (0, d2p - d2))).astype(bf16)     # (768,128)
    f2b = jnp.pad(p["fc2_b"], (0, d2p - d2))[None, :]
    f3w = jnp.pad(p["fc3_w"].T,
                  ((0, d2p - d2), (0, cp - num_classes))).astype(bf16)           # (128,128)
    f3b = jnp.concatenate(
        [p["fc3_b"], jnp.full((cp - num_classes,), -1e30, jnp.float32)])[None, :]
    return dict(w1=w1, b1=b1, w2=w2, b2=b2,
                f1w=f1w, f1b=f1b, f2w=f2w, f2b=f2b, f3w=f3w, f3b=f3b)


def stack_heads(prepped):
    return {k: jnp.stack([h[k] for h in prepped]) for k in prepped[0]}


# ----------------------------------------------------------------------------
# Forward wrapper: one pallas_call for the whole model, grid over heads.
# ----------------------------------------------------------------------------
def minigrid_cnn_forward(x, stacked, *, geom, num_classes, logits=False):
    patches = conv1_patches(x, geom)                          # (R, 128) bf16, shared
    n_batch = x.shape[0]
    num_heads = stacked["w1"].shape[0]
    c_pad = stacked["f3w"].shape[-1]
    c1_pad = geom["C1_pad"]
    rows2 = n_batch * geom["spatial2"]

    kernel = functools.partial(
        _fused_head_kernel, n_batch, geom["spatial2"],
        geom["n_pool_off"], geom["n_conv2_off"], c1_pad, logits)

    order = ["w1", "b1", "w2", "b2", "f1w", "f1b", "f2w", "f2b", "f3w", "f3b"]
    args = [patches] + [stacked[k] for k in order]
    # Shared patch block: constant index map -> not re-copied on later grid steps.
    in_specs = ([pl.BlockSpec(patches.shape, lambda h: (0, 0))] +
                [pl.BlockSpec((1,) + stacked[k].shape[1:], lambda h: (h, 0, 0))
                 for k in order])

    out = pl.pallas_call(
        kernel,
        out_shape=jax.ShapeDtypeStruct((num_heads, n_batch, c_pad), jnp.float32),
        grid=(num_heads,),
        in_specs=in_specs,
        out_specs=pl.BlockSpec((1, n_batch, c_pad), lambda h: (h, 0, 0)),
        scratch_shapes=[
            pltpu.VMEM((rows2, geom["n_conv2_off"] * c1_pad), jnp.bfloat16)],
        compiler_params=pltpu.CompilerParams(
            # heads -> v7x TensorCores; on v5e/v6e the grid just pipelines
            # per-head weight DMA behind the previous head's compute.
            dimension_semantics=("parallel",)),
    )(*args)
    # (heads, N, 128) -> (N, heads, num_classes), matching MinigridCNN.forward.
    return jnp.transpose(out[:, :, :num_classes], (1, 0, 2))


# ----------------------------------------------------------------------------
# Pure-JAX reference (for correctness checking only)
# ----------------------------------------------------------------------------
def reference_forward(x, raw_heads, logits=False, eps=1e-5):
    def bn(h, g, b, m, v):
        s = g * lax.rsqrt(v + eps)
        return h * s[None, :, None, None] + (b - m * s)[None, :, None, None]

    outs = []
    for p in raw_heads:
        h = lax.conv_general_dilated(x, p["conv1_w"], (2, 2), "VALID",
                                     dimension_numbers=("NCHW", "OIHW", "NCHW"))
        h = jnp.maximum(bn(h, p["bn1_gamma"], p["bn1_beta"],
                           p["bn1_mean"], p["bn1_var"]), 0.0)
        h = lax.reduce_window(h, -jnp.inf, lax.max, (1, 1, 3, 3), (1, 1, 2, 2), "VALID")
        h = lax.conv_general_dilated(h, p["conv2_w"], (2, 2), "VALID",
                                     dimension_numbers=("NCHW", "OIHW", "NCHW"))
        h = jnp.maximum(bn(h, p["bn2_gamma"], p["bn2_beta"],
                           p["bn2_mean"], p["bn2_var"]), 0.0)
        h = lax.reduce_window(h, -jnp.inf, lax.max, (1, 1, 4, 4), (1, 1, 2, 2), "VALID")
        h = h.reshape(h.shape[0], -1)
        h = jnp.maximum(h @ p["fc1_w"].T + p["fc1_b"], 0.0)
        h = jnp.maximum(h @ p["fc2_w"].T + p["fc2_b"], 0.0)
        h = h @ p["fc3_w"].T + p["fc3_b"]
        outs.append(h if logits else jax.nn.softmax(h, axis=-1))
    return jnp.stack(outs, axis=1)


# ----------------------------------------------------------------------------
if __name__ == "__main__":
    # 48x48 input makes every stride/pool stage legal:
    # conv1->22, pool1->10, conv2->4, pool2->1 (flat_dim = 64).
    batch, in_ch, height, width = 2, 3, 48, 48
    num_classes, num_heads = 3, 2

    key = jax.random.PRNGKey(0)
    kx, kp = jax.random.split(key)
    x = jax.random.normal(kx, (batch, in_ch, height, width), jnp.float32)

    head_keys = jax.random.split(kp, num_heads)
    raw_heads = [init_head_params(head_keys[i], in_ch, num_classes)
                 for i in range(num_heads)]

    geom = build_geometry(batch, in_ch, height, width)
    stacked = stack_heads([fold_and_pad_head(p, geom, num_classes) for p in raw_heads])

    fwd_softmax = jax.jit(functools.partial(
        minigrid_cnn_forward, geom=geom, num_classes=num_classes, logits=False))
    fwd_logits = jax.jit(functools.partial(
        minigrid_cnn_forward, geom=geom, num_classes=num_classes, logits=True))

    pred = jax.block_until_ready(fwd_softmax(x, stacked))
    assert pred.shape == (batch, num_heads, num_classes), pred.shape
    assert bool(jnp.all(jnp.isfinite(pred)))
    assert bool(jnp.allclose(jnp.sum(pred, axis=-1), 1.0, atol=1e-3))

    ref = reference_forward(x, raw_heads, logits=False)
    assert bool(jnp.allclose(pred, ref, atol=6e-2, rtol=6e-2))

    logit_out = jax.block_until_ready(fwd_logits(x, stacked))
    ref_logits = reference_forward(x, raw_heads, logits=True)
    assert bool(jnp.allclose(logit_out, ref_logits, atol=6e-2, rtol=6e-2))

    print("KERNEL_OK")
</pallas_src>

<mosaic_0001>
module attributes {stable_mosaic.version = 11 : i64} {
  func.func @_fused_head_kernel(%arg0: i32, %arg1: memref<2592x128xbf16, #tpu.memory_space<vmem>>, %arg2: memref<1x128x128xbf16, #tpu.memory_space<vmem>>, %arg3: memref<1x1x128xf32, #tpu.memory_space<vmem>>, %arg4: memref<1x1152x64xbf16, #tpu.memory_space<vmem>>, %arg5: memref<1x1x64xf32, #tpu.memory_space<vmem>>, %arg6: memref<1x64x768xbf16, #tpu.memory_space<vmem>>, %arg7: memref<1x1x768xf32, #tpu.memory_space<vmem>>, %arg8: memref<1x768x128xbf16, #tpu.memory_space<vmem>>, %arg9: memref<1x1x128xf32, #tpu.memory_space<vmem>>, %arg10: memref<1x128x128xbf16, #tpu.memory_space<vmem>>, %arg11: memref<1x1x128xf32, #tpu.memory_space<vmem>>, %arg12: memref<1x2x128xf32, #tpu.memory_space<vmem>>, %arg13: memref<32x1152xbf16, #tpu.memory_space<vmem>>) attributes {dimension_semantics = [#tpu.dimension_semantics<parallel>], iteration_bounds = array<i64: 2>, scalar_prefetch = 0 : i64, scratch_operands = 1 : i64, tpu.core_type = #tpu.core_type<tc>, window_params = [{pipeline_mode = #tpu.pipeline_mode<synchronous>, transform_indices = @transform_0, window_bounds = array<i64: 2592, 128>}, {transform_indices = @transform_1, window_bounds = array<i64: 1, 128, 128>}, {transform_indices = @transform_2, window_bounds = array<i64: 1, 1, 128>}, {transform_indices = @transform_3, window_bounds = array<i64: 1, 1152, 64>}, {transform_indices = @transform_4, window_bounds = array<i64: 1, 1, 64>}, {transform_indices = @transform_5, window_bounds = array<i64: 1, 64, 768>}, {transform_indices = @transform_6, window_bounds = array<i64: 1, 1, 768>}, {transform_indices = @transform_7, window_bounds = array<i64: 1, 768, 128>}, {transform_indices = @transform_8, window_bounds = array<i64: 1, 1, 128>}, {transform_indices = @transform_9, window_bounds = array<i64: 1, 128, 128>}, {transform_indices = @transform_10, window_bounds = array<i64: 1, 1, 128>}, {transform_indices = @transform_11, window_bounds = array<i64: 1, 2, 128>}]} {
    %c0 = arith.constant 0 : index
    %c0_0 = arith.constant 0 : index
    %0 = vector.load %arg1[%c0, %c0_0] : memref<2592x128xbf16, #tpu.memory_space<vmem>>, vector<2592x128xbf16>
    %c0_1 = arith.constant 0 : index
    %c0_2 = arith.constant 0 : index
    %c0_3 = arith.constant 0 : index
    %1 = vector.load %arg2[%c0_1, %c0_2, %c0_3] : memref<1x128x128xbf16, #tpu.memory_space<vmem>>, vector<1x128x128xbf16>
    %2 = vector.shape_cast %1 : vector<1x128x128xbf16> to vector<128x128xbf16>
    %cst = arith.constant dense<0.000000e+00> : vector<2592x128xf32>
    %3 = tpu.matmul %0, %2, %cst {dimension_numbers = #tpu.dot_dimension_numbers<[1], [0], [0], [1], [0, 0, 1, 1], [], []>} : vector<2592x128xbf16>, vector<128x128xbf16>, vector<2592x128xf32> -> vector<2592x128xf32>
    %c0_4 = arith.constant 0 : index
    %c0_5 = arith.constant 0 : index
    %c0_6 = arith.constant 0 : index
    %4 = vector.load %arg3[%c0_4, %c0_5, %c0_6] : memref<1x1x128xf32, #tpu.memory_space<vmem>>, vector<1x1x128xf32>
    %5 = vector.shape_cast %4 : vector<1x1x128xf32> to vector<1x128xf32>
    %6 = vector.broadcast %5 : vector<1x128xf32> to vector<2592x128xf32>
    %7 = arith.addf %3, %6 : vector<2592x128xf32>
    %cst_7 = arith.constant 0.000000e+00 : f32
    %8 = vector.broadcast %cst_7 : f32 to vector<2592x128xf32>
    %9 = arith.maximumf %7, %8 : vector<2592x128xf32>
    %10 = arith.truncf %9 : vector<2592x128xf32> to vector<2592x128xbf16>
    %11 = vector.extract_strided_slice %10 {offsets = [0, 0], sizes = [288, 128], strides = [1, 1]} : vector<2592x128xbf16> to vector<288x128xbf16>
    %12 = vector.extract_strided_slice %10 {offsets = [288, 0], sizes = [288, 128], strides = [1, 1]} : vector<2592x128xbf16> to vector<288x128xbf16>
    %13 = arith.maximumf %11, %12 : vector<288x128xbf16>
    %14 = vector.extract_strided_slice %10 {offsets = [576, 0], sizes = [288, 128], strides = [1, 1]} : vector<2592x128xbf16> to vector<288x128xbf16>
    %15 = arith.maximumf %13, %14 : vector<288x128xbf16>
    %16 = vector.extract_strided_slice %10 {offsets = [864, 0], sizes = [288, 128], strides = [1, 1]} : vector<2592x128xbf16> to vector<288x128xbf16>
    %17 = arith.maximumf %15, %16 : vector<288x128xbf16>
    %18 = vector.extract_strided_slice %10 {offsets = [1152, 0], sizes = [288, 128], strides = [1, 1]} : vector<2592x128xbf16> to vector<288x128xbf16>
    %19 = arith.maximumf %17, %18 : vector<288x128xbf16>
    %20 = vector.extract_strided_slice %10 {offsets = [1440, 0], sizes = [288, 128], strides = [1, 1]} : vector<2592x128xbf16> to vector<288x128xbf16>
    %21 = arith.maximumf %19, %20 : vector<288x128xbf16>
    %22 = vector.extract_strided_slice %10 {offsets = [1728, 0], sizes = [288, 128], strides = [1, 1]} : vector<2592x128xbf16> to vector<288x128xbf16>
    %23 = arith.maximumf %21, %22 : vector<288x128xbf16>
    %24 = vector.extract_strided_slice %10 {offsets = [2016, 0], sizes = [288, 128], strides = [1, 1]} : vector<2592x128xbf16> to vector<288x128xbf16>
    %25 = arith.maximumf %23, %24 : vector<288x128xbf16>
    %26 = vector.extract_strided_slice %10 {offsets = [2304, 0], sizes = [288, 128], strides = [1, 1]} : vector<2592x128xbf16> to vector<288x128xbf16>
    %27 = arith.maximumf %25, %26 : vector<288x128xbf16>
    %28 = vector.extract_strided_slice %27 {offsets = [0, 0], sizes = [32, 128], strides = [1, 1]} : vector<288x128xbf16> to vector<32x128xbf16>
    %c0_8 = arith.constant 0 : index
    %c0_9 = arith.constant 0 : index
    %29 = vector.load %arg13[%c0_8, %c0_9] : memref<32x1152xbf16, #tpu.memory_space<vmem>>, vector<32x128xbf16>
    tpu.vector_store %arg13[%c0_8, %c0_9], %28 {strides = array<i32>} : memref<32x1152xbf16, #tpu.memory_space<vmem>>, vector<32x128xbf16>,
    %30 = vector.extract_strided_slice %27 {offsets = [32, 0], sizes = [32, 128], strides = [1, 1]} : vector<288x128xbf16> to vector<32x128xbf16>
    %c0_10 = arith.constant 0 : index
    %c128 = arith.constant 128 : index
    %31 = vector.load %arg13[%c0_10, %c128] : memref<32x1152xbf16, #tpu.memory_space<vmem>>, vector<32x128xbf16>
    tpu.vector_store %arg13[%c0_10, %c128], %30 {strides = array<i32>} : memref<32x1152xbf16, #tpu.memory_space<vmem>>, vector<32x128xbf16>,
    %32 = vector.extract_strided_slice %27 {offsets = [64, 0], sizes = [32, 128], strides = [1, 1]} : vector<288x128xbf16> to vector<32x128xbf16>
    %c0_11 = arith.constant 0 : index
    %c256 = arith.constant 256 : index
    %33 = vector.load %arg13[%c0_11, %c256] : memref<32x1152xbf16, #tpu.memory_space<vmem>>, vector<32x128xbf16>
    tpu.vector_store %arg13[%c0_11, %c256], %32 {strides = array<i32>} : memref<32x1152xbf16, #tpu.memory_space<vmem>>, vector<32x128xbf16>,
    %34 = vector.extract_strided_slice %27 {offsets = [96, 0], sizes = [32, 128], strides = [1, 1]} : vector<288x128xbf16> to vector<32x128xbf16>
    %c0_12 = arith.constant 0 : index
    %c384 = arith.constant 384 : index
    %35 = vector.load %arg13[%c0_12, %c384] : memref<32x1152xbf16, #tpu.memory_space<vmem>>, vector<32x128xbf16>
    tpu.vector_store %arg13[%c0_12, %c384], %34 {strides = array<i32>} : memref<32x1152xbf16, #tpu.memory_space<vmem>>, vector<32x128xbf16>,
    %36 = vector.extract_strided_slice %27 {offsets = [128, 0], sizes = [32, 128], strides = [1, 1]} : vector<288x128xbf16> to vector<32x128xbf16>
    %c0_13 = arith.constant 0 : index
    %c512 = arith.constant 512 : index
    %37 = vector.load %arg13[%c0_13, %c512] : memref<32x1152xbf16, #tpu.memory_space<vmem>>, vector<32x128xbf16>
    tpu.vector_store %arg13[%c0_13, %c512], %36 {strides = array<i32>} : memref<32x1152xbf16, #tpu.memory_space<vmem>>, vector<32x128xbf16>,
    %38 = vector.extract_strided_slice %27 {offsets = [160, 0], sizes = [32, 128], strides = [1, 1]} : vector<288x128xbf16> to vector<32x128xbf16>
    %c0_14 = arith.constant 0 : index
    %c640 = arith.constant 640 : index
    %39 = vector.load %arg13[%c0_14, %c640] : memref<32x1152xbf16, #tpu.memory_space<vmem>>, vector<32x128xbf16>
    tpu.vector_store %arg13[%c0_14, %c640], %38 {strides = array<i32>} : memref<32x1152xbf16, #tpu.memory_space<vmem>>, vector<32x128xbf16>,
    %40 = vector.extract_strided_slice %27 {offsets = [192, 0], sizes = [32, 128], strides = [1, 1]} : vector<288x128xbf16> to vector<32x128xbf16>
    %c0_15 = arith.constant 0 : index
    %c768 = arith.constant 768 : index
    %41 = vector.load %arg13[%c0_15, %c768] : memref<32x1152xbf16, #tpu.memory_space<vmem>>, vector<32x128xbf16>
    tpu.vector_store %arg13[%c0_15, %c768], %40 {strides = array<i32>} : memref<32x1152xbf16, #tpu.memory_space<vmem>>, vector<32x128xbf16>,
    %42 = vector.extract_strided_slice %27 {offsets = [224, 0], sizes = [32, 128], strides = [1, 1]} : vector<288x128xbf16> to vector<32x128xbf16>
    %c0_16 = arith.constant 0 : index
    %c896 = arith.constant 896 : index
    %43 = vector.load %arg13[%c0_16, %c896] : memref<32x1152xbf16, #tpu.memory_space<vmem>>, vector<32x128xbf16>
    tpu.vector_store %arg13[%c0_16, %c896], %42 {strides = array<i32>} : memref<32x1152xbf16, #tpu.memory_space<vmem>>, vector<32x128xbf16>,
    %44 = vector.extract_strided_slice %27 {offsets = [256, 0], sizes = [32, 128], strides = [1, 1]} : vector<288x128xbf16> to vector<32x128xbf16>
    %c0_17 = arith.constant 0 : index
    %c1024 = arith.constant 1024 : index
    %45 = vector.load %arg13[%c0_17, %c1024] : memref<32x1152xbf16, #tpu.memory_space<vmem>>, vector<32x128xbf16>
    tpu.vector_store %arg13[%c0_17, %c1024], %44 {strides = array<i32>} : memref<32x1152xbf16, #tpu.memory_space<vmem>>, vector<32x128xbf16>,
    %c0_18 = arith.constant 0 : index
    %c0_19 = arith.constant 0 : index
    %46 = vector.load %arg13[%c0_18, %c0_19] : memref<32x1152xbf16, #tpu.memory_space<vmem>>, vector<32x1152xbf16>
    %c0_20 = arith.constant 0 : index
    %c0_21 = arith.constant 0 : index
    %c0_22 = arith.constant 0 : index
    %47 = vector.load %arg4[%c0_20, %c0_21, %c0_22] : memref<1x1152x64xbf16, #tpu.memory_space<vmem>>, vector<1x1152x64xbf16>
    %48 = vector.shape_cast %47 : vector<1x1152x64xbf16> to vector<1152x64xbf16>
    %cst_23 = arith.constant dense<0.000000e+00> : vector<32x64xf32>
    %49 = tpu.matmul %46, %48, %cst_23 {dimension_numbers = #tpu.dot_dimension_numbers<[1], [0], [0], [1], [0, 0, 1, 1], [], []>} : vector<32x1152xbf16>, vector<1152x64xbf16>, vector<32x64xf32> -> vector<32x64xf32>
    %c0_24 = arith.constant 0 : index
    %c0_25 = arith.constant 0 : index
    %c0_26 = arith.constant 0 : index
    %50 = vector.load %arg5[%c0_24, %c0_25, %c0_26] : memref<1x1x64xf32, #tpu.memory_space<vmem>>, vector<1x1x64xf32>
    %51 = vector.shape_cast %50 : vector<1x1x64xf32> to vector<1x64xf32>
    %52 = vector.broadcast %51 : vector<1x64xf32> to vector<32x64xf32>
    %53 = arith.addf %49, %52 : vector<32x64xf32>
    %cst_27 = arith.constant 0.000000e+00 : f32
    %54 = vector.broadcast %cst_27 : f32 to vector<32x64xf32>
    %55 = arith.maximumf %53, %54 : vector<32x64xf32>
    %56 = vector.extract_strided_slice %55 {offsets = [0, 0], sizes = [16, 64], strides = [1, 1]} : vector<32x64xf32> to vector<16x64xf32>
    %cst_28 = arith.constant dense<0xFF800000> : vector<64xf32>
    %57 = vector.multi_reduction <maximumf>, %56, %cst_28 [0] : vector<16x64xf32> to vector<64xf32>
    %58 = vector.shape_cast %57 : vector<64xf32> to vector<1x64xf32>
    %59 = vector.extract_strided_slice %55 {offsets = [16, 0], sizes = [16, 64], strides = [1, 1]} : vector<32x64xf32> to vector<16x64xf32>
    %cst_29 = arith.constant dense<0xFF800000> : vector<64xf32>
    %60 = vector.multi_reduction <maximumf>, %59, %cst_29 [0] : vector<16x64xf32> to vector<64xf32>
    %61 = vector.shape_cast %60 : vector<64xf32> to vector<1x64xf32>
    %62 = tpu.concatenate %58, %61 in 0 : vector<1x64xf32>, vector<1x64xf32> -> vector<2x64xf32>
    %63 = arith.truncf %62 : vector<2x64xf32> to vector<2x64xbf16>
    %c0_30 = arith.constant 0 : index
    %c0_31 = arith.constant 0 : index
    %c0_32 = arith.constant 0 : index
    %64 = vector.load %arg6[%c0_30, %c0_31, %c0_32] : memref<1x64x768xbf16, #tpu.memory_space<vmem>>, vector<1x64x768xbf16>
    %65 = vector.shape_cast %64 : vector<1x64x768xbf16> to vector<64x768xbf16>
    %cst_33 = arith.constant dense<0.000000e+00> : vector<2x768xf32>
    %66 = tpu.matmul %63, %65, %cst_33 {dimension_numbers = #tpu.dot_dimension_numbers<[1], [0], [0], [1], [0, 0, 1, 1], [], []>} : vector<2x64xbf16>, vector<64x768xbf16>, vector<2x768xf32> -> vector<2x768xf32>
    %c0_34 = arith.constant 0 : index
    %c0_35 = arith.constant 0 : index
    %c0_36 = arith.constant 0 : index
    %67 = vector.load %arg7[%c0_34, %c0_35, %c0_36] : memref<1x1x768xf32, #tpu.memory_space<vmem>>, vector<1x1x768xf32>
    %68 = vector.shape_cast %67 : vector<1x1x768xf32> to vector<1x768xf32>
    %69 = vector.broadcast %68 : vector<1x768xf32> to vector<2x768xf32>
    %70 = arith.addf %66, %69 : vector<2x768xf32>
    %cst_37 = arith.constant 0.000000e+00 : f32
    %71 = vector.broadcast %cst_37 : f32 to vector<2x768xf32>
    %72 = arith.maximumf %70, %71 : vector<2x768xf32>
    %73 = arith.truncf %72 : vector<2x768xf32> to vector<2x768xbf16>
    %c0_38 = arith.constant 0 : index
    %c0_39 = arith.constant 0 : index
    %c0_40 = arith.constant 0 : index
    %74 = vector.load %arg8[%c0_38, %c0_39, %c0_40] : memref<1x768x128xbf16, #tpu.memory_space<vmem>>, vector<1x768x128xbf16>
    %75 = vector.shape_cast %74 : vector<1x768x128xbf16> to vector<768x128xbf16>
    %cst_41 = arith.constant dense<0.000000e+00> : vector<2x128xf32>
    %76 = tpu.matmul %73, %75, %cst_41 {dimension_numbers = #tpu.dot_dimension_numbers<[1], [0], [0], [1], [0, 0, 1, 1], [], []>} : vector<2x768xbf16>, vector<768x128xbf16>, vector<2x128xf32> -> vector<2x128xf32>
    %c0_42 = arith.constant 0 : index
    %c0_43 = arith.constant 0 : index
    %c0_44 = arith.constant 0 : index
    %77 = vector.load %arg9[%c0_42, %c0_43, %c0_44] : memref<1x1x128xf32, #tpu.memory_space<vmem>>, vector<1x1x128xf32>
    %78 = vector.shape_cast %77 : vector<1x1x128xf32> to vector<1x128xf32>
    %79 = vector.broadcast %78 : vector<1x128xf32> to vector<2x128xf32>
    %80 = arith.addf %76, %79 : vector<2x128xf32>
    %cst_45 = arith.constant 0.000000e+00 : f32
    %81 = vector.broadcast %cst_45 : f32 to vector<2x128xf32>
    %82 = arith.maximumf %80, %81 : vector<2x128xf32>
    %83 = arith.truncf %82 : vector<2x128xf32> to vector<2x128xbf16>
    %c0_46 = arith.constant 0 : index
    %c0_47 = arith.constant 0 : index
    %c0_48 = arith.constant 0 : index
    %84 = vector.load %arg10[%c0_46, %c0_47, %c0_48] : memref<1x128x128xbf16, #tpu.memory_space<vmem>>, vector<1x128x128xbf16>
    %85 = vector.shape_cast %84 : vector<1x128x128xbf16> to vector<128x128xbf16>
    %cst_49 = arith.constant dense<0.000000e+00> : vector<2x128xf32>
    %86 = tpu.matmul %83, %85, %cst_49 {dimension_numbers = #tpu.dot_dimension_numbers<[1], [0], [0], [1], [0, 0, 1, 1], [], []>} : vector<2x128xbf16>, vector<128x128xbf16>, vector<2x128xf32> -> vector<2x128xf32>
    %c0_50 = arith.constant 0 : index
    %c0_51 = arith.constant 0 : index
    %c0_52 = arith.constant 0 : index
    %87 = vector.load %arg11[%c0_50, %c0_51, %c0_52] : memref<1x1x128xf32, #tpu.memory_space<vmem>>, vector<1x1x128xf32>
    %88 = vector.shape_cast %87 : vector<1x1x128xf32> to vector<1x128xf32>
    %89 = vector.broadcast %88 : vector<1x128xf32> to vector<2x128xf32>
    %90 = arith.addf %86, %89 : vector<2x128xf32>
    %cst_53 = arith.constant dense<0xFF800000> : vector<2xf32>
    %91 = vector.multi_reduction <maximumf>, %90, %cst_53 [1] : vector<2x128xf32> to vector<2xf32>
    %92 = vector.shape_cast %91 : vector<2xf32> to vector<2x1xf32>
    %93 = vector.broadcast %92 : vector<2x1xf32> to vector<2x128xf32>
    %94 = arith.subf %90, %93 : vector<2x128xf32>
    %95 = math.exp %94 : vector<2x128xf32>
    %cst_54 = arith.constant dense<0.000000e+00> : vector<2xf32>
    %96 = vector.multi_reduction <add>, %95, %cst_54 [1] : vector<2x128xf32> to vector<2xf32>
    %97 = vector.shape_cast %96 : vector<2xf32> to vector<2x1xf32>
    %98 = vector.broadcast %97 : vector<2x1xf32> to vector<2x128xf32>
    %99 = arith.divf %95, %98 : vector<2x128xf32>
    %c0_55 = arith.constant 0 : index
    %c0_56 = arith.constant 0 : index
    %c0_57 = arith.constant 0 : index
    %100 = vector.load %arg12[%c0_55, %c0_56, %c0_57] : memref<1x2x128xf32, #tpu.memory_space<vmem>>, vector<1x2x128xf32>
    %101 = vector.shape_cast %100 : vector<1x2x128xf32> to vector<2x128xf32>
    %102 = vector.shape_cast %99 : vector<2x128xf32> to vector<1x2x128xf32>
    tpu.vector_store %arg12[%c0_55, %c0_56, %c0_57], %102 {strides = array<i32>} : memref<1x2x128xf32, #tpu.memory_space<vmem>>, vector<1x2x128xf32>,
    return
  }
  func.func @transform_0(%arg0: i32) -> (i32, i32) {
    %c0_i32 = arith.constant 0 : i32
    %c0_i32_0 = arith.constant 0 : i32
    %c0_i32_1 = arith.constant 0 : i32
    return %c0_i32, %c0_i32_0 : i32, i32
  }
  func.func @transform_1(%arg0: i32) -> (i32, i32, i32) {
    %c0_i32 = arith.constant 0 : i32
    %c0_i32_0 = arith.constant 0 : i32
    %c0_i32_1 = arith.constant 0 : i32
    return %arg0, %c0_i32, %c0_i32_0 : i32, i32, i32
  }
  func.func @transform_2(%arg0: i32) -> (i32, i32, i32) {
    %c0_i32 = arith.constant 0 : i32
    %c0_i32_0 = arith.constant 0 : i32
    %c0_i32_1 = arith.constant 0 : i32
    return %arg0, %c0_i32, %c0_i32_0 : i32, i32, i32
  }
  func.func @transform_3(%arg0: i32) -> (i32, i32, i32) {
    %c0_i32 = arith.constant 0 : i32
    %c0_i32_0 = arith.constant 0 : i32
    %c0_i32_1 = arith.constant 0 : i32
    return %arg0, %c0_i32, %c0_i32_0 : i32, i32, i32
  }
  func.func @transform_4(%arg0: i32) -> (i32, i32, i32) {
    %c0_i32 = arith.constant 0 : i32
    %c0_i32_0 = arith.constant 0 : i32
    %c0_i32_1 = arith.constant 0 : i32
    return %arg0, %c0_i32, %c0_i32_0 : i32, i32, i32
  }
  func.func @transform_5(%arg0: i32) -> (i32, i32, i32) {
    %c0_i32 = arith.constant 0 : i32
    %c0_i32_0 = arith.constant 0 : i32
    %c0_i32_1 = arith.constant 0 : i32
    return %arg0, %c0_i32, %c0_i32_0 : i32, i32, i32
  }
  func.func @transform_6(%arg0: i32) -> (i32, i32, i32) {
    %c0_i32 = arith.constant 0 : i32
    %c0_i32_0 = arith.constant 0 : i32
    %c0_i32_1 = arith.constant 0 : i32
    return %arg0, %c0_i32, %c0_i32_0 : i32, i32, i32
  }
  func.func @transform_7(%arg0: i32) -> (i32, i32, i32) {
    %c0_i32 = arith.constant 0 : i32
    %c0_i32_0 = arith.constant 0 : i32
    %c0_i32_1 = arith.constant 0 : i32
    return %arg0, %c0_i32, %c0_i32_0 : i32, i32, i32
  }
  func.func @transform_8(%arg0: i32) -> (i32, i32, i32) {
    %c0_i32 = arith.constant 0 : i32
    %c0_i32_0 = arith.constant 0 : i32
    %c0_i32_1 = arith.constant 0 : i32
    return %arg0, %c0_i32, %c0_i32_0 : i32, i32, i32
  }
  func.func @transform_9(%arg0: i32) -> (i32, i32, i32) {
    %c0_i32 = arith.constant 0 : i32
    %c0_i32_0 = arith.constant 0 : i32
    %c0_i32_1 = arith.constant 0 : i32
    return %arg0, %c0_i32, %c0_i32_0 : i32, i32, i32
  }
  func.func @transform_10(%arg0: i32) -> (i32, i32, i32) {
    %c0_i32 = arith.constant 0 : i32
    %c0_i32_0 = arith.constant 0 : i32
    %c0_i32_1 = arith.constant 0 : i32
    return %arg0, %c0_i32, %c0_i32_0 : i32, i32, i32
  }
  func.func @transform_11(%arg0: i32) -> (i32, i32, i32) {
    %c0_i32 = arith.constant 0 : i32
    %c0_i32_0 = arith.constant 0 : i32
    %c0_i32_1 = arith.constant 0 : i32
    return %arg0, %c0_i32, %c0_i32_0 : i32, i32, i32
  }
}

</mosaic_0001>

<llo_original>
// kernel: minigrid_cnn_forward.1
$region0: #{minigrid_cnn_forward.1}
  #allocation0 [shape = 'u32[]', space=smem, size = 0x4, offset = 0x4, fixed_abs, tag = 'smem constant byte address 0x4 - core index']
  #allocation1 [shape = 'u32[144,128]{1,0:T(1,128)}', space=vmem, size = 0x12000, scoped, tag = 'internal scratch']
  #allocation2 [shape = 'bf16[32,1152]{1,0:T(16,128)(2,1)}', space=vmem, size = 0x12000, scoped, tag = 'scratch operand']
  %s0 = inlined_call_operand.vmem [shape: bf16[2592,128], index: 0, kind: input, shape index: {}]
  %s1 = inlined_call_operand.vmem [shape: bf16[2,128,128], index: 1, kind: input, shape index: {}]
  %s2 = inlined_call_operand.vmem [shape: f32[2,1,128], index: 2, kind: input, shape index: {}]
  %s3 = inlined_call_operand.vmem [shape: bf16[2,1152,64], index: 3, kind: input, shape index: {}]
  %s4 = inlined_call_operand.vmem [shape: f32[2,1,64], index: 4, kind: input, shape index: {}]
  %s5 = inlined_call_operand.vmem [shape: bf16[2,64,768], index: 5, kind: input, shape index: {}]
  %s6 = inlined_call_operand.vmem [shape: f32[2,1,768], index: 6, kind: input, shape index: {}]
  %s7 = inlined_call_operand.vmem [shape: bf16[2,768,128], index: 7, kind: input, shape index: {}]
  %s8 = inlined_call_operand.vmem [shape: f32[2,1,128], index: 8, kind: input, shape index: {}]
  %s9 = inlined_call_operand.vmem [shape: bf16[2,128,128], index: 9, kind: input, shape index: {}]
  %s10 = inlined_call_operand.vmem [shape: f32[2,1,128], index: 10, kind: input, shape index: {}]
  %s11 = inlined_call_operand.vmem [shape: f32[2,2,128], index: 11, kind: output, shape index: {}]
  %s12 = sld [smem:[#allocation0]]
  $region77: #{minigrid_cnn_forward.1} parent=0
    _
  %s14 = ssub.s32 1, %s12
  %s15 = scalar_select 0, %s14, %s12
  loop: start=0, step=1, limit=4
  $region2: #{minigrid_cnn_forward.1} parent=0 // loop_pre_header
    _
  $region3: #{minigrid_cnn_forward.1} parent=0 // loop_header
    %s17 = sphi 0, %s21
    %p18 = scmp.ge.s32.totalorder %s17, 4
    %s25 = sphi 0, %s25
    %s27 = sphi 0, %s25
    %s28 = sphi 0, %s27
    %s42 = sphi 0, %s28
    %s48 = sphi 0, %s50
    %s51 = sphi 0, %s48
    %s52 = sphi 0, %s51
    %s68 = sphi 0, %s52
    %s74 = sphi 0, %s76
    %s77 = sphi 0, %s74
    %s78 = sphi 0, %s77
    %s94 = sphi 0, %s78
    %s100 = sphi 0, %s102
    %s103 = sphi 0, %s100
    %s104 = sphi 0, %s103
    %s120 = sphi 0, %s104
    %s126 = sphi 0, %s128
    %s129 = sphi 0, %s126
    %s130 = sphi 0, %s129
    %s146 = sphi 0, %s130
    %s152 = sphi 0, %s154
    %s155 = sphi 0, %s152
    %s156 = sphi 0, %s155
    %s172 = sphi 0, %s156
    %s178 = sphi 0, %s180
    %s181 = sphi 0, %s178
    %s182 = sphi 0, %s181
    %s198 = sphi 0, %s182
    %s204 = sphi 0, %s206
    %s207 = sphi 0, %s204
    %s208 = sphi 0, %s207
    %s224 = sphi 0, %s208
    %s230 = sphi 0, %s232
    %s233 = sphi 0, %s230
    %s234 = sphi 0, %s233
    %s250 = sphi 0, %s234
    %s256 = sphi 0, %s258
    %s259 = sphi 0, %s256
    %s260 = sphi 0, %s259
    %s276 = sphi 0, %s260
    %s282 = sphi 0, %s284
    %s285 = sphi 0, %s282
    %s286 = sphi 0, %s285
    %s302 = sphi 0, %s286
    %s308 = sphi 0, %s310
    %s311 = sphi 0, %s308
    %s312 = sphi 0, %s311
    %s328 = sphi 0, %s312
  $region4: #{minigrid_cnn_forward.1} parent=0 // loop_header_branch
    %20 = sbr.rel (%p18) target = $region8
  $region5: #{minigrid_cnn_forward.1} parent=0 // loop_body
    %s22 = ssub.s32 %s17, 1
    %s23 = ssub.s32 %s17, 2
    %s24 = sadd.s32 %s17, 1
    %s26 = sadd.s32 %s25, 1
    %p29 = scmp.eq.s32.totalorder %s17, 1
    %p30 = scmp.ne.s32.totalorder %s25, %s27
    %p31 = scmp.eq.s32.totalorder %s17, 0
    %p32 = por %p30, %p31
    %p33 = scmp.ne.s32.totalorder %s25, %s27
    %p34 = scmp.eq.s32.totalorder %s22, 1
    %p35 = por %p33, %p34
    %p36 = scmp.ne.s32.totalorder %s27, %s28
    %p37 = scmp.eq.s32.totalorder %s22, 0
    %p38 = por %p36, %p37
    %p39 = scmp.ne.s32.totalorder %s27, %s28
    %p40 = scmp.eq.s32.totalorder %s23, 1
    %p41 = por %p39, %p40
    %p43 = scmp.ne.s32.totalorder %s28, %s42
    %p44 = scmp.eq.s32.totalorder %s23, 0
    %p45 = por %p43, %p44
    %s46 = ssub.s32 %s17, %s24
    %p47 = scmp.eq.s32.totalorder %s46, 0
    %s49 = sadd.s32 %s48, 1
    %s50 = scalar_select %p47, %s48, %s49
    %p53 = pneg %p47
    %p54 = scmp.eq.s32.totalorder %s17, 1
    %p55 = por %p53, %p54
    %p56 = scmp.ne.s32.totalorder %s48, %s51
    %p57 = scmp.eq.s32.totalorder %s17, 0
    %p58 = por %p56, %p57
    %p59 = scmp.ne.s32.totalorder %s48, %s51
    %p60 = scmp.eq.s32.totalorder %s22, 1
    %p61 = por %p59, %p60
    %p62 = scmp.ne.s32.totalorder %s51, %s52
    %p63 = scmp.eq.s32.totalorder %s22, 0
    %p64 = por %p62, %p63
    %p65 = scmp.ne.s32.totalorder %s51, %s52
    %p66 = scmp.eq.s32.totalorder %s23, 1
    %p67 = por %p65, %p66
    %p69 = scmp.ne.s32.totalorder %s52, %s68
    %p70 = scmp.eq.s32.totalorder %s23, 0
    %p71 = por %p69, %p70
    %s72 = ssub.s32 %s17, %s24
    %p73 = scmp.eq.s32.totalorder %s72, 0
    %s75 = sadd.s32 %s74, 1
    %s76 = scalar_select %p73, %s74, %s75
    %p79 = pneg %p73
    %p80 = scmp.eq.s32.totalorder %s17, 1
    %p81 = por %p79, %p80
    %p82 = scmp.ne.s32.totalorder %s74, %s77
    %p83 = scmp.eq.s32.totalorder %s17, 0
    %p84 = por %p82, %p83
    %p85 = scmp.ne.s32.totalorder %s74, %s77
    %p86 = scmp.eq.s32.totalorder %s22, 1
    %p87 = por %p85, %p86
    %p88 = scmp.ne.s32.totalorder %s77, %s78
    %p89 = scmp.eq.s32.totalorder %s22, 0
    %p90 = por %p88, %p89
    %p91 = scmp.ne.s32.totalorder %s77, %s78
    %p92 = scmp.eq.s32.totalorder %s23, 1
    %p93 = por %p91, %p92
    %p95 = scmp.ne.s32.totalorder %s78, %s94
    %p96 = scmp.eq.s32.totalorder %s23, 0
    %p97 = por %p95, %p96
    %s98 = ssub.s32 %s17, %s24
    %p99 = scmp.eq.s32.totalorder %s98, 0
    %s101 = sadd.s32 %s100, 1
    %s102 = scalar_select %p99, %s100, %s101
    %p105 = pneg %p99
    %p106 = scmp.eq.s32.totalorder %s17, 1
    %p107 = por %p105, %p106
    %p108 = scmp.ne.s32.totalorder %s100, %s103
    %p109 = scmp.eq.s32.totalorder %s17, 0
    %p110 = por %p108, %p109
    %p111 = scmp.ne.s32.totalorder %s100, %s103
    %p112 = scmp.eq.s32.totalorder %s22, 1
    %p113 = por %p111, %p112
    %p114 = scmp.ne.s32.totalorder %s103, %s104
    %p115 = scmp.eq.s32.totalorder %s22, 0
    %p116 = por %p114, %p115
    %p117 = scmp.ne.s32.totalorder %s103, %s104
    %p118 = scmp.eq.s32.totalorder %s23, 1
    %p119 = por %p117, %p118
    %p121 = scmp.ne.s32.totalorder %s104, %s120
    %p122 = scmp.eq.s32.totalorder %s23, 0
    %p123 = por %p121, %p122
    %s124 = ssub.s32 %s17, %s24
    %p125 = scmp.eq.s32.totalorder %s124, 0
    %s127 = sadd.s32 %s126, 1
    %s128 = scalar_select %p125, %s126, %s127
    %p131 = pneg %p125
    %p132 = scmp.eq.s32.totalorder %s17, 1
    %p133 = por %p131, %p132
    %p134 = scmp.ne.s32.totalorder %s126, %s129
    %p135 = scmp.eq.s32.totalorder %s17, 0
    %p136 = por %p134, %p135
    %p137 = scmp.ne.s32.totalorder %s126, %s129
    %p138 = scmp.eq.s32.totalorder %s22, 1
    %p139 = por %p137, %p138
    %p140 = scmp.ne.s32.totalorder %s129, %s130
    %p141 = scmp.eq.s32.totalorder %s22, 0
    %p142 = por %p140, %p141
    %p143 = scmp.ne.s32.totalorder %s129, %s130
    %p144 = scmp.eq.s32.totalorder %s23, 1
    %p145 = por %p143, %p144
    %p147 = scmp.ne.s32.totalorder %s130, %s146
    %p148 = scmp.eq.s32.totalorder %s23, 0
    %p149 = por %p147, %p148
    %s150 = ssub.s32 %s17, %s24
    %p151 = scmp.eq.s32.totalorder %s150, 0
    %s153 = sadd.s32 %s152, 1
    %s154 = scalar_select %p151, %s152, %s153
    %p157 = pneg %p151
    %p158 = scmp.eq.s32.totalorder %s17, 1
    %p159 = por %p157, %p158
    %p160 = scmp.ne.s32.totalorder %s152, %s155
    %p161 = scmp.eq.s32.totalorder %s17, 0
    %p162 = por %p160, %p161
    %p163 = scmp.ne.s32.totalorder %s152, %s155
    %p164 = scmp.eq.s32.totalorder %s22, 1
    %p165 = por %p163, %p164
    %p166 = scmp.ne.s32.totalorder %s155, %s156
    %p167 = scmp.eq.s32.totalorder %s22, 0
    %p168 = por %p166, %p167
    %p169 = scmp.ne.s32.totalorder %s155, %s156
    %p170 = scmp.eq.s32.totalorder %s23, 1
    %p171 = por %p169, %p170
    %p173 = scmp.ne.s32.totalorder %s156, %s172
    %p174 = scmp.eq.s32.totalorder %s23, 0
    %p175 = por %p173, %p174
    %s176 = ssub.s32 %s17, %s24
    %p177 = scmp.eq.s32.totalorder %s176, 0
    %s179 = sadd.s32 %s178, 1
    %s180 = scalar_select %p177, %s178, %s179
    %p183 = pneg %p177
    %p184 = scmp.eq.s32.totalorder %s17, 1
    %p185 = por %p183, %p184
    %p186 = scmp.ne.s32.totalorder %s178, %s181
    %p187 = scmp.eq.s32.totalorder %s17, 0
    %p188 = por %p186, %p187
    %p189 = scmp.ne.s32.totalorder %s178, %s181
    %p190 = scmp.eq.s32.totalorder %s22, 1
    %p191 = por %p189, %p190
    %p192 = scmp.ne.s32.totalorder %s181, %s182
    %p193 = scmp.eq.s32.totalorder %s22, 0
    %p194 = por %p192, %p193
    %p195 = scmp.ne.s32.totalorder %s181, %s182
    %p196 = scmp.eq.s32.totalorder %s23, 1
    %p197 = por %p195, %p196
    %p199 = scmp.ne.s32.totalorder %s182, %s198
    %p200 = scmp.eq.s32.totalorder %s23, 0
    %p201 = por %p199, %p200
    %s202 = ssub.s32 %s17, %s24
    %p203 = scmp.eq.s32.totalorder %s202, 0
    %s205 = sadd.s32 %s204, 1
    %s206 = scalar_select %p203, %s204, %s205
    %p209 = pneg %p203
    %p210 = scmp.eq.s32.totalorder %s17, 1
    %p211 = por %p209, %p210
    %p212 = scmp.ne.s32.totalorder %s204, %s207
    %p213 = scmp.eq.s32.totalorder %s17, 0
    %p214 = por %p212, %p213
    %p215 = scmp.ne.s32.totalorder %s204, %s207
    %p216 = scmp.eq.s32.totalorder %s22, 1
    %p217 = por %p215, %p216
    %p218 = scmp.ne.s32.totalorder %s207, %s208
    %p219 = scmp.eq.s32.totalorder %s22, 0
    %p220 = por %p218, %p219
    %p221 = scmp.ne.s32.totalorder %s207, %s208
    %p222 = scmp.eq.s32.totalorder %s23, 1
    %p223 = por %p221, %p222
    %p225 = scmp.ne.s32.totalorder %s208, %s224
    %p226 = scmp.eq.s32.totalorder %s23, 0
    %p227 = por %p225, %p226
    %s228 = ssub.s32 %s17, %s24
    %p229 = scmp.eq.s32.totalorder %s228, 0
    %s231 = sadd.s32 %s230, 1
    %s232 = scalar_select %p229, %s230, %s231
    %p235 = pneg %p229
    %p236 = scmp.eq.s32.totalorder %s17, 1
    %p237 = por %p235, %p236
    %p238 = scmp.ne.s32.totalorder %s230, %s233
    %p239 = scmp.eq.s32.totalorder %s17, 0
    %p240 = por %p238, %p239
    %p241 = scmp.ne.s32.totalorder %s230, %s233
    %p242 = scmp.eq.s32.totalorder %s22, 1
    %p243 = por %p241, %p242
    %p244 = scmp.ne.s32.totalorder %s233, %s234
    %p245 = scmp.eq.s32.totalorder %s22, 0
    %p246 = por %p244, %p245
    %p247 = scmp.ne.s32.totalorder %s233, %s234
    %p248 = scmp.eq.s32.totalorder %s23, 1
    %p249 = por %p247, %p248
    %p251 = scmp.ne.s32.totalorder %s234, %s250
    %p252 = scmp.eq.s32.totalorder %s23, 0
    %p253 = por %p251, %p252
    %s254 = ssub.s32 %s17, %s24
    %p255 = scmp.eq.s32.totalorder %s254, 0
    %s257 = sadd.s32 %s256, 1
    %s258 = scalar_select %p255, %s256, %s257
    %p261 = pneg %p255
    %p262 = scmp.eq.s32.totalorder %s17, 1
    %p263 = por %p261, %p262
    %p264 = scmp.ne.s32.totalorder %s256, %s259
    %p265 = scmp.eq.s32.totalorder %s17, 0
    %p266 = por %p264, %p265
    %p267 = scmp.ne.s32.totalorder %s256, %s259
    %p268 = scmp.eq.s32.totalorder %s22, 1
    %p269 = por %p267, %p268
    %p270 = scmp.ne.s32.totalorder %s259, %s260
    %p271 = scmp.eq.s32.totalorder %s22, 0
    %p272 = por %p270, %p271
    %p273 = scmp.ne.s32.totalorder %s259, %s260
    %p274 = scmp.eq.s32.totalorder %s23, 1
    %p275 = por %p273, %p274
    %p277 = scmp.ne.s32.totalorder %s260, %s276
    %p278 = scmp.eq.s32.totalorder %s23, 0
    %p279 = por %p277, %p278
    %s280 = ssub.s32 %s17, %s24
    %p281 = scmp.eq.s32.totalorder %s280, 0
    %s283 = sadd.s32 %s282, 1
    %s284 = scalar_select %p281, %s282, %s283
    %p287 = pneg %p281
    %p288 = scmp.eq.s32.totalorder %s17, 1
    %p289 = por %p287, %p288
    %p290 = scmp.ne.s32.totalorder %s282, %s285
    %p291 = scmp.eq.s32.totalorder %s17, 0
    %p292 = por %p290, %p291
    %p293 = scmp.ne.s32.totalorder %s282, %s285
    %p294 = scmp.eq.s32.totalorder %s22, 1
    %p295 = por %p293, %p294
    %p296 = scmp.ne.s32.totalorder %s285, %s286
    %p297 = scmp.eq.s32.totalorder %s22, 0
    %p298 = por %p296, %p297
    %p299 = scmp.ne.s32.totalorder %s285, %s286
    %p300 = scmp.eq.s32.totalorder %s23, 1
    %p301 = por %p299, %p300
    %p303 = scmp.ne.s32.totalorder %s286, %s302
    %p304 = scmp.eq.s32.totalorder %s23, 0
    %p305 = por %p303, %p304
    %s306 = ssub.s32 %s17, %s24
    %p307 = scmp.eq.s32.totalorder %s306, 0
    %s309 = sadd.s32 %s308, 1
    %s310 = scalar_select %p307, %s308, %s309
    %p313 = pneg %p307
    %p314 = scmp.eq.s32.totalorder %s17, 1
    %p315 = por %p313, %p314
    %p316 = scmp.ne.s32.totalorder %s308, %s311
    %p317 = scmp.eq.s32.totalorder %s17, 0
    %p318 = por %p316, %p317
    %p319 = scmp.ne.s32.totalorder %s308, %s311
    %p320 = scmp.eq.s32.totalorder %s22, 1
    %p321 = por %p319, %p320
    %p322 = scmp.ne.s32.totalorder %s311, %s312
    %p323 = scmp.eq.s32.totalorder %s22, 0
    %p324 = por %p322, %p323
    %p325 = scmp.ne.s32.totalorder %s311, %s312
    %p326 = scmp.eq.s32.totalorder %s23, 1
    %p327 = por %p325, %p326
    %p329 = scmp.ne.s32.totalorder %s312, %s328
    %p330 = scmp.eq.s32.totalorder %s23, 0
    %p331 = por %p329, %p330
    %p332 = scmp.le.s32.totalorder 1, %s17
    %p333 = scmp.lt.s32.totalorder %s17, 3
    %p334 = pnand %p332, %p333
    %p335 = pneg %p334
    // Predicated region
    $region9: #{minigrid_cnn_forward.1} parent=5 // pred_check
      _
    $region10: #{minigrid_cnn_forward.1} parent=5 // pred_check_branch
      %337 = sbr.rel (%p334) target = $region12
    $region11: #{minigrid_cnn_forward.1} parent=5 // pred_region
      %s338 = ssub.s32 %s17, 1
      // Predicated region
      $region13: #{minigrid_cnn_forward.1} parent=11 // pred_check
        %p339 = pneg %p38
      $region14: #{minigrid_cnn_forward.1} parent=11 // pred_check_branch
        %341 = sbr.rel (%p339) target = $region16
      $region15: #{minigrid_cnn_forward.1} parent=11 // pred_region
        _
      $region16: #{minigrid_cnn_forward.1} parent=11 // pred_fallthru
        _
    $region12: #{minigrid_cnn_forward.1} parent=5 // pred_fallthru
      _
    %p342 = scmp.lt.s32.totalorder %s17, 2
    // Predicated region
    $region17: #{minigrid_cnn_forward.1} parent=5 // pred_check
      %p343 = pneg %p342
    $region18: #{minigrid_cnn_forward.1} parent=5 // pred_check_branch
      %345 = sbr.rel (%p343) target = $region20
    $region19: #{minigrid_cnn_forward.1} parent=5 // pred_region
      // Predicated region
      $region21: #{minigrid_cnn_forward.1} parent=19 // pred_check
        %p346 = pneg %p58
      $region22: #{minigrid_cnn_forward.1} parent=19 // pred_check_branch
        %348 = sbr.rel (%p346) target = $region24
      $region23: #{minigrid_cnn_forward.1} parent=19 // pred_region
        %p349 = scmp.lt.s32.totalorder %s17, 1
        %s350 = scalar_select %p349, %s17, 1
        %s351 = smul.addr %s350, 16
        %s352 = smul.addr %s351, 4
        %s353 = scalar_lea.vmem %s1, %s352
      $region24: #{minigrid_cnn_forward.1} parent=19 // pred_fallthru
        _
      // Predicated region
      $region25: #{minigrid_cnn_forward.1} parent=19 // pred_check
        %p354 = pneg %p84
      $region26: #{minigrid_cnn_forward.1} parent=19 // pred_check_branch
        %356 = sbr.rel (%p354) target = $region28
      $region27: #{minigrid_cnn_forward.1} parent=19 // pred_region
        %p357 = scmp.lt.s32.totalorder %s17, 1
        %s358 = scalar_select %p357, %s17, 1
        %s359 = scalar_lea.vmem %s2, %s358
      $region28: #{minigrid_cnn_forward.1} parent=19 // pred_fallthru
        _
      // Predicated region
      $region29: #{minigrid_cnn_forward.1} parent=19 // pred_check
        %p360 = pneg %p110
      $region30: #{minigrid_cnn_forward.1} parent=19 // pred_check_branch
        %362 = sbr.rel (%p360) target = $region32
      $region31: #{minigrid_cnn_forward.1} parent=19 // pred_region
        %p363 = scmp.lt.s32.totalorder %s17, 1
        %s364 = scalar_select %p363, %s17, 1
        %s365 = smul.addr %s364, 144
        %s366 = smul.addr %s365, 4
        %s367 = scalar_lea.vmem %s3, %s366
      $region32: #{minigrid_cnn_forward.1} parent=19 // pred_fallthru
        _
      // Predicated region
      $region33: #{minigrid_cnn_forward.1} parent=19 // pred_check
        %p368 = pneg %p136
      $region34: #{minigrid_cnn_forward.1} parent=19 // pred_check_branch
        %370 = sbr.rel (%p368) target = $region36
      $region35: #{minigrid_cnn_forward.1} parent=19 // pred_region
        %p371 = scmp.lt.s32.totalorder %s17, 1
        %s372 = scalar_select %p371, %s17, 1
        %s373 = scalar_lea.vmem %s4, %s372
      $region36: #{minigrid_cnn_forward.1} parent=19 // pred_fallthru
        _
      // Predicated region
      $region37: #{minigrid_cnn_forward.1} parent=19 // pred_check
        %p374 = pneg %p162
      $region38: #{minigrid_cnn_forward.1} parent=19 // pred_check_branch
        %376 = sbr.rel (%p374) target = $region40
      $region39: #{minigrid_cnn_forward.1} parent=19 // pred_region
        %p377 = scmp.lt.s32.totalorder %s17, 1
        %s378 = scalar_select %p377, %s17, 1
        %s379 = smul.addr %s378, 48
        %s380 = smul.addr %s379, 4
        %s381 = scalar_lea.vmem %s5, %s380
      $region40: #{minigrid_cnn_forward.1} parent=19 // pred_fallthru
        _
      // Predicated region
      $region41: #{minigrid_cnn_forward.1} parent=19 // pred_check
        %p382 = pneg %p188
      $region42: #{minigrid_cnn_forward.1} parent=19 // pred_check_branch
        %384 = sbr.rel (%p382) target = $region44
      $region43: #{minigrid_cnn_forward.1} parent=19 // pred_region
        %p385 = scmp.lt.s32.totalorder %s17, 1
        %s386 = scalar_select %p385, %s17, 1
        %s387 = smul.addr %s386, 6
        %s388 = scalar_lea.vmem %s6, %s387
      $region44: #{minigrid_cnn_forward.1} parent=19 // pred_fallthru
        _
      // Predicated region
      $region45: #{minigrid_cnn_forward.1} parent=19 // pred_check
        %p389 = pneg %p214
      $region46: #{minigrid_cnn_forward.1} parent=19 // pred_check_branch
        %391 = sbr.rel (%p389) target = $region48
      $region47: #{minigrid_cnn_forward.1} parent=19 // pred_region
        %p392 = scmp.lt.s32.totalorder %s17, 1
        %s393 = scalar_select %p392, %s17, 1
        %s394 = smul.addr %s393, 96
        %s395 = smul.addr %s394, 4
        %s396 = scalar_lea.vmem %s7, %s395
      $region48: #{minigrid_cnn_forward.1} parent=19 // pred_fallthru
        _
      // Predicated region
      $region49: #{minigrid_cnn_forward.1} parent=19 // pred_check
        %p397 = pneg %p240
      $region50: #{minigrid_cnn_forward.1} parent=19 // pred_check_branch
        %399 = sbr.rel (%p397) target = $region52
      $region51: #{minigrid_cnn_forward.1} parent=19 // pred_region
        %p400 = scmp.lt.s32.totalorder %s17, 1
        %s401 = scalar_select %p400, %s17, 1
        %s402 = scalar_lea.vmem %s8, %s401
      $region52: #{minigrid_cnn_forward.1} parent=19 // pred_fallthru
        _
      // Predicated region
      $region53: #{minigrid_cnn_forward.1} parent=19 // pred_check
        %p403 = pneg %p266
      $region54: #{minigrid_cnn_forward.1} parent=19 // pred_check_branch
        %405 = sbr.rel (%p403) target = $region56
      $region55: #{minigrid_cnn_forward.1} parent=19 // pred_region
        %p406 = scmp.lt.s32.totalorder %s17, 1
        %s407 = scalar_select %p406, %s17, 1
        %s408 = smul.addr %s407, 16
        %s409 = smul.addr %s408, 4
        %s410 = scalar_lea.vmem %s9, %s409
      $region56: #{minigrid_cnn_forward.1} parent=19 // pred_fallthru
        _
      // Predicated region
      $region57: #{minigrid_cnn_forward.1} parent=19 // pred_check
        %p411 = pneg %p292
      $region58: #{minigrid_cnn_forward.1} parent=19 // pred_check_branch
        %413 = sbr.rel (%p411) target = $region60
      $region59: #{minigrid_cnn_forward.1} parent=19 // pred_region
        %p414 = scmp.lt.s32.totalorder %s17, 1
        %s415 = scalar_select %p414, %s17, 1
        %s416 = scalar_lea.vmem %s10, %s415
      $region60: #{minigrid_cnn_forward.1} parent=19 // pred_fallthru
        _
    $region20: #{minigrid_cnn_forward.1} parent=5 // pred_fallthru
      _
    %p417 = scmp.le.s32.totalorder 1, %s17
    %p418 = scmp.lt.s32.totalorder %s17, 3
    %p419 = pnand %p417, %p418
    %p420 = pneg %p419
    // Predicated region
    $region61: #{minigrid_cnn_forward.1} parent=5 // pred_check
      _
    $region62: #{minigrid_cnn_forward.1} parent=5 // pred_check_branch
      %422 = sbr.rel (%p419) target = $region64
    $region63: #{minigrid_cnn_forward.1} parent=5 // pred_region
      %s423 = ssub.s32 %s17, 1
      %p424 = pneg %p38
      %p425 = pneg %p35
      %p426 = scmp.lt.s32.totalorder %s22, 1
      %s427 = scalar_select %p426, %s22, 1
      %s428 = smul.addr %s427, 16
      %s429 = smul.addr %s428, 4
      %s430 = scalar_lea.vmem %s1, %s429
      %p431 = pneg %p64
      %p432 = pneg %p61
      %p433 = scmp.lt.s32.totalorder %s22, 1
      %s434 = scalar_select %p433, %s22, 1
      %s435 = scalar_lea.vmem %s2, %s434
      %p436 = pneg %p90
      %p437 = pneg %p87
      %p438 = scmp.lt.s32.totalorder %s22, 1
      %s439 = scalar_select %p438, %s22, 1
      %s440 = smul.addr %s439, 144
      %s441 = smul.addr %s440, 4
      %s442 = scalar_lea.vmem %s3, %s441
      %p443 = pneg %p116
      %p444 = pneg %p113
      %p445 = scmp.lt.s32.totalorder %s22, 1
      %s446 = scalar_select %p445, %s22, 1
      %s447 = scalar_lea.vmem %s4, %s446
      %p448 = pneg %p142
      %p449 = pneg %p139
      %p450 = scmp.lt.s32.totalorder %s22, 1
      %s451 = scalar_select %p450, %s22, 1
      %s452 = smul.addr %s451, 48
      %s453 = smul.addr %s452, 4
      %s454 = scalar_lea.vmem %s5, %s453
      %p455 = pneg %p168
      %p456 = pneg %p165
      %p457 = scmp.lt.s32.totalorder %s22, 1
      %s458 = scalar_select %p457, %s22, 1
      %s459 = smul.addr %s458, 6
      %s460 = scalar_lea.vmem %s6, %s459
      %p461 = pneg %p194
      %p462 = pneg %p191
      %p463 = scmp.lt.s32.totalorder %s22, 1
      %s464 = scalar_select %p463, %s22, 1
      %s465 = smul.addr %s464, 96
      %s466 = smul.addr %s465, 4
      %s467 = scalar_lea.vmem %s7, %s466
      %p468 = pneg %p220
      %p469 = pneg %p217
      %p470 = scmp.lt.s32.totalorder %s22, 1
      %s471 = scalar_select %p470, %s22, 1
      %s472 = scalar_lea.vmem %s8, %s471
      %p473 = pneg %p246
      %p474 = pneg %p243
      %p475 = scmp.lt.s32.totalorder %s22, 1
      %s476 = scalar_select %p475, %s22, 1
      %s477 = smul.addr %s476, 16
      %s478 = smul.addr %s477, 4
      %s479 = scalar_lea.vmem %s9, %s478
      %p480 = pneg %p272
      %p481 = pneg %p269
      %p482 = scmp.lt.s32.totalorder %s22, 1
      %s483 = scalar_select %p482, %s22, 1
      %s484 = scalar_lea.vmem %s10, %s483
      %p485 = pneg %p298
      %p486 = pneg %p295
      %p487 = pneg %p324
      %p488 = pneg %p321
      %p489 = scmp.lt.s32.totalorder %s22, 1
      %s490 = scalar_select %p489, %s22, 1
      %s491 = smul.addr %s490, 2
      %s492 = scalar_lea.vmem %s11, %s491
      %p493 = scmp.lt.s32.totalorder %s22, 1
      %s494 = scalar_select %p493, %s22, 1
      %s495 = smul.addr %s494, 16
      %s496 = smul.addr %s495, 4
      %s497 = scalar_lea.vmem %s1, %s496
      %p498 = scmp.lt.s32.totalorder %s22, 1
      %s499 = scalar_select %p498, %s22, 1
      %s500 = scalar_lea.vmem %s2, %s499
      %p501 = scmp.lt.s32.totalorder %s22, 1
      %s502 = scalar_select %p501, %s22, 1
      %s503 = smul.addr %s502, 144
      %s504 = smul.addr %s503, 4
      %s505 = scalar_lea.vmem %s3, %s504
      %p506 = scmp.lt.s32.totalorder %s22, 1
      %s507 = scalar_select %p506, %s22, 1
      %s508 = scalar_lea.vmem %s4, %s507
      %p509 = scmp.lt.s32.totalorder %s22, 1
      %s510 = scalar_select %p509, %s22, 1
      %s511 = smul.addr %s510, 48
      %s512 = smul.addr %s511, 4
      %s513 = scalar_lea.vmem %s5, %s512
      %p514 = scmp.lt.s32.totalorder %s22, 1
      %s515 = scalar_select %p514, %s22, 1
      %s516 = smul.addr %s515, 6
      %s517 = scalar_lea.vmem %s6, %s516
      %p518 = scmp.lt.s32.totalorder %s22, 1
      %s519 = scalar_select %p518, %s22, 1
      %s520 = smul.addr %s519, 96
      %s521 = smul.addr %s520, 4
      %s522 = scalar_lea.vmem %s7, %s521
      %p523 = scmp.lt.s32.totalorder %s22, 1
      %s524 = scalar_select %p523, %s22, 1
      %s525 = scalar_lea.vmem %s8, %s524
      %p526 = scmp.lt.s32.totalorder %s22, 1
      %s527 = scalar_select %p526, %s22, 1
      %s528 = smul.addr %s527, 16
      %s529 = smul.addr %s528, 4
      %s530 = scalar_lea.vmem %s9, %s529
      %p531 = scmp.lt.s32.totalorder %s22, 1
      %s532 = scalar_select %p531, %s22, 1
      %s533 = scalar_lea.vmem %s10, %s532
      %p534 = scmp.lt.s32.totalorder %s22, 1
      %s535 = scalar_select %p534, %s22, 1
      %s536 = smul.addr %s535, 2
      %s537 = scalar_lea.vmem %s11, %s536
      %v539 = vld [vmem:[%s0] sm:$0xf]
      %v540 = vld [vmem:[%s0 + $0x4] sm:$0xf]
      %v541 = vld [vmem:[%s0 + $0x8] sm:$0xf]
      %v542 = vld [vmem:[%s0 + $0xc] sm:$0xf]
      %v543 = vld [vmem:[%s0 + $0x10] sm:$0xf]
      %v544 = vld [vmem:[%s0 + $0x14] sm:$0xf]
      %v545 = vld [vmem:[%s0 + $0x18] sm:$0xf]
      %v546 = vld [vmem:[%s0 + $0x1c] sm:$0xf]
      %v547 = vld [vmem:[%s0 + $0x20] sm:$0xf]
      %v548 = vld [vmem:[%s0 + $0x24] sm:$0xf]
      %v549 = vld [vmem:[%s0 + $0x28] sm:$0xf]
      %v550 = vld [vmem:[%s0 + $0x2c] sm:$0xf]
      %v551 = vld [vmem:[%s0 + $0x30] sm:$0xf]
      %v552 = vld [vmem:[%s0 + $0x34] sm:$0xf]
      %v553 = vld [vmem:[%s0 + $0x38] sm:$0xf]
      %v554 = vld [vmem:[%s0 + $0x3c] sm:$0xf]
      %v555 = vld [vmem:[%s0 + $0x40] sm:$0xf]
      %v556 = vld [vmem:[%s0 + $0x44] sm:$0xf]
      %v557 = vld [vmem:[%s0 + $0x48] sm:$0xf]
      %v558 = vld [vmem:[%s0 + $0x4c] sm:$0xf]
      %v559 = vld [vmem:[%s0 + $0x50] sm:$0xf]
      %v560 = vld [vmem:[%s0 + $0x54] sm:$0xf]
      %v561 = vld [vmem:[%s0 + $0x58] sm:$0xf]
      %v562 = vld [vmem:[%s0 + $0x5c] sm:$0xf]
      %v563 = vld [vmem:[%s0 + $0x60] sm:$0xf]
      %v564 = vld [vmem:[%s0 + $0x64] sm:$0xf]
      %v565 = vld [vmem:[%s0 + $0x68] sm:$0xf]
      %v566 = vld [vmem:[%s0 + $0x6c] sm:$0xf]
      %v567 = vld [vmem:[%s0 + $0x70] sm:$0xf]
      %v568 = vld [vmem:[%s0 + $0x74] sm:$0xf]
      %v569 = vld [vmem:[%s0 + $0x78] sm:$0xf]
      %v570 = vld [vmem:[%s0 + $0x7c] sm:$0xf]
      %v571 = vld [vmem:[%s0 + $0x80] sm:$0xf]
      %v572 = vld [vmem:[%s0 + $0x84] sm:$0xf]
      %v573 = vld [vmem:[%s0 + $0x88] sm:$0xf]
      %v574 = vld [vmem:[%s0 + $0x8c] sm:$0xf]
      %v575 = vld [vmem:[%s0 + $0x90] sm:$0xf]
      %v576 = vld [vmem:[%s0 + $0x94] sm:$0xf]
      %v577 = vld [vmem:[%s0 + $0x98] sm:$0xf]
      %v578 = vld [vmem:[%s0 + $0x9c] sm:$0xf]
      %v579 = vld [vmem:[%s0 + $0xa0] sm:$0xf]
      %v580 = vld [vmem:[%s0 + $0xa4] sm:$0xf]
      %v581 = vld [vmem:[%s0 + $0xa8] sm:$0xf]
      %v582 = vld [vmem:[%s0 + $0xac] sm:$0xf]
      %v583 = vld [vmem:[%s0 + $0xb0] sm:$0xf]
      %v584 = vld [vmem:[%s0 + $0xb4] sm:$0xf]
      %v585 = vld [vmem:[%s0 + $0xb8] sm:$0xf]
      %v586 = vld [vmem:[%s0 + $0xbc] sm:$0xf]
      %v587 = vld [vmem:[%s0 + $0xc0] sm:$0xf]
      %v588 = vld [vmem:[%s0 + $0xc4] sm:$0xf]
      %v589 = vld [vmem:[%s0 + $0xc8] sm:$0xf]
      %v590 = vld [vmem:[%s0 + $0xcc] sm:$0xf]
      %v591 = vld [vmem:[%s0 + $0xd0] sm:$0xf]
      %v592 = vld [vmem:[%s0 + $0xd4] sm:$0xf]
      %v593 = vld [vmem:[%s0 + $0xd8] sm:$0xf]
      %v594 = vld [vmem:[%s0 + $0xdc] sm:$0xf]
      %v595 = vld [vmem:[%s0 + $0xe0] sm:$0xf]
      %v596 = vld [vmem:[%s0 + $0xe4] sm:$0xf]
      %v597 = vld [vmem:[%s0 + $0xe8] sm:$0xf]
      %v598 = vld [vmem:[%s0 + $0xec] sm:$0xf]
      %v599 = vld [vmem:[%s0 + $0xf0] sm:$0xf]
      %v600 = vld [vmem:[%s0 + $0xf4] sm:$0xf]
      %v601 = vld [vmem:[%s0 + $0xf8] sm:$0xf]
      %v602 = vld [vmem:[%s0 + $0xfc] sm:$0xf]
      %v603 = vld [vmem:[%s0 + $0x100] sm:$0xf]
      %v604 = vld [vmem:[%s0 + $0x104] sm:$0xf]
      %v605 = vld [vmem:[%s0 + $0x108] sm:$0xf]
      %v606 = vld [vmem:[%s0 + $0x10c] sm:$0xf]
      %v607 = vld [vmem:[%s0 + $0x110] sm:$0xf]
      %v608 = vld [vmem:[%s0 + $0x114] sm:$0xf]
      %v609 = vld [vmem:[%s0 + $0x118] sm:$0xf]
      %v610 = vld [vmem:[%s0 + $0x11c] sm:$0xf]
      %v611 = vld [vmem:[%s0 + $0x120] sm:$0xf]
      %v612 = vld [vmem:[%s0 + $0x124] sm:$0xf]
      %v613 = vld [vmem:[%s0 + $0x128] sm:$0xf]
      %v614 = vld [vmem:[%s0 + $0x12c] sm:$0xf]
      %v615 = vld [vmem:[%s0 + $0x130] sm:$0xf]
      %v616 = vld [vmem:[%s0 + $0x134] sm:$0xf]
      %v617 = vld [vmem:[%s0 + $0x138] sm:$0xf]
      %v618 = vld [vmem:[%s0 + $0x13c] sm:$0xf]
      %v619 = vld [vmem:[%s0 + $0x140] sm:$0xf]
      %v620 = vld [vmem:[%s0 + $0x144] sm:$0xf]
      %v621 = vld [vmem:[%s0 + $0x148] sm:$0xf]
      %v622 = vld [vmem:[%s0 + $0x14c] sm:$0xf]
      %v623 = vld [vmem:[%s0 + $0x150] sm:$0xf]
      %v624 = vld [vmem:[%s0 + $0x154] sm:$0xf]
      %v625 = vld [vmem:[%s0 + $0x158] sm:$0xf]
      %v626 = vld [vmem:[%s0 + $0x15c] sm:$0xf]
      %v627 = vld [vmem:[%s0 + $0x160] sm:$0xf]
      %v628 = vld [vmem:[%s0 + $0x164] sm:$0xf]
      %v629 = vld [vmem:[%s0 + $0x168] sm:$0xf]
      %v630 = vld [vmem:[%s0 + $0x16c] sm:$0xf]
      %v631 = vld [vmem:[%s0 + $0x170] sm:$0xf]
      %v632 = vld [vmem:[%s0 + $0x174] sm:$0xf]
      %v633 = vld [vmem:[%s0 + $0x178] sm:$0xf]
      %v634 = vld [vmem:[%s0 + $0x17c] sm:$0xf]
      %v635 = vld [vmem:[%s0 + $0x180] sm:$0xf]
      %v636 = vld [vmem:[%s0 + $0x184] sm:$0xf]
      %v637 = vld [vmem:[%s0 + $0x188] sm:$0xf]
      %v638 = vld [vmem:[%s0 + $0x18c] sm:$0xf]
      %v639 = vld [vmem:[%s0 + $0x190] sm:$0xf]
      %v640 = vld [vmem:[%s0 + $0x194] sm:$0xf]
      %v641 = vld [vmem:[%s0 + $0x198] sm:$0xf]
      %v642 = vld [vmem:[%s0 + $0x19c] sm:$0xf]
      %v643 = vld [vmem:[%s0 + $0x1a0] sm:$0xf]
      %v644 = vld [vmem:[%s0 + $0x1a4] sm:$0xf]
      %v645 = vld [vmem:[%s0 + $0x1a8] sm:$0xf]
      %v646 = vld [vmem:[%s0 + $0x1ac] sm:$0xf]
      %v647 = vld [vmem:[%s0 + $0x1b0] sm:$0xf]
      %v648 = vld [vmem:[%s0 + $0x1b4] sm:$0xf]
      %v649 = vld [vmem:[%s0 + $0x1b8] sm:$0xf]
      %v650 = vld [vmem:[%s0 + $0x1bc] sm:$0xf]
      %v651 = vld [vmem:[%s0 + $0x1c0] sm:$0xf]
      %v652 = vld [vmem:[%s0 + $0x1c4] sm:$0xf]
      %v653 = vld [vmem:[%s0 + $0x1c8] sm:$0xf]
      %v654 = vld [vmem:[%s0 + $0x1cc] sm:$0xf]
      %v655 = vld [vmem:[%s0 + $0x1d0] sm:$0xf]
      %v656 = vld [vmem:[%s0 + $0x1d4] sm:$0xf]
      %v657 = vld [vmem:[%s0 + $0x1d8] sm:$0xf]
      %v658 = vld [vmem:[%s0 + $0x1dc] sm:$0xf]
      %v659 = vld [vmem:[%s0 + $0x1e0] sm:$0xf]
      %v660 = vld [vmem:[%s0 + $0x1e4] sm:$0xf]
      %v661 = vld [vmem:[%s0 + $0x1e8] sm:$0xf]
      %v662 = vld [vmem:[%s0 + $0x1ec] sm:$0xf]
      %v663 = vld [vmem:[%s0 + $0x1f0] sm:$0xf]
      %v664 = vld [vmem:[%s0 + $0x1f4] sm:$0xf]
      %v665 = vld [vmem:[%s0 + $0x1f8] sm:$0xf]
      %v666 = vld [vmem:[%s0 + $0x1fc] sm:$0xf]
      %v667 = vld [vmem:[%s0 + $0x200] sm:$0xf]
      %v668 = vld [vmem:[%s0 + $0x204] sm:$0xf]
      %v669 = vld [vmem:[%s0 + $0x208] sm:$0xf]
      %v670 = vld [vmem:[%s0 + $0x20c] sm:$0xf]
      %v671 = vld [vmem:[%s0 + $0x210] sm:$0xf]
      %v672 = vld [vmem:[%s0 + $0x214] sm:$0xf]
      %v673 = vld [vmem:[%s0 + $0x218] sm:$0xf]
      %v674 = vld [vmem:[%s0 + $0x21c] sm:$0xf]
      %v675 = vld [vmem:[%s0 + $0x220] sm:$0xf]
      %v676 = vld [vmem:[%s0 + $0x224] sm:$0xf]
      %v677 = vld [vmem:[%s0 + $0x228] sm:$0xf]
      %v678 = vld [vmem:[%s0 + $0x22c] sm:$0xf]
      %v679 = vld [vmem:[%s0 + $0x230] sm:$0xf]
      %v680 = vld [vmem:[%s0 + $0x234] sm:$0xf]
      %v681 = vld [vmem:[%s0 + $0x238] sm:$0xf]
      %v682 = vld [vmem:[%s0 + $0x23c] sm:$0xf]
      %v683 = vld [vmem:[%s0 + $0x240] sm:$0xf]
      %v684 = vld [vmem:[%s0 + $0x244] sm:$0xf]
      %v685 = vld [vmem:[%s0 + $0x248] sm:$0xf]
      %v686 = vld [vmem:[%s0 + $0x24c] sm:$0xf]
      %v687 = vld [vmem:[%s0 + $0x250] sm:$0xf]
      %v688 = vld [vmem:[%s0 + $0x254] sm:$0xf]
      %v689 = vld [vmem:[%s0 + $0x258] sm:$0xf]
      %v690 = vld [vmem:[%s0 + $0x25c] sm:$0xf]
      %v691 = vld [vmem:[%s0 + $0x260] sm:$0xf]
      %v692 = vld [vmem:[%s0 + $0x264] sm:$0xf]
      %v693 = vld [vmem:[%s0 + $0x268] sm:$0xf]
      %v694 = vld [vmem:[%s0 + $0x26c] sm:$0xf]
      %v695 = vld [vmem:[%s0 + $0x270] sm:$0xf]
      %v696 = vld [vmem:[%s0 + $0x274] sm:$0xf]
      %v697 = vld [vmem:[%s0 + $0x278] sm:$0xf]
      %v698 = vld [vmem:[%s0 + $0x27c] sm:$0xf]
      %v699 = vld [vmem:[%s0 + $0x280] sm:$0xf]
      %v700 = vld [vmem:[%s0 + $0x284] sm:$0xf]
      %v701 = vld [vmem:[%s0 + $0x288] sm:$0xf]
      %v702 = vld [vmem:[%s0 + $0x28c] sm:$0xf]
      %v703 = vld [vmem:[%s0 + $0x290] sm:$0xf]
      %v704 = vld [vmem:[%s0 + $0x294] sm:$0xf]
      %v705 = vld [vmem:[%s0 + $0x298] sm:$0xf]
      %v706 = vld [vmem:[%s0 + $0x29c] sm:$0xf]
      %v707 = vld [vmem:[%s0 + $0x2a0] sm:$0xf]
      %v708 = vld [vmem:[%s0 + $0x2a4] sm:$0xf]
      %v709 = vld [vmem:[%s0 + $0x2a8] sm:$0xf]
      %v710 = vld [vmem:[%s0 + $0x2ac] sm:$0xf]
      %v711 = vld [vmem:[%s0 + $0x2b0] sm:$0xf]
      %v712 = vld [vmem:[%s0 + $0x2b4] sm:$0xf]
      %v713 = vld [vmem:[%s0 + $0x2b8] sm:$0xf]
      %v714 = vld [vmem:[%s0 + $0x2bc] sm:$0xf]
      %v715 = vld [vmem:[%s0 + $0x2c0] sm:$0xf]
      %v716 = vld [vmem:[%s0 + $0x2c4] sm:$0xf]
      %v717 = vld [vmem:[%s0 + $0x2c8] sm:$0xf]
      %v718 = vld [vmem:[%s0 + $0x2cc] sm:$0xf]
      %v719 = vld [vmem:[%s0 + $0x2d0] sm:$0xf]
      %v720 = vld [vmem:[%s0 + $0x2d4] sm:$0xf]
      %v721 = vld [vmem:[%s0 + $0x2d8] sm:$0xf]
      %v722 = vld [vmem:[%s0 + $0x2dc] sm:$0xf]
      %v723 = vld [vmem:[%s0 + $0x2e0] sm:$0xf]
      %v724 = vld [vmem:[%s0 + $0x2e4] sm:$0xf]
      %v725 = vld [vmem:[%s0 + $0x2e8] sm:$0xf]
      %v726 = vld [vmem:[%s0 + $0x2ec] sm:$0xf]
      %v727 = vld [vmem:[%s0 + $0x2f0] sm:$0xf]
      %v728 = vld [vmem:[%s0 + $0x2f4] sm:$0xf]
      %v729 = vld [vmem:[%s0 + $0x2f8] sm:$0xf]
      %v730 = vld [vmem:[%s0 + $0x2fc] sm:$0xf]
      %v731 = vld [vmem:[%s0 + $0x300] sm:$0xf]
      %v732 = vld [vmem:[%s0 + $0x304] sm:$0xf]
      %v733 = vld [vmem:[%s0 + $0x308] sm:$0xf]
      %v734 = vld [vmem:[%s0 + $0x30c] sm:$0xf]
      %v735 = vld [vmem:[%s0 + $0x310] sm:$0xf]
      %v736 = vld [vmem:[%s0 + $0x314] sm:$0xf]
      %v737 = vld [vmem:[%s0 + $0x318] sm:$0xf]
      %v738 = vld [vmem:[%s0 + $0x31c] sm:$0xf]
      %v739 = vld [vmem:[%s0 + $0x320] sm:$0xf]
      %v740 = vld [vmem:[%s0 + $0x324] sm:$0xf]
      %v741 = vld [vmem:[%s0 + $0x328] sm:$0xf]
      %v742 = vld [vmem:[%s0 + $0x32c] sm:$0xf]
      %v743 = vld [vmem:[%s0 + $0x330] sm:$0xf]
      %v744 = vld [vmem:[%s0 + $0x334] sm:$0xf]
      %v745 = vld [vmem:[%s0 + $0x338] sm:$0xf]
      %v746 = vld [vmem:[%s0 + $0x33c] sm:$0xf]
      %v747 = vld [vmem:[%s0 + $0x340] sm:$0xf]
      %v748 = vld [vmem:[%s0 + $0x344] sm:$0xf]
      %v749 = vld [vmem:[%s0 + $0x348] sm:$0xf]
      %v750 = vld [vmem:[%s0 + $0x34c] sm:$0xf]
      %v751 = vld [vmem:[%s0 + $0x350] sm:$0xf]
      %v752 = vld [vmem:[%s0 + $0x354] sm:$0xf]
      %v753 = vld [vmem:[%s0 + $0x358] sm:$0xf]
      %v754 = vld [vmem:[%s0 + $0x35c] sm:$0xf]
      %v755 = vld [vmem:[%s0 + $0x360] sm:$0xf]
      %v756 = vld [vmem:[%s0 + $0x364] sm:$0xf]
      %v757 = vld [vmem:[%s0 + $0x368] sm:$0xf]
      %v758 = vld [vmem:[%s0 + $0x36c] sm:$0xf]
      %v759 = vld [vmem:[%s0 + $0x370] sm:$0xf]
      %v760 = vld [vmem:[%s0 + $0x374] sm:$0xf]
      %v761 = vld [vmem:[%s0 + $0x378] sm:$0xf]
      %v762 = vld [vmem:[%s0 + $0x37c] sm:$0xf]
      %v763 = vld [vmem:[%s0 + $0x380] sm:$0xf]
      %v764 = vld [vmem:[%s0 + $0x384] sm:$0xf]
      %v765 = vld [vmem:[%s0 + $0x388] sm:$0xf]
      %v766 = vld [vmem:[%s0 + $0x38c] sm:$0xf]
      %v767 = vld [vmem:[%s0 + $0x390] sm:$0xf]
      %v768 = vld [vmem:[%s0 + $0x394] sm:$0xf]
      %v769 = vld [vmem:[%s0 + $0x398] sm:$0xf]
      %v770 = vld [vmem:[%s0 + $0x39c] sm:$0xf]
      %v771 = vld [vmem:[%s0 + $0x3a0] sm:$0xf]
      %v772 = vld [vmem:[%s0 + $0x3a4] sm:$0xf]
      %v773 = vld [vmem:[%s0 + $0x3a8] sm:$0xf]
      %v774 = vld [vmem:[%s0 + $0x3ac] sm:$0xf]
      %v775 = vld [vmem:[%s0 + $0x3b0] sm:$0xf]
      %v776 = vld [vmem:[%s0 + $0x3b4] sm:$0xf]
      %v777 = vld [vmem:[%s0 + $0x3b8] sm:$0xf]
      %v778 = vld [vmem:[%s0 + $0x3bc] sm:$0xf]
      %v779 = vld [vmem:[%s0 + $0x3c0] sm:$0xf]
      %v780 = vld [vmem:[%s0 + $0x3c4] sm:$0xf]
      %v781 = vld [vmem:[%s0 + $0x3c8] sm:$0xf]
      %v782 = vld [vmem:[%s0 + $0x3cc] sm:$0xf]
      %v783 = vld [vmem:[%s0 + $0x3d0] sm:$0xf]
      %v784 = vld [vmem:[%s0 + $0x3d4] sm:$0xf]
      %v785 = vld [vmem:[%s0 + $0x3d8] sm:$0xf]
      %v786 = vld [vmem:[%s0 + $0x3dc] sm:$0xf]
      %v787 = vld [vmem:[%s0 + $0x3e0] sm:$0xf]
      %v788 = vld [vmem:[%s0 + $0x3e4] sm:$0xf]
      %v789 = vld [vmem:[%s0 + $0x3e8] sm:$0xf]
      %v790 = vld [vmem:[%s0 + $0x3ec] sm:$0xf]
      %v791 = vld [vmem:[%s0 + $0x3f0] sm:$0xf]
      %v792 = vld [vmem:[%s0 + $0x3f4] sm:$0xf]
      %v793 = vld [vmem:[%s0 + $0x3f8] sm:$0xf]
      %v794 = vld [vmem:[%s0 + $0x3fc] sm:$0xf]
      %v795 = vld [vmem:[%s0 + $0x400] sm:$0xf]
      %v796 = vld [vmem:[%s0 + $0x404] sm:$0xf]
      %v797 = vld [vmem:[%s0 + $0x408] sm:$0xf]
      %v798 = vld [vmem:[%s0 + $0x40c] sm:$0xf]
      %v799 = vld [vmem:[%s0 + $0x410] sm:$0xf]
      %v800 = vld [vmem:[%s0 + $0x414] sm:$0xf]
      %v801 = vld [vmem:[%s0 + $0x418] sm:$0xf]
      %v802 = vld [vmem:[%s0 + $0x41c] sm:$0xf]
      %v803 = vld [vmem:[%s0 + $0x420] sm:$0xf]
      %v804 = vld [vmem:[%s0 + $0x424] sm:$0xf]
      %v805 = vld [vmem:[%s0 + $0x428] sm:$0xf]
      %v806 = vld [vmem:[%s0 + $0x42c] sm:$0xf]
      %v807 = vld [vmem:[%s0 + $0x430] sm:$0xf]
      %v808 = vld [vmem:[%s0 + $0x434] sm:$0xf]
      %v809 = vld [vmem:[%s0 + $0x438] sm:$0xf]
      %v810 = vld [vmem:[%s0 + $0x43c] sm:$0xf]
      %v811 = vld [vmem:[%s0 + $0x440] sm:$0xf]
      %v812 = vld [vmem:[%s0 + $0x444] sm:$0xf]
      %v813 = vld [vmem:[%s0 + $0x448] sm:$0xf]
      %v814 = vld [vmem:[%s0 + $0x44c] sm:$0xf]
      %v815 = vld [vmem:[%s0 + $0x450] sm:$0xf]
      %v816 = vld [vmem:[%s0 + $0x454] sm:$0xf]
      %v817 = vld [vmem:[%s0 + $0x458] sm:$0xf]
      %v818 = vld [vmem:[%s0 + $0x45c] sm:$0xf]
      %v819 = vld [vmem:[%s0 + $0x460] sm:$0xf]
      %v820 = vld [vmem:[%s0 + $0x464] sm:$0xf]
      %v821 = vld [vmem:[%s0 + $0x468] sm:$0xf]
      %v822 = vld [vmem:[%s0 + $0x46c] sm:$0xf]
      %v823 = vld [vmem:[%s0 + $0x470] sm:$0xf]
      %v824 = vld [vmem:[%s0 + $0x474] sm:$0xf]
      %v825 = vld [vmem:[%s0 + $0x478] sm:$0xf]
      %v826 = vld [vmem:[%s0 + $0x47c] sm:$0xf]
      %v827 = vld [vmem:[%s0 + $0x480] sm:$0xf]
      %v828 = vld [vmem:[%s0 + $0x484] sm:$0xf]
      %v829 = vld [vmem:[%s0 + $0x488] sm:$0xf]
      %v830 = vld [vmem:[%s0 + $0x48c] sm:$0xf]
      %v831 = vld [vmem:[%s0 + $0x490] sm:$0xf]
      %v832 = vld [vmem:[%s0 + $0x494] sm:$0xf]
      %v833 = vld [vmem:[%s0 + $0x498] sm:$0xf]
      %v834 = vld [vmem:[%s0 + $0x49c] sm:$0xf]
      %v835 = vld [vmem:[%s0 + $0x4a0] sm:$0xf]
      %v836 = vld [vmem:[%s0 + $0x4a4] sm:$0xf]
      %v837 = vld [vmem:[%s0 + $0x4a8] sm:$0xf]
      %v838 = vld [vmem:[%s0 + $0x4ac] sm:$0xf]
      %v839 = vld [vmem:[%s0 + $0x4b0] sm:$0xf]
      %v840 = vld [vmem:[%s0 + $0x4b4] sm:$0xf]
      %v841 = vld [vmem:[%s0 + $0x4b8] sm:$0xf]
      %v842 = vld [vmem:[%s0 + $0x4bc] sm:$0xf]
      %v843 = vld [vmem:[%s0 + $0x4c0] sm:$0xf]
      %v844 = vld [vmem:[%s0 + $0x4c4] sm:$0xf]
      %v845 = vld [vmem:[%s0 + $0x4c8] sm:$0xf]
      %v846 = vld [vmem:[%s0 + $0x4cc] sm:$0xf]
      %v847 = vld [vmem:[%s0 + $0x4d0] sm:$0xf]
      %v848 = vld [vmem:[%s0 + $0x4d4] sm:$0xf]
      %v849 = vld [vmem:[%s0 + $0x4d8] sm:$0xf]
      %v850 = vld [vmem:[%s0 + $0x4dc] sm:$0xf]
      %v851 = vld [vmem:[%s0 + $0x4e0] sm:$0xf]
      %v852 = vld [vmem:[%s0 + $0x4e4] sm:$0xf]
      %v853 = vld [vmem:[%s0 + $0x4e8] sm:$0xf]
      %v854 = vld [vmem:[%s0 + $0x4ec] sm:$0xf]
      %v855 = vld [vmem:[%s0 + $0x4f0] sm:$0xf]
      %v856 = vld [vmem:[%s0 + $0x4f4] sm:$0xf]
      %v857 = vld [vmem:[%s0 + $0x4f8] sm:$0xf]
      %v858 = vld [vmem:[%s0 + $0x4fc] sm:$0xf]
      %v859 = vld [vmem:[%s0 + $0x500] sm:$0xf]
      %v860 = vld [vmem:[%s0 + $0x504] sm:$0xf]
      %v861 = vld [vmem:[%s0 + $0x508] sm:$0xf]
      %v862 = vld [vmem:[%s0 + $0x50c] sm:$0xf]
      %v863 = vld [vmem:[%s497] sm:$0xf]
      %v864 = vld [vmem:[%s497 + $0x4] sm:$0xf]
      %v865 = vld [vmem:[%s497 + $0x8] sm:$0xf]
      %v866 = vld [vmem:[%s497 + $0xc] sm:$0xf]
      %v867 = vld [vmem:[%s497 + $0x10] sm:$0xf]
      %v868 = vld [vmem:[%s497 + $0x14] sm:$0xf]
      %v869 = vld [vmem:[%s497 + $0x18] sm:$0xf]
      %v870 = vld [vmem:[%s497 + $0x1c] sm:$0xf]
      %v871 = vld [vmem:[%s497 + $0x20] sm:$0xf]
      %v872 = vld [vmem:[%s497 + $0x24] sm:$0xf]
      %v873 = vld [vmem:[%s497 + $0x28] sm:$0xf]
      %v874 = vld [vmem:[%s497 + $0x2c] sm:$0xf]
      %v875 = vld [vmem:[%s497 + $0x30] sm:$0xf]
      %v876 = vld [vmem:[%s497 + $0x34] sm:$0xf]
      %v877 = vld [vmem:[%s497 + $0x38] sm:$0xf]
      %v878 = vld [vmem:[%s497 + $0x3c] sm:$0xf]
      %v879 = vld [vmem:[%s500] sm:$0x1]
      %v881 = vlaneseq
      %v882 = vshrl.u32 %v881, 7
      %v883 = vsub.s32 0, %v882
      %v884 = vrot.slane %v879, %v883
      %v1210 = vunpack.c.l.b16 %v539
      %v1211 = vunpack.c.l.b16 %v540
      %v1212 = vunpack.c.l.b16 %v541
      %v1213 = vunpack.c.l.b16 %v542
      %v1214 = vunpack.c.l.b16 %v543
      %v1215 = vunpack.c.l.b16 %v544
      %v1216 = vunpack.c.l.b16 %v545
      %v1217 = vunpack.c.l.b16 %v546
      %v1218 = vunpack.c.l.b16 %v547
      %v1219 = vunpack.c.l.b16 %v548
      %v1220 = vunpack.c.l.b16 %v549
      %v1221 = vunpack.c.l.b16 %v550
      %v1222 = vunpack.c.l.b16 %v551
      %v1223 = vunpack.c.l.b16 %v552
      %v1224 = vunpack.c.l.b16 %v553
      %v1225 = vunpack.c.l.b16 %v554
      %v1226 = vunpack.c.l.b16 %v555
      %v1227 = vunpack.c.l.b16 %v556
      %v1228 = vunpack.c.l.b16 %v557
      %v1229 = vunpack.c.l.b16 %v558
      %v1230 = vunpack.c.l.b16 %v559
      %v1231 = vunpack.c.l.b16 %v560
      %v1232 = vunpack.c.l.b16 %v561
      %v1233 = vunpack.c.l.b16 %v562
      %v1234 = vunpack.c.l.b16 %v563
      %v1235 = vunpack.c.l.b16 %v564
      %v1236 = vunpack.c.l.b16 %v565
      %v1237 = vunpack.c.l.b16 %v566
      %v1238 = vunpack.c.l.b16 %v567
      %v1239 = vunpack.c.l.b16 %v568
      %v1240 = vunpack.c.l.b16 %v569
      %v1241 = vunpack.c.l.b16 %v570
      %v1242 = vunpack.c.l.b16 %v571
      %v1243 = vunpack.c.l.b16 %v572
      %v1244 = vunpack.c.l.b16 %v573
      %v1245 = vunpack.c.l.b16 %v574
      %v1246 = vunpack.c.l.b16 %v575
      %v1247 = vunpack.c.l.b16 %v576
      %v1248 = vunpack.c.l.b16 %v577
      %v1249 = vunpack.c.l.b16 %v578
      %v1250 = vunpack.c.l.b16 %v579
      %v1251 = vunpack.c.l.b16 %v580
      %v1252 = vunpack.c.l.b16 %v581
      %v1253 = vunpack.c.l.b16 %v582
      %v1254 = vunpack.c.l.b16 %v583
      %v1255 = vunpack.c.l.b16 %v584
      %v1256 = vunpack.c.l.b16 %v585
      %v1257 = vunpack.c.l.b16 %v586
      %v1258 = vunpack.c.l.b16 %v587
      %v1259 = vunpack.c.l.b16 %v588
      %v1260 = vunpack.c.l.b16 %v589
      %v1261 = vunpack.c.l.b16 %v590
      %v1262 = vunpack.c.l.b16 %v591
      %v1263 = vunpack.c.l.b16 %v592
      %v1264 = vunpack.c.l.b16 %v593
      %v1265 = vunpack.c.l.b16 %v594
      %v1266 = vunpack.c.l.b16 %v595
      %v1267 = vunpack.c.l.b16 %v596
      %v1268 = vunpack.c.l.b16 %v597
      %v1269 = vunpack.c.l.b16 %v598
      %v1270 = vunpack.c.l.b16 %v599
      %v1271 = vunpack.c.l.b16 %v600
      %v1272 = vunpack.c.l.b16 %v601
      %v1273 = vunpack.c.l.b16 %v602
      %v1274 = vunpack.c.l.b16 %v603
      %v1275 = vunpack.c.l.b16 %v604
      %v1276 = vunpack.c.l.b16 %v605
      %v1277 = vunpack.c.l.b16 %v606
      %v1278 = vunpack.c.l.b16 %v607
      %v1279 = vunpack.c.l.b16 %v608
      %v1280 = vunpack.c.l.b16 %v609
      %v1281 = vunpack.c.l.b16 %v610
      %v1282 = vunpack.c.l.b16 %v611
      %v1283 = vunpack.c.l.b16 %v612
      %v1284 = vunpack.c.l.b16 %v613
      %v1285 = vunpack.c.l.b16 %v614
      %v1286 = vunpack.c.l.b16 %v615
      %v1287 = vunpack.c.l.b16 %v616
      %v1288 = vunpack.c.l.b16 %v617
      %v1289 = vunpack.c.l.b16 %v618
      %v1290 = vunpack.c.l.b16 %v619
      %v1291 = vunpack.c.l.b16 %v620
      %v1292 = vunpack.c.l.b16 %v621
      %v1293 = vunpack.c.l.b16 %v622
      %v1294 = vunpack.c.l.b16 %v623
      %v1295 = vunpack.c.l.b16 %v624
      %v1296 = vunpack.c.l.b16 %v625
      %v1297 = vunpack.c.l.b16 %v626
      %v1298 = vunpack.c.l.b16 %v627
      %v1299 = vunpack.c.l.b16 %v628
      %v1300 = vunpack.c.l.b16 %v629
      %v1301 = vunpack.c.l.b16 %v630
      %v1302 = vunpack.c.l.b16 %v631
      %v1303 = vunpack.c.l.b16 %v632
      %v1304 = vunpack.c.l.b16 %v633
      %v1305 = vunpack.c.l.b16 %v634
      %v1306 = vunpack.c.l.b16 %v635
      %v1307 = vunpack.c.l.b16 %v636
      %v1308 = vunpack.c.l.b16 %v637
      %v1309 = vunpack.c.l.b16 %v638
      %v1310 = vunpack.c.l.b16 %v639
      %v1311 = vunpack.c.l.b16 %v640
      %v1312 = vunpack.c.l.b16 %v641
      %v1313 = vunpack.c.l.b16 %v642
      %v1314 = vunpack.c.l.b16 %v643
      %v1315 = vunpack.c.l.b16 %v644
      %v1316 = vunpack.c.l.b16 %v645
      %v1317 = vunpack.c.l.b16 %v646
      %v1318 = vunpack.c.l.b16 %v647
      %v1319 = vunpack.c.l.b16 %v648
      %v1320 = vunpack.c.l.b16 %v649
      %v1321 = vunpack.c.l.b16 %v650
      %v1322 = vunpack.c.l.b16 %v651
      %v1323 = vunpack.c.l.b16 %v652
      %v1324 = vunpack.c.l.b16 %v653
      %v1325 = vunpack.c.l.b16 %v654
      %v1326 = vunpack.c.l.b16 %v655
      %v1327 = vunpack.c.l.b16 %v656
      %v1328 = vunpack.c.l.b16 %v657
      %v1329 = vunpack.c.l.b16 %v658
      %v1330 = vunpack.c.l.b16 %v659
      %v1331 = vunpack.c.l.b16 %v660
      %v1332 = vunpack.c.l.b16 %v661
      %v1333 = vunpack.c.l.b16 %v662
      %v1334 = vunpack.c.l.b16 %v663
      %v1335 = vunpack.c.l.b16 %v664
      %v1336 = vunpack.c.l.b16 %v665
      %v1337 = vunpack.c.l.b16 %v666
      %v1338 = vunpack.c.l.b16 %v667
      %v1339 = vunpack.c.l.b16 %v668
      %v1340 = vunpack.c.l.b16 %v669
      %v1341 = vunpack.c.l.b16 %v670
      %v1342 = vunpack.c.l.b16 %v671
      %v1343 = vunpack.c.l.b16 %v672
      %v1344 = vunpack.c.l.b16 %v673
      %v1345 = vunpack.c.l.b16 %v674
      %v1346 = vunpack.c.l.b16 %v675
      %v1347 = vunpack.c.l.b16 %v676
      %v1348 = vunpack.c.l.b16 %v677
      %v1349 = vunpack.c.l.b16 %v678
      %v1350 = vunpack.c.l.b16 %v679
      %v1351 = vunpack.c.l.b16 %v680
      %v1352 = vunpack.c.l.b16 %v681
      %v1353 = vunpack.c.l.b16 %v682
      %v1354 = vunpack.c.l.b16 %v683
      %v1355 = vunpack.c.l.b16 %v684
      %v1356 = vunpack.c.l.b16 %v685
      %v1357 = vunpack.c.l.b16 %v686
      %v1358 = vunpack.c.l.b16 %v687
      %v1359 = vunpack.c.l.b16 %v688
      %v1360 = vunpack.c.l.b16 %v689
      %v1361 = vunpack.c.l.b16 %v690
      %v1362 = vunpack.c.l.b16 %v691
      %v1363 = vunpack.c.l.b16 %v692
      %v1364 = vunpack.c.l.b16 %v693
      %v1365 = vunpack.c.l.b16 %v694
      %v1366 = vunpack.c.l.b16 %v695
      %v1367 = vunpack.c.l.b16 %v696
      %v1368 = vunpack.c.l.b16 %v697
      %v1369 = vunpack.c.l.b16 %v698
      %v1370 = vunpack.c.l.b16 %v699
      %v1371 = vunpack.c.l.b16 %v700
      %v1372 = vunpack.c.l.b16 %v701
      %v1373 = vunpack.c.l.b16 %v702
      %v1374 = vunpack.c.l.b16 %v703
      %v1375 = vunpack.c.l.b16 %v704
      %v1376 = vunpack.c.l.b16 %v705
      %v1377 = vunpack.c.l.b16 %v706
      %v1378 = vunpack.c.l.b16 %v707
      %v1379 = vunpack.c.l.b16 %v708
      %v1380 = vunpack.c.l.b16 %v709
      %v1381 = vunpack.c.l.b16 %v710
      %v1382 = vunpack.c.l.b16 %v711
      %v1383 = vunpack.c.l.b16 %v712
      %v1384 = vunpack.c.l.b16 %v713
      %v1385 = vunpack.c.l.b16 %v714
      %v1386 = vunpack.c.l.b16 %v715
      %v1387 = vunpack.c.l.b16 %v716
      %v1388 = vunpack.c.l.b16 %v717
      %v1389 = vunpack.c.l.b16 %v718
      %v1390 = vunpack.c.l.b16 %v719
      %v1391 = vunpack.c.l.b16 %v720
      %v1392 = vunpack.c.l.b16 %v721
      %v1393 = vunpack.c.l.b16 %v722
      %v1394 = vunpack.c.l.b16 %v723
      %v1395 = vunpack.c.l.b16 %v724
      %v1396 = vunpack.c.l.b16 %v725
      %v1397 = vunpack.c.l.b16 %v726
      %v1398 = vunpack.c.l.b16 %v727
      %v1399 = vunpack.c.l.b16 %v728
      %v1400 = vunpack.c.l.b16 %v729
      %v1401 = vunpack.c.l.b16 %v730
      %v1402 = vunpack.c.l.b16 %v731
      %v1403 = vunpack.c.l.b16 %v732
      %v1404 = vunpack.c.l.b16 %v733
      %v1405 = vunpack.c.l.b16 %v734
      %v1406 = vunpack.c.l.b16 %v735
      %v1407 = vunpack.c.l.b16 %v736
      %v1408 = vunpack.c.l.b16 %v737
      %v1409 = vunpack.c.l.b16 %v738
      %v1410 = vunpack.c.l.b16 %v739
      %v1411 = vunpack.c.l.b16 %v740
      %v1412 = vunpack.c.l.b16 %v741
      %v1413 = vunpack.c.l.b16 %v742
      %v1414 = vunpack.c.l.b16 %v743
      %v1415 = vunpack.c.l.b16 %v744
      %v1416 = vunpack.c.l.b16 %v745
      %v1417 = vunpack.c.l.b16 %v746
      %v1418 = vunpack.c.l.b16 %v747
      %v1419 = vunpack.c.l.b16 %v748
      %v1420 = vunpack.c.l.b16 %v749
      %v1421 = vunpack.c.l.b16 %v750
      %v1422 = vunpack.c.l.b16 %v751
      %v1423 = vunpack.c.l.b16 %v752
      %v1424 = vunpack.c.l.b16 %v753
      %v1425 = vunpack.c.l.b16 %v754
      %v1426 = vunpack.c.l.b16 %v755
      %v1427 = vunpack.c.l.b16 %v756
      %v1428 = vunpack.c.l.b16 %v757
      %v1429 = vunpack.c.l.b16 %v758
      %v1430 = vunpack.c.l.b16 %v759
      %v1431 = vunpack.c.l.b16 %v760
      %v1432 = vunpack.c.l.b16 %v761
      %v1433 = vunpack.c.l.b16 %v762
      %v1434 = vunpack.c.l.b16 %v763
      %v1435 = vunpack.c.l.b16 %v764
      %v1436 = vunpack.c.l.b16 %v765
      %v1437 = vunpack.c.l.b16 %v766
      %v1438 = vunpack.c.l.b16 %v767
      %v1439 = vunpack.c.l.b16 %v768
      %v1440 = vunpack.c.l.b16 %v769
      %v1441 = vunpack.c.l.b16 %v770
      %v1442 = vunpack.c.l.b16 %v771
      %v1443 = vunpack.c.l.b16 %v772
      %v1444 = vunpack.c.l.b16 %v773
      %v1445 = vunpack.c.l.b16 %v774
      %v1446 = vunpack.c.l.b16 %v775
      %v1447 = vunpack.c.l.b16 %v776
      %v1448 = vunpack.c.l.b16 %v777
      %v1449 = vunpack.c.l.b16 %v778
      %v1450 = vunpack.c.l.b16 %v779
      %v1451 = vunpack.c.l.b16 %v780
      %v1452 = vunpack.c.l.b16 %v781
      %v1453 = vunpack.c.l.b16 %v782
      %v1454 = vunpack.c.l.b16 %v783
      %v1455 = vunpack.c.l.b16 %v784
      %v1456 = vunpack.c.l.b16 %v785
      %v1457 = vunpack.c.l.b16 %v786
      %v1458 = vunpack.c.l.b16 %v787
      %v1459 = vunpack.c.l.b16 %v788
      %v1460 = vunpack.c.l.b16 %v789
      %v1461 = vunpack.c.l.b16 %v790
      %v1462 = vunpack.c.l.b16 %v791
      %v1463 = vunpack.c.l.b16 %v792
      %v1464 = vunpack.c.l.b16 %v793
      %v1465 = vunpack.c.l.b16 %v794
      %v1466 = vunpack.c.l.b16 %v795
      %v1467 = vunpack.c.l.b16 %v796
      %v1468 = vunpack.c.l.b16 %v797
      %v1469 = vunpack.c.l.b16 %v798
      %v1470 = vunpack.c.l.b16 %v799
      %v1471 = vunpack.c.l.b16 %v800
      %v1472 = vunpack.c.l.b16 %v801
      %v1473 = vunpack.c.l.b16 %v802
      %v1474 = vunpack.c.l.b16 %v803
      %v1475 = vunpack.c.l.b16 %v804
      %v1476 = vunpack.c.l.b16 %v805
      %v1477 = vunpack.c.l.b16 %v806
      %v1478 = vunpack.c.l.b16 %v807
      %v1479 = vunpack.c.l.b16 %v808
      %v1480 = vunpack.c.l.b16 %v809
      %v1481 = vunpack.c.l.b16 %v810
      %v1482 = vunpack.c.l.b16 %v811
      %v1483 = vunpack.c.l.b16 %v812
      %v1484 = vunpack.c.l.b16 %v813
      %v1485 = vunpack.c.l.b16 %v814
      %v1486 = vunpack.c.l.b16 %v815
      %v1487 = vunpack.c.l.b16 %v816
      %v1488 = vunpack.c.l.b16 %v817
      %v1489 = vunpack.c.l.b16 %v818
      %v1490 = vunpack.c.l.b16 %v819
      %v1491 = vunpack.c.l.b16 %v820
      %v1492 = vunpack.c.l.b16 %v821
      %v1493 = vunpack.c.l.b16 %v822
      %v1494 = vunpack.c.l.b16 %v823
      %v1495 = vunpack.c.l.b16 %v824
      %v1496 = vunpack.c.l.b16 %v825
      %v1497 = vunpack.c.l.b16 %v826
      %v1498 = vunpack.c.l.b16 %v827
      %v1499 = vunpack.c.l.b16 %v828
      %v1500 = vunpack.c.l.b16 %v829
      %v1501 = vunpack.c.l.b16 %v830
      %v1502 = vunpack.c.l.b16 %v831
      %v1503 = vunpack.c.l.b16 %v832
      %v1504 = vunpack.c.l.b16 %v833
      %v1505 = vunpack.c.l.b16 %v834
      %v1506 = vunpack.c.l.b16 %v835
      %v1507 = vunpack.c.l.b16 %v836
      %v1508 = vunpack.c.l.b16 %v837
      %v1509 = vunpack.c.l.b16 %v838
      %v1510 = vunpack.c.l.b16 %v839
      %v1511 = vunpack.c.l.b16 %v840
      %v1512 = vunpack.c.l.b16 %v841
      %v1513 = vunpack.c.l.b16 %v842
      %v1514 = vunpack.c.l.b16 %v843
      %v1515 = vunpack.c.l.b16 %v844
      %v1516 = vunpack.c.l.b16 %v845
      %v1517 = vunpack.c.l.b16 %v846
      %v1518 = vunpack.c.l.b16 %v847
      %v1519 = vunpack.c.l.b16 %v848
      %v1520 = vunpack.c.l.b16 %v849
      %v1521 = vunpack.c.l.b16 %v850
      %v1522 = vunpack.c.l.b16 %v851
      %v1523 = vunpack.c.l.b16 %v852
      %v1524 = vunpack.c.l.b16 %v853
      %v1525 = vunpack.c.l.b16 %v854
      %v1526 = vunpack.c.l.b16 %v855
      %v1527 = vunpack.c.l.b16 %v856
      %v1528 = vunpack.c.l.b16 %v857
      %v1529 = vunpack.c.l.b16 %v858
      %v1530 = vunpack.c.l.b16 %v859
      %v1531 = vunpack.c.l.b16 %v860
      %v1532 = vunpack.c.l.b16 %v861
      %v1533 = vunpack.c.l.b16 %v862
      %v1534 = vpack.c.b16 %v1211, %v1210
      %v1535 = vpack.c.b16 %v1213, %v1212
      %v1536 = vpack.c.b16 %v1215, %v1214
      %v1537 = vpack.c.b16 %v1217, %v1216
      %v1538 = vpack.c.b16 %v1219, %v1218
      %v1539 = vpack.c.b16 %v1221, %v1220
      %v1540 = vpack.c.b16 %v1223, %v1222
      %v1541 = vpack.c.b16 %v1225, %v1224
      %v1542 = vpack.c.b16 %v1227, %v1226
      %v1543 = vpack.c.b16 %v1229, %v1228
      %v1544 = vpack.c.b16 %v1231, %v1230
      %v1545 = vpack.c.b16 %v1233, %v1232
      %v1546 = vpack.c.b16 %v1235, %v1234
      %v1547 = vpack.c.b16 %v1237, %v1236
      %v1548 = vpack.c.b16 %v1239, %v1238
      %v1549 = vpack.c.b16 %v1241, %v1240
      %v1550 = vpack.c.b16 %v1243, %v1242
      %v1551 = vpack.c.b16 %v1245, %v1244
      %v1552 = vpack.c.b16 %v1247, %v1246
      %v1553 = vpack.c.b16 %v1249, %v1248
      %v1554 = vpack.c.b16 %v1251, %v1250
      %v1555 = vpack.c.b16 %v1253, %v1252
      %v1556 = vpack.c.b16 %v1255, %v1254
      %v1557 = vpack.c.b16 %v1257, %v1256
      %v1558 = vpack.c.b16 %v1259, %v1258
      %v1559 = vpack.c.b16 %v1261, %v1260
      %v1560 = vpack.c.b16 %v1263, %v1262
      %v1561 = vpack.c.b16 %v1265, %v1264
      %v1562 = vpack.c.b16 %v1267, %v1266
      %v1563 = vpack.c.b16 %v1269, %v1268
      %v1564 = vpack.c.b16 %v1271, %v1270
      %v1565 = vpack.c.b16 %v1273, %v1272
      %v1566 = vpack.c.b16 %v1275, %v1274
      %v1567 = vpack.c.b16 %v1277, %v1276
      %v1568 = vpack.c.b16 %v1279, %v1278
      %v1569 = vpack.c.b16 %v1281, %v1280
      %v1570 = vpack.c.b16 %v1283, %v1282
      %v1571 = vpack.c.b16 %v1285, %v1284
      %v1572 = vpack.c.b16 %v1287, %v1286
      %v1573 = vpack.c.b16 %v1289, %v1288
      %v1574 = vpack.c.b16 %v1291, %v1290
      %v1575 = vpack.c.b16 %v1293, %v1292
      %v1576 = vpack.c.b16 %v1295, %v1294
      %v1577 = vpack.c.b16 %v1297, %v1296
      %v1578 = vpack.c.b16 %v1299, %v1298
      %v1579 = vpack.c.b16 %v1301, %v1300
      %v1580 = vpack.c.b16 %v1303, %v1302
      %v1581 = vpack.c.b16 %v1305, %v1304
      %v1582 = vpack.c.b16 %v1307, %v1306
      %v1583 = vpack.c.b16 %v1309, %v1308
      %v1584 = vpack.c.b16 %v1311, %v1310
      %v1585 = vpack.c.b16 %v1313, %v1312
      %v1586 = vpack.c.b16 %v1315, %v1314
      %v1587 = vpack.c.b16 %v1317, %v1316
      %v1588 = vpack.c.b16 %v1319, %v1318
      %v1589 = vpack.c.b16 %v1321, %v1320
      %v1590 = vpack.c.b16 %v1323, %v1322
      %v1591 = vpack.c.b16 %v1325, %v1324
      %v1592 = vpack.c.b16 %v1327, %v1326
      %v1593 = vpack.c.b16 %v1329, %v1328
      %v1594 = vpack.c.b16 %v1331, %v1330
      %v1595 = vpack.c.b16 %v1333, %v1332
      %v1596 = vpack.c.b16 %v1335, %v1334
      %v1597 = vpack.c.b16 %v1337, %v1336
      %v1598 = vpack.c.b16 %v1339, %v1338
      %v1599 = vpack.c.b16 %v1341, %v1340
      %v1600 = vpack.c.b16 %v1343, %v1342
      %v1601 = vpack.c.b16 %v1345, %v1344
      %v1602 = vpack.c.b16 %v1347, %v1346
      %v1603 = vpack.c.b16 %v1349, %v1348
      %v1604 = vpack.c.b16 %v1351, %v1350
      %v1605 = vpack.c.b16 %v1353, %v1352
      %v1606 = vpack.c.b16 %v1355, %v1354
      %v1607 = vpack.c.b16 %v1357, %v1356
      %v1608 = vpack.c.b16 %v1359, %v1358
      %v1609 = vpack.c.b16 %v1361, %v1360
      %v1610 = vpack.c.b16 %v1363, %v1362
      %v1611 = vpack.c.b16 %v1365, %v1364
      %v1612 = vpack.c.b16 %v1367, %v1366
      %v1613 = vpack.c.b16 %v1369, %v1368
      %v1614 = vpack.c.b16 %v1371, %v1370
      %v1615 = vpack.c.b16 %v1373, %v1372
      %v1616 = vpack.c.b16 %v1375, %v1374
      %v1617 = vpack.c.b16 %v1377, %v1376
      %v1618 = vpack.c.b16 %v1379, %v1378
      %v1619 = vpack.c.b16 %v1381, %v1380
      %v1620 = vpack.c.b16 %v1383, %v1382
      %v1621 = vpack.c.b16 %v1385, %v1384
      %v1622 = vpack.c.b16 %v1387, %v1386
      %v1623 = vpack.c.b16 %v1389, %v1388
      %v1624 = vpack.c.b16 %v1391, %v1390
      %v1625 = vpack.c.b16 %v1393, %v1392
      %v1626 = vpack.c.b16 %v1395, %v1394
      %v1627 = vpack.c.b16 %v1397, %v1396
      %v1628 = vpack.c.b16 %v1399, %v1398
      %v1629 = vpack.c.b16 %v1401, %v1400
      %v1630 = vpack.c.b16 %v1403, %v1402
      %v1631 = vpack.c.b16 %v1405, %v1404
      %v1632 = vpack.c.b16 %v1407, %v1406
      %v1633 = vpack.c.b16 %v1409, %v1408
      %v1634 = vpack.c.b16 %v1411, %v1410
      %v1635 = vpack.c.b16 %v1413, %v1412
      %v1636 = vpack.c.b16 %v1415, %v1414
      %v1637 = vpack.c.b16 %v1417, %v1416
      %v1638 = vpack.c.b16 %v1419, %v1418
      %v1639 = vpack.c.b16 %v1421, %v1420
      %v1640 = vpack.c.b16 %v1423, %v1422
      %v1641 = vpack.c.b16 %v1425, %v1424
      %v1642 = vpack.c.b16 %v1427, %v1426
      %v1643 = vpack.c.b16 %v1429, %v1428
      %v1644 = vpack.c.b16 %v1431, %v1430
      %v1645 = vpack.c.b16 %v1433, %v1432
      %v1646 = vpack.c.b16 %v1435, %v1434
      %v1647 = vpack.c.b16 %v1437, %v1436
      %v1648 = vpack.c.b16 %v1439, %v1438
      %v1649 = vpack.c.b16 %v1441, %v1440
      %v1650 = vpack.c.b16 %v1443, %v1442
      %v1651 = vpack.c.b16 %v1445, %v1444
      %v1652 = vpack.c.b16 %v1447, %v1446
      %v1653 = vpack.c.b16 %v1449, %v1448
      %v1654 = vpack.c.b16 %v1451, %v1450
      %v1655 = vpack.c.b16 %v1453, %v1452
      %v1656 = vpack.c.b16 %v1455, %v1454
      %v1657 = vpack.c.b16 %v1457, %v1456
      %v1658 = vpack.c.b16 %v1459, %v1458
      %v1659 = vpack.c.b16 %v1461, %v1460
      %v1660 = vpack.c.b16 %v1463, %v1462
      %v1661 = vpack.c.b16 %v1465, %v1464
      %v1662 = vpack.c.b16 %v1467, %v1466
      %v1663 = vpack.c.b16 %v1469, %v1468
      %v1664 = vpack.c.b16 %v1471, %v1470
      %v1665 = vpack.c.b16 %v1473, %v1472
      %v1666 = vpack.c.b16 %v1475, %v1474
      %v1667 = vpack.c.b16 %v1477, %v1476
      %v1668 = vpack.c.b16 %v1479, %v1478
      %v1669 = vpack.c.b16 %v1481, %v1480
      %v1670 = vpack.c.b16 %v1483, %v1482
      %v1671 = vpack.c.b16 %v1485, %v1484
      %v1672 = vpack.c.b16 %v1487, %v1486
      %v1673 = vpack.c.b16 %v1489, %v1488
      %v1674 = vpack.c.b16 %v1491, %v1490
      %v1675 = vpack.c.b16 %v1493, %v1492
      %v1676 = vpack.c.b16 %v1495, %v1494
      %v1677 = vpack.c.b16 %v1497, %v1496
      %v1678 = vpack.c.b16 %v1499, %v1498
      %v1679 = vpack.c.b16 %v1501, %v1500
      %v1680 = vpack.c.b16 %v1503, %v1502
      %v1681 = vpack.c.b16 %v1505, %v1504
      %v1682 = vpack.c.b16 %v1507, %v1506
      %v1683 = vpack.c.b16 %v1509, %v1508
      %v1684 = vpack.c.b16 %v1511, %v1510
      %v1685 = vpack.c.b16 %v1513, %v1512
      %v1686 = vpack.c.b16 %v1515, %v1514
      %v1687 = vpack.c.b16 %v1517, %v1516
      %v1688 = vpack.c.b16 %v1519, %v1518
      %v1689 = vpack.c.b16 %v1521, %v1520
      %v1690 = vpack.c.b16 %v1523, %v1522
      %v1691 = vpack.c.b16 %v1525, %v1524
      %v1692 = vpack.c.b16 %v1527, %v1526
      %v1693 = vpack.c.b16 %v1529, %v1528
      %v1694 = vpack.c.b16 %v1531, %v1530
      %v1695 = vpack.c.b16 %v1533, %v1532
      %v1874 = vunpack.c.l.b16 %v863
      %v1875 = vunpack.c.l.b16 %v864
      %v1876 = vunpack.c.l.b16 %v865
      %v1877 = vunpack.c.l.b16 %v866
      %v1878 = vunpack.c.l.b16 %v867
      %v1879 = vunpack.c.l.b16 %v868
      %v1880 = vunpack.c.l.b16 %v869
      %v1881 = vunpack.c.l.b16 %v870
      %v1882 = vunpack.c.l.b16 %v871
      %v1883 = vunpack.c.l.b16 %v872
      %v1884 = vunpack.c.l.b16 %v873
      %v1885 = vunpack.c.l.b16 %v874
      %v1886 = vunpack.c.l.b16 %v875
      %v1887 = vunpack.c.l.b16 %v876
      %v1888 = vunpack.c.l.b16 %v877
      %v1889 = vunpack.c.l.b16 %v878
      %v1890 = vpack.c.b16 %v1875, %v1874
      %v1891 = vpack.c.b16 %v1877, %v1876
      %v1892 = vpack.c.b16 %v1879, %v1878
      %v1893 = vpack.c.b16 %v1881, %v1880
      %v1894 = vpack.c.b16 %v1883, %v1882
      %v1895 = vpack.c.b16 %v1885, %v1884
      %v1896 = vpack.c.b16 %v1887, %v1886
      %v1897 = vpack.c.b16 %v1889, %v1888
      %1906 = vmatprep.subr.bf16.mxu0 0
      %1907 = vmatpush1.bf16.msra.mxu0 %v1890
      %1908 = vmatprep.subr.bf16.mxu0 0
      %1909 = vmatpush1.bf16.msra.mxu0 %v1891
      %1910 = vmatprep.subr.bf16.mxu0 0
      %1911 = vmatpush1.bf16.msra.mxu0 %v1892
      %1912 = vmatprep.subr.bf16.mxu0 0
      %1913 = vmatpush1.bf16.msra.mxu0 %v1893
      %1914 = vmatprep.subr.bf16.mxu0 0
      %1915 = vmatpush1.bf16.msra.mxu0 %v1894
      %1916 = vmatprep.subr.bf16.mxu0 0
      %1917 = vmatpush1.bf16.msra.mxu0 %v1895
      %1918 = vmatprep.subr.bf16.mxu0 0
      %1919 = vmatpush1.bf16.msra.mxu0 %v1896
      %1920 = vmatprep.subr.bf16.mxu0 0
      %1921 = vmatpush1.bf16.msra.mxu0 %v1897
      %1922 = vmatprep.subr.bf16.mxu0 0
      %1923 = vmatpush1.bf16.msra.mxu0 0
      %1924 = vmatprep.subr.bf16.mxu0 0
      %1925 = vmatpush1.bf16.msra.mxu0 0
      %1926 = vmatprep.subr.bf16.mxu0 0
      %1927 = vmatpush1.bf16.msra.mxu0 0
      %1928 = vmatprep.subr.bf16.mxu0 0
      %1929 = vmatpush1.bf16.msra.mxu0 0
      %1930 = vmatprep.subr.bf16.mxu0 0
      %1931 = vmatpush1.bf16.msra.mxu0 0
      %1932 = vmatprep.subr.bf16.mxu0 0
      %1933 = vmatpush1.bf16.msra.mxu0 0
      %1934 = vmatprep.subr.bf16.mxu0 0
      %1935 = vmatpush1.bf16.msra.mxu0 0
      %1936 = vmatprep.subr.bf16.mxu0 0
      %1937 = vmatpush1.bf16.msra.mxu0 0
      %1938 = vmatprep.mubr.bf16.mxu0 0
      %1939 = vmatmul.mubr.bf16.gmra.mrb[0].mxu0 %v1534
      %v1940 = vpop.f32.mrb[0].mxu0
      %v1941 = vadd.f32 %v884, %v1940
      %v1942 = vpop.f32.mrb[0].mxu0
      %v1943 = vpop.f32.mrb[0].mxu0
      %v1944 = vadd.f32 %v884, %v1943
      %v1945 = vpop.f32.mrb[0].mxu0
      %1946 = vmatprep.mubr.bf16.mxu0 0
      %1947 = vmatmul.mubr.bf16.gmra.mrb[0].mxu0 %v1535
      %v1948 = vpop.f32.mrb[0].mxu0
      %v1949 = vadd.f32 %v884, %v1948
      %v1950 = vpop.f32.mrb[0].mxu0
      %v1951 = vpop.f32.mrb[0].mxu0
      %v1952 = vadd.f32 %v884, %v1951
      %v1953 = vpop.f32.mrb[0].mxu0
      %1954 = vmatprep.mubr.bf16.mxu0 0
      %1955 = vmatmul.mubr.bf16.gmra.mrb[0].mxu0 %v1536
      %v1956 = vpop.f32.mrb[0].mxu0
      %v1957 = vadd.f32 %v884, %v1956
      %v1958 = vpop.f32.mrb[0].mxu0
      %v1959 = vpop.f32.mrb[0].mxu0
      %v1960 = vadd.f32 %v884, %v1959
      %v1961 = vpop.f32.mrb[0].mxu0
      %1962 = vmatprep.mubr.bf16.mxu0 0
      %1963 = vmatmul.mubr.bf16.gmra.mrb[0].mxu0 %v1537
      %v1964 = vpop.f32.mrb[0].mxu0
      %v1965 = vadd.f32 %v884, %v1964
      %v1966 = vpop.f32.mrb[0].mxu0
      %v1967 = vpop.f32.mrb[0].mxu0
      %v1968 = vadd.f32 %v884, %v1967
      %v1969 = vpop.f32.mrb[0].mxu0
      %1970 = vmatprep.mubr.bf16.mxu0 0
      %1971 = vmatmul.mubr.bf16.gmra.mrb[0].mxu0 %v1538
      %v1972 = vpop.f32.mrb[0].mxu0
      %v1973 = vadd.f32 %v884, %v1972
      %v1974 = vpop.f32.mrb[0].mxu0
      %v1975 = vpop.f32.mrb[0].mxu0
      %v1976 = vadd.f32 %v884, %v1975
      %v1977 = vpop.f32.mrb[0].mxu0
      %1978 = vmatprep.mubr.bf16.mxu0 0
      %1979 = vmatmul.mubr.bf16.gmra.mrb[0].mxu0 %v1539
      %v1980 = vpop.f32.mrb[0].mxu0
      %v1981 = vadd.f32 %v884, %v1980
      %v1982 = vpop.f32.mrb[0].mxu0
      %v1983 = vpop.f32.mrb[0].mxu0
      %v1984 = vadd.f32 %v884, %v1983
      %v1985 = vpop.f32.mrb[0].mxu0
      %1986 = vmatprep.mubr.bf16.mxu0 0
      %1987 = vmatmul.mubr.bf16.gmra.mrb[0].mxu0 %v1540
      %v1988 = vpop.f32.mrb[0].mxu0
      %v1989 = vadd.f32 %v884, %v1988
      %v1990 = vpop.f32.mrb[0].mxu0
      %v1991 = vpop.f32.mrb[0].mxu0
      %v1992 = vadd.f32 %v884, %v1991
      %v1993 = vpop.f32.mrb[0].mxu0
      %1994 = vmatprep.mubr.bf16.mxu0 0
      %1995 = vmatmul.mubr.bf16.gmra.mrb[0].mxu0 %v1541
      %v1996 = vpop.f32.mrb[0].mxu0
      %v1997 = vadd.f32 %v884, %v1996
      %v1998 = vpop.f32.mrb[0].mxu0
      %v1999 = vpop.f32.mrb[0].mxu0
      %v2000 = vadd.f32 %v884, %v1999
      %v2001 = vpop.f32.mrb[0].mxu0
      %2002 = vmatprep.mubr.bf16.mxu0 0
      %2003 = vmatmul.mubr.bf16.gmra.mrb[0].mxu0 %v1542
      %v2004 = vpop.f32.mrb[0].mxu0
      %v2005 = vadd.f32 %v884, %v2004
      %v2006 = vpop.f32.mrb[0].mxu0
      %v2007 = vpop.f32.mrb[0].mxu0
      %v2008 = vadd.f32 %v884, %v2007
      %v2009 = vpop.f32.mrb[0].mxu0
      %2010 = vmatprep.mubr.bf16.mxu0 0
      %2011 = vmatmul.mubr.bf16.gmra.mrb[0].mxu0 %v1543
      %v2012 = vpop.f32.mrb[0].mxu0
      %v2013 = vadd.f32 %v884, %v2012
      %v2014 = vpop.f32.mrb[0].mxu0
      %v2015 = vpop.f32.mrb[0].mxu0
      %v2016 = vadd.f32 %v884, %v2015
      %v2017 = vpop.f32.mrb[0].mxu0
      %2018 = vmatprep.mubr.bf16.mxu0 0
      %2019 = vmatmul.mubr.bf16.gmra.mrb[0].mxu0 %v1544
      %v2020 = vpop.f32.mrb[0].mxu0
      %v2021 = vadd.f32 %v884, %v2020
      %v2022 = vpop.f32.mrb[0].mxu0
      %v2023 = vpop.f32.mrb[0].mxu0
      %v2024 = vadd.f32 %v884, %v2023
      %v2025 = vpop.f32.mrb[0].mxu0
      %2026 = vmatprep.mubr.bf16.mxu0 0
      %2027 = vmatmul.mubr.bf16.gmra.mrb[0].mxu0 %v1545
      %v2028 = vpop.f32.mrb[0].mxu0
      %v2029 = vadd.f32 %v884, %v2028
      %v2030 = vpop.f32.mrb[0].mxu0
      %v2031 = vpop.f32.mrb[0].mxu0
      %v2032 = vadd.f32 %v884, %v2031
      %v2033 = vpop.f32.mrb[0].mxu0
      %2034 = vmatprep.mubr.bf16.mxu0 0
      %2035 = vmatmul.mubr.bf16.gmra.mrb[0].mxu0 %v1546
      %v2036 = vpop.f32.mrb[0].mxu0
      %v2037 = vadd.f32 %v884, %v2036
      %v2038 = vpop.f32.mrb[0].mxu0
      %v2039 = vpop.f32.mrb[0].mxu0
      %v2040 = vadd.f32 %v884, %v2039
      %v2041 = vpop.f32.mrb[0].mxu0
      %2042 = vmatprep.mubr.bf16.mxu0 0
      %2043 = vmatmul.mubr.bf16.gmra.mrb[0].mxu0 %v1547
      %v2044 = vpop.f32.mrb[0].mxu0
      %v2045 = vadd.f32 %v884, %v2044
      %v2046 = vpop.f32.mrb[0].mxu0
      %v2047 = vpop.f32.mrb[0].mxu0
      %v2048 = vadd.f32 %v884, %v2047
      %v2049 = vpop.f32.mrb[0].mxu0
      %2050 = vmatprep.mubr.bf16.mxu0 0
      %2051 = vmatmul.mubr.bf16.gmra.mrb[0].mxu0 %v1548
      %v2052 = vpop.f32.mrb[0].mxu0
      %v2053 = vadd.f32 %v884, %v2052
      %v2054 = vpop.f32.mrb[0].mxu0
      %v2055 = vpop.f32.mrb[0].mxu0
      %v2056 = vadd.f32 %v884, %v2055
      %v2057 = vpop.f32.mrb[0].mxu0
      %2058 = vmatprep.mubr.bf16.mxu0 0
      %2059 = vmatmul.mubr.bf16.gmra.mrb[0].mxu0 %v1549
      %v2060 = vpop.f32.mrb[0].mxu0
      %v2061 = vadd.f32 %v884, %v2060
      %v2062 = vpop.f32.mrb[0].mxu0
      %v2063 = vpop.f32.mrb[0].mxu0
      %v2064 = vadd.f32 %v884, %v2063
      %v2065 = vpop.f32.mrb[0].mxu0
      %2066 = vmatprep.mubr.bf16.mxu0 0
      %2067 = vmatmul.mubr.bf16.gmra.mrb[0].mxu0 %v1550
      %v2068 = vpop.f32.mrb[0].mxu0
      %v2069 = vadd.f32 %v884, %v2068
      %v2070 = vpop.f32.mrb[0].mxu0
      %v2071 = vpop.f32.mrb[0].mxu0
      %v2072 = vadd.f32 %v884, %v2071
      %v2073 = vpop.f32.mrb[0].mxu0
      %2074 = vmatprep.mubr.bf16.mxu0 0
      %2075 = vmatmul.mubr.bf16.gmra.mrb[0].mxu0 %v1551
      %v2076 = vpop.f32.mrb[0].mxu0
      %v2077 = vadd.f32 %v884, %v2076
      %v2078 = vpop.f32.mrb[0].mxu0
      %v2079 = vpop.f32.mrb[0].mxu0
      %v2080 = vadd.f32 %v884, %v2079
      %v2081 = vpop.f32.mrb[0].mxu0
      %2082 = vmatprep.mubr.bf16.mxu0 0
      %2083 = vmatmul.mubr.bf16.gmra.mrb[0].mxu0 %v1552
      %v2084 = vpop.f32.mrb[0].mxu0
      %v2085 = vadd.f32 %v884, %v2084
      %v2086 = vpop.f32.mrb[0].mxu0
      %v2087 = vpop.f32.mrb[0].mxu0
      %v2088 = vadd.f32 %v884, %v2087
      %v2089 = vpop.f32.mrb[0].mxu0
      %2090 = vmatprep.mubr.bf16.mxu0 0
      %2091 = vmatmul.mubr.bf16.gmra.mrb[0].mxu0 %v1553
      %v2092 = vpop.f32.mrb[0].mxu0
      %v2093 = vadd.f32 %v884, %v2092
      %v2094 = vpop.f32.mrb[0].mxu0
      %v2095 = vpop.f32.mrb[0].mxu0
      %v2096 = vadd.f32 %v884, %v2095
      %v2097 = vpop.f32.mrb[0].mxu0
      %2098 = vmatprep.mubr.bf16.mxu0 0
      %2099 = vmatmul.mubr.bf16.gmra.mrb[0].mxu0 %v1554
      %v2100 = vpop.f32.mrb[0].mxu0
      %v2101 = vadd.f32 %v884, %v2100
      %v2102 = vpop.f32.mrb[0].mxu0
      %v2103 = vpop.f32.mrb[0].mxu0
      %v2104 = vadd.f32 %v884, %v2103
      %v2105 = vpop.f32.mrb[0].mxu0
      %2106 = vmatprep.mubr.bf16.mxu0 0
      %2107 = vmatmul.mubr.bf16.gmra.mrb[0].mxu0 %v1555
      %v2108 = vpop.f32.mrb[0].mxu0
      %v2109 = vadd.f32 %v884, %v2108
      %v2110 = vpop.f32.mrb[0].mxu0
      %v2111 = vpop.f32.mrb[0].mxu0
      %v2112 = vadd.f32 %v884, %v2111
      %v2113 = vpop.f32.mrb[0].mxu0
      %2114 = vmatprep.mubr.bf16.mxu0 0
      %2115 = vmatmul.mubr.bf16.gmra.mrb[0].mxu0 %v1556
      %v2116 = vpop.f32.mrb[0].mxu0
      %v2117 = vadd.f32 %v884, %v2116
      %v2118 = vpop.f32.mrb[0].mxu0
      %v2119 = vpop.f32.mrb[0].mxu0
      %v2120 = vadd.f32 %v884, %v2119
      %v2121 = vpop.f32.mrb[0].mxu0
      %2122 = vmatprep.mubr.bf16.mxu0 0
      %2123 = vmatmul.mubr.bf16.gmra.mrb[0].mxu0 %v1557
      %v2124 = vpop.f32.mrb[0].mxu0
      %v2125 = vadd.f32 %v884, %v2124
      %v2126 = vpop.f32.mrb[0].mxu0
      %v2127 = vpop.f32.mrb[0].mxu0
      %v2128 = vadd.f32 %v884, %v2127
      %v2129 = vpop.f32.mrb[0].mxu0
      %2130 = vmatprep.mubr.bf16.mxu0 0
      %2131 = vmatmul.mubr.bf16.gmra.mrb[0].mxu0 %v1558
      %v2132 = vpop.f32.mrb[0].mxu0
      %v2133 = vadd.f32 %v884, %v2132
      %v2134 = vpop.f32.mrb[0].mxu0
      %v2135 = vpop.f32.mrb[0].mxu0
      %v2136 = vadd.f32 %v884, %v2135
      %v2137 = vpop.f32.mrb[0].mxu0
      %2138 = vmatprep.mubr.bf16.mxu0 0
      %2139 = vmatmul.mubr.bf16.gmra.mrb[0].mxu0 %v1559
      %v2140 = vpop.f32.mrb[0].mxu0
      %v2141 = vadd.f32 %v884, %v2140
      %v2142 = vpop.f32.mrb[0].mxu0
      %v2143 = vpop.f32.mrb[0].mxu0
      %v2144 = vadd.f32 %v884, %v2143
      %v2145 = vpop.f32.mrb[0].mxu0
      %2146 = vmatprep.mubr.bf16.mxu0 0
      %2147 = vmatmul.mubr.bf16.gmra.mrb[0].mxu0 %v1560
      %v2148 = vpop.f32.mrb[0].mxu0
      %v2149 = vadd.f32 %v884, %v2148
      %v2150 = vpop.f32.mrb[0].mxu0
      %v2151 = vpop.f32.mrb[0].mxu0
      %v2152 = vadd.f32 %v884, %v2151
      %v2153 = vpop.f32.mrb[0].mxu0
      %2154 = vmatprep.mubr.bf16.mxu0 0
      %2155 = vmatmul.mubr.bf16.gmra.mrb[0].mxu0 %v1561
      %v2156 = vpop.f32.mrb[0].mxu0
      %v2157 = vadd.f32 %v884, %v2156
      %v2158 = vpop.f32.mrb[0].mxu0
      %v2159 = vpop.f32.mrb[0].mxu0
      %v2160 = vadd.f32 %v884, %v2159
      %v2161 = vpop.f32.mrb[0].mxu0
      %2162 = vmatprep.mubr.bf16.mxu0 0
      %2163 = vmatmul.mubr.bf16.gmra.mrb[0].mxu0 %v1562
      %v2164 = vpop.f32.mrb[0].mxu0
      %v2165 = vadd.f32 %v884, %v2164
      %v2166 = vpop.f32.mrb[0].mxu0
      %v2167 = vpop.f32.mrb[0].mxu0
      %v2168 = vadd.f32 %v884, %v2167
      %v2169 = vpop.f32.mrb[0].mxu0
      %2170 = vmatprep.mubr.bf16.mxu0 0
      %2171 = vmatmul.mubr.bf16.gmra.mrb[0].mxu0 %v1563
      %v2172 = vpop.f32.mrb[0].mxu0
      %v2173 = vadd.f32 %v884, %v2172
      %v2174 = vpop.f32.mrb[0].mxu0
      %v2175 = vpop.f32.mrb[0].mxu0
      %v2176 = vadd.f32 %v884, %v2175
      %v2177 = vpop.f32.mrb[0].mxu0
      %2178 = vmatprep.mubr.bf16.mxu0 0
      %2179 = vmatmul.mubr.bf16.gmra.mrb[0].mxu0 %v1564
      %v2180 = vpop.f32.mrb[0].mxu0
      %v2181 = vadd.f32 %v884, %v2180
      %v2182 = vpop.f32.mrb[0].mxu0
      %v2183 = vpop.f32.mrb[0].mxu0
      %v2184 = vadd.f32 %v884, %v2183
      %v2185 = vpop.f32.mrb[0].mxu0
      %2186 = vmatprep.mubr.bf16.mxu0 0
      %2187 = vmatmul.mubr.bf16.gmra.mrb[0].mxu0 %v1565
      %v2188 = vpop.f32.mrb[0].mxu0
      %v2189 = vadd.f32 %v884, %v2188
      %v2190 = vpop.f32.mrb[0].mxu0
      %v2191 = vpop.f32.mrb[0].mxu0
      %v2192 = vadd.f32 %v884, %v2191
      %v2193 = vpop.f32.mrb[0].mxu0
      %2194 = vmatprep.mubr.bf16.mxu0 0
      %2195 = vmatmul.mubr.bf16.gmra.mrb[0].mxu0 %v1566
      %v2196 = vpop.f32.mrb[0].mxu0
      %v2197 = vadd.f32 %v884, %v2196
      %v2198 = vpop.f32.mrb[0].mxu0
      %v2199 = vpop.f32.mrb[0].mxu0
      %v2200 = vadd.f32 %v884, %v2199
      %v2201 = vpop.f32.mrb[0].mxu0
      %2202 = vmatprep.mubr.bf16.mxu0 0
      %2203 = vmatmul.mubr.bf16.gmra.mrb[0].mxu0 %v1567
      %v2204 = vpop.f32.mrb[0].mxu0
      %v2205 = vadd.f32 %v884, %v2204
      %v2206 = vpop.f32.mrb[0].mxu0
      %v2207 = vpop.f32.mrb[0].mxu0
      %v2208 = vadd.f32 %v884, %v2207
      %v2209 = vpop.f32.mrb[0].mxu0
      %2210 = vmatprep.mubr.bf16.mxu0 0
      %2211 = vmatmul.mubr.bf16.gmra.mrb[0].mxu0 %v1568
      %v2212 = vpop.f32.mrb[0].mxu0
      %v2213 = vadd.f32 %v884, %v2212
      %v2214 = vpop.f32.mrb[0].mxu0
      %v2215 = vpop.f32.mrb[0].mxu0
      %v2216 = vadd.f32 %v884, %v2215
      %v2217 = vpop.f32.mrb[0].mxu0
      %2218 = vmatprep.mubr.bf16.mxu0 0
      %2219 = vmatmul.mubr.bf16.gmra.mrb[0].mxu0 %v1569
      %v2220 = vpop.f32.mrb[0].mxu0
      %v2221 = vadd.f32 %v884, %v2220
      %v2222 = vpop.f32.mrb[0].mxu0
      %v2223 = vpop.f32.mrb[0].mxu0
      %v2224 = vadd.f32 %v884, %v2223
      %v2225 = vpop.f32.mrb[0].mxu0
      %2226 = vmatprep.mubr.bf16.mxu0 0
      %2227 = vmatmul.mubr.bf16.gmra.mrb[0].mxu0 %v1570
      %v2228 = vpop.f32.mrb[0].mxu0
      %v2229 = vadd.f32 %v884, %v2228
      %v2230 = vpop.f32.mrb[0].mxu0
      %v2231 = vpop.f32.mrb[0].mxu0
      %v2232 = vadd.f32 %v884, %v2231
      %v2233 = vpop.f32.mrb[0].mxu0
      %2234 = vmatprep.mubr.bf16.mxu0 0
      %2235 = vmatmul.mubr.bf16.gmra.mrb[0].mxu0 %v1571
      %v2236 = vpop.f32.mrb[0].mxu0
      %v2237 = vadd.f32 %v884, %v2236
      %v2238 = vpop.f32.mrb[0].mxu0
      %v2239 = vpop.f32.mrb[0].mxu0
      %v2240 = vadd.f32 %v884, %v2239
      %v2241 = vpop.f32.mrb[0].mxu0
      %2242 = vmatprep.mubr.bf16.mxu0 0
      %2243 = vmatmul.mubr.bf16.gmra.mrb[0].mxu0 %v1572
      %v2244 = vpop.f32.mrb[0].mxu0
      %v2245 = vadd.f32 %v884, %v2244
      %v2246 = vpop.f32.mrb[0].mxu0
      %v2247 = vpop.f32.mrb[0].mxu0
      %v2248 = vadd.f32 %v884, %v2247
      %v2249 = vpop.f32.mrb[0].mxu0
      %2250 = vmatprep.mubr.bf16.mxu0 0
      %2251 = vmatmul.mubr.bf16.gmra.mrb[0].mxu0 %v1573
      %v2252 = vpop.f32.mrb[0].mxu0
      %v2253 = vadd.f32 %v884, %v2252
      %v2254 = vpop.f32.mrb[0].mxu0
      %v2255 = vpop.f32.mrb[0].mxu0
      %v2256 = vadd.f32 %v884, %v2255
      %v2257 = vpop.f32.mrb[0].mxu0
      %2258 = vmatprep.mubr.bf16.mxu0 0
      %2259 = vmatmul.mubr.bf16.gmra.mrb[0].mxu0 %v1574
      %v2260 = vpop.f32.mrb[0].mxu0
      %v2261 = vadd.f32 %v884, %v2260
      %v2262 = vpop.f32.mrb[0].mxu0
      %v2263 = vpop.f32.mrb[0].mxu0
      %v2264 = vadd.f32 %v884, %v2263
      %v2265 = vpop.f32.mrb[0].mxu0
      %2266 = vmatprep.mubr.bf16.mxu0 0
      %2267 = vmatmul.mubr.bf16.gmra.mrb[0].mxu0 %v1575
      %v2268 = vpop.f32.mrb[0].mxu0
      %v2269 = vadd.f32 %v884, %v2268
      %v2270 = vpop.f32.mrb[0].mxu0
      %v2271 = vpop.f32.mrb[0].mxu0
      %v2272 = vadd.f32 %v884, %v2271
      %v2273 = vpop.f32.mrb[0].mxu0
      %2274 = vmatprep.mubr.bf16.mxu0 0
      %2275 = vmatmul.mubr.bf16.gmra.mrb[0].mxu0 %v1576
      %v2276 = vpop.f32.mrb[0].mxu0
      %v2277 = vadd.f32 %v884, %v2276
      %v2278 = vpop.f32.mrb[0].mxu0
      %v2279 = vpop.f32.mrb[0].mxu0
      %v2280 = vadd.f32 %v884, %v2279
      %v2281 = vpop.f32.mrb[0].mxu0
      %2282 = vmatprep.mubr.bf16.mxu0 0
      %2283 = vmatmul.mubr.bf16.gmra.mrb[0].mxu0 %v1577
      %v2284 = vpop.f32.mrb[0].mxu0
      %v2285 = vadd.f32 %v884, %v2284
      %v2286 = vpop.f32.mrb[0].mxu0
      %v2287 = vpop.f32.mrb[0].mxu0
      %v2288 = vadd.f32 %v884, %v2287
      %v2289 = vpop.f32.mrb[0].mxu0
      %2290 = vmatprep.mubr.bf16.mxu0 0
      %2291 = vmatmul.mubr.bf16.gmra.mrb[0].mxu0 %v1578
      %v2292 = vpop.f32.mrb[0].mxu0
      %v2293 = vadd.f32 %v884, %v2292
      %v2294 = vpop.f32.mrb[0].mxu0
      %v2295 = vpop.f32.mrb[0].mxu0
      %v2296 = vadd.f32 %v884, %v2295
      %v2297 = vpop.f32.mrb[0].mxu0
      %2298 = vmatprep.mubr.bf16.mxu0 0
      %2299 = vmatmul.mubr.bf16.gmra.mrb[0].mxu0 %v1579
      %v2300 = vpop.f32.mrb[0].mxu0
      %v2301 = vadd.f32 %v884, %v2300
      %v2302 = vpop.f32.mrb[0].mxu0
      %v2303 = vpop.f32.mrb[0].mxu0
      %v2304 = vadd.f32 %v884, %v2303
      %v2305 = vpop.f32.mrb[0].mxu0
      %2306 = vmatprep.mubr.bf16.mxu0 0
      %2307 = vmatmul.mubr.bf16.gmra.mrb[0].mxu0 %v1580
      %v2308 = vpop.f32.mrb[0].mxu0
      %v2309 = vadd.f32 %v884, %v2308
      %v2310 = vpop.f32.mrb[0].mxu0
      %v2311 = vpop.f32.mrb[0].mxu0
      %v2312 = vadd.f32 %v884, %v2311
      %v2313 = vpop.f32.mrb[0].mxu0
      %2314 = vmatprep.mubr.bf16.mxu0 0
      %2315 = vmatmul.mubr.bf16.gmra.mrb[0].mxu0 %v1581
      %v2316 = vpop.f32.mrb[0].mxu0
      %v2317 = vadd.f32 %v884, %v2316
      %v2318 = vpop.f32.mrb[0].mxu0
      %v2319 = vpop.f32.mrb[0].mxu0
      %v2320 = vadd.f32 %v884, %v2319
      %v2321 = vpop.f32.mrb[0].mxu0
      %2322 = vmatprep.mubr.bf16.mxu0 0
      %2323 = vmatmul.mubr.bf16.gmra.mrb[0].mxu0 %v1582
      %v2324 = vpop.f32.mrb[0].mxu0
      %v2325 = vadd.f32 %v884, %v2324
      %v2326 = vpop.f32.mrb[0].mxu0
      %v2327 = vpop.f32.mrb[0].mxu0
      %v2328 = vadd.f32 %v884, %v2327
      %v2329 = vpop.f32.mrb[0].mxu0
      %2330 = vmatprep.mubr.bf16.mxu0 0
      %2331 = vmatmul.mubr.bf16.gmra.mrb[0].mxu0 %v1583
      %v2332 = vpop.f32.mrb[0].mxu0
      %v2333 = vadd.f32 %v884, %v2332
      %v2334 = vpop.f32.mrb[0].mxu0
      %v2335 = vpop.f32.mrb[0].mxu0
      %v2336 = vadd.f32 %v884, %v2335
      %v2337 = vpop.f32.mrb[0].mxu0
      %2338 = vmatprep.mubr.bf16.mxu0 0
      %2339 = vmatmul.mubr.bf16.gmra.mrb[0].mxu0 %v1584
      %v2340 = vpop.f32.mrb[0].mxu0
      %v2341 = vadd.f32 %v884, %v2340
      %v2342 = vpop.f32.mrb[0].mxu0
      %v2343 = vpop.f32.mrb[0].mxu0
      %v2344 = vadd.f32 %v884, %v2343
      %v2345 = vpop.f32.mrb[0].mxu0
      %2346 = vmatprep.mubr.bf16.mxu0 0
      %2347 = vmatmul.mubr.bf16.gmra.mrb[0].mxu0 %v1585
      %v2348 = vpop.f32.mrb[0].mxu0
      %v2349 = vadd.f32 %v884, %v2348
      %v2350 = vpop.f32.mrb[0].mxu0
      %v2351 = vpop.f32.mrb[0].mxu0
      %v2352 = vadd.f32 %v884, %v2351
      %v2353 = vpop.f32.mrb[0].mxu0
      %2354 = vmatprep.mubr.bf16.mxu0 0
      %2355 = vmatmul.mubr.bf16.gmra.mrb[0].mxu0 %v1586
      %v2356 = vpop.f32.mrb[0].mxu0
      %v2357 = vadd.f32 %v884, %v2356
      %v2358 = vpop.f32.mrb[0].mxu0
      %v2359 = vpop.f32.mrb[0].mxu0
      %v2360 = vadd.f32 %v884, %v2359
      %v2361 = vpop.f32.mrb[0].mxu0
      %2362 = vmatprep.mubr.bf16.mxu0 0
      %2363 = vmatmul.mubr.bf16.gmra.mrb[0].mxu0 %v1587
      %v2364 = vpop.f32.mrb[0].mxu0
      %v2365 = vadd.f32 %v884, %v2364
      %v2366 = vpop.f32.mrb[0].mxu0
      %v2367 = vpop.f32.mrb[0].mxu0
      %v2368 = vadd.f32 %v884, %v2367
      %v2369 = vpop.f32.mrb[0].mxu0
      %2370 = vmatprep.mubr.bf16.mxu0 0
      %2371 = vmatmul.mubr.bf16.gmra.mrb[0].mxu0 %v1588
      %v2372 = vpop.f32.mrb[0].mxu0
      %v2373 = vadd.f32 %v884, %v2372
      %v2374 = vpop.f32.mrb[0].mxu0
      %v2375 = vpop.f32.mrb[0].mxu0
      %v2376 = vadd.f32 %v884, %v2375
      %v2377 = vpop.f32.mrb[0].mxu0
      %2378 = vmatprep.mubr.bf16.mxu0 0
      %2379 = vmatmul.mubr.bf16.gmra.mrb[0].mxu0 %v1589
      %v2380 = vpop.f32.mrb[0].mxu0
      %v2381 = vadd.f32 %v884, %v2380
      %v2382 = vpop.f32.mrb[0].mxu0
      %v2383 = vpop.f32.mrb[0].mxu0
      %v2384 = vadd.f32 %v884, %v2383
      %v2385 = vpop.f32.mrb[0].mxu0
      %2386 = vmatprep.mubr.bf16.mxu0 0
      %2387 = vmatmul.mubr.bf16.gmra.mrb[0].mxu0 %v1590
      %v2388 = vpop.f32.mrb[0].mxu0
      %v2389 = vadd.f32 %v884, %v2388
      %v2390 = vpop.f32.mrb[0].mxu0
      %v2391 = vpop.f32.mrb[0].mxu0
      %v2392 = vadd.f32 %v884, %v2391
      %v2393 = vpop.f32.mrb[0].mxu0
      %2394 = vmatprep.mubr.bf16.mxu0 0
      %2395 = vmatmul.mubr.bf16.gmra.mrb[0].mxu0 %v1591
      %v2396 = vpop.f32.mrb[0].mxu0
      %v2397 = vadd.f32 %v884, %v2396
      %v2398 = vpop.f32.mrb[0].mxu0
      %v2399 = vpop.f32.mrb[0].mxu0
      %v2400 = vadd.f32 %v884, %v2399
      %v2401 = vpop.f32.mrb[0].mxu0
      %2402 = vmatprep.mubr.bf16.mxu0 0
      %2403 = vmatmul.mubr.bf16.gmra.mrb[0].mxu0 %v1592
      %v2404 = vpop.f32.mrb[0].mxu0
      %v2405 = vadd.f32 %v884, %v2404
      %v2406 = vpop.f32.mrb[0].mxu0
      %v2407 = vpop.f32.mrb[0].mxu0
      %v2408 = vadd.f32 %v884, %v2407
      %v2409 = vpop.f32.mrb[0].mxu0
      %2410 = vmatprep.mubr.bf16.mxu0 0
      %2411 = vmatmul.mubr.bf16.gmra.mrb[0].mxu0 %v1593
      %v2412 = vpop.f32.mrb[0].mxu0
      %v2413 = vadd.f32 %v884, %v2412
      %v2414 = vpop.f32.mrb[0].mxu0
      %v2415 = vpop.f32.mrb[0].mxu0
      %v2416 = vadd.f32 %v884, %v2415
      %v2417 = vpop.f32.mrb[0].mxu0
      %2418 = vmatprep.mubr.bf16.mxu0 0
      %2419 = vmatmul.mubr.bf16.gmra.mrb[0].mxu0 %v1594
      %v2420 = vpop.f32.mrb[0].mxu0
      %v2421 = vadd.f32 %v884, %v2420
      %v2422 = vpop.f32.mrb[0].mxu0
      %v2423 = vpop.f32.mrb[0].mxu0
      %v2424 = vadd.f32 %v884, %v2423
      %v2425 = vpop.f32.mrb[0].mxu0
      %2426 = vmatprep.mubr.bf16.mxu0 0
      %2427 = vmatmul.mubr.bf16.gmra.mrb[0].mxu0 %v1595
      %v2428 = vpop.f32.mrb[0].mxu0
      %v2429 = vadd.f32 %v884, %v2428
      %v2430 = vpop.f32.mrb[0].mxu0
      %v2431 = vpop.f32.mrb[0].mxu0
      %v2432 = vadd.f32 %v884, %v2431
      %v2433 = vpop.f32.mrb[0].mxu0
      %2434 = vmatprep.mubr.bf16.mxu0 0
      %2435 = vmatmul.mubr.bf16.gmra.mrb[0].mxu0 %v1596
      %v2436 = vpop.f32.mrb[0].mxu0
      %v2437 = vadd.f32 %v884, %v2436
      %v2438 = vpop.f32.mrb[0].mxu0
      %v2439 = vpop.f32.mrb[0].mxu0
      %v2440 = vadd.f32 %v884, %v2439
      %v2441 = vpop.f32.mrb[0].mxu0
      %2442 = vmatprep.mubr.bf16.mxu0 0
      %2443 = vmatmul.mubr.bf16.gmra.mrb[0].mxu0 %v1597
      %v2444 = vpop.f32.mrb[0].mxu0
      %v2445 = vadd.f32 %v884, %v2444
      %v2446 = vpop.f32.mrb[0].mxu0
      %v2447 = vpop.f32.mrb[0].mxu0
      %v2448 = vadd.f32 %v884, %v2447
      %v2449 = vpop.f32.mrb[0].mxu0
      %2450 = vmatprep.mubr.bf16.mxu0 0
      %2451 = vmatmul.mubr.bf16.gmra.mrb[0].mxu0 %v1598
      %v2452 = vpop.f32.mrb[0].mxu0
      %v2453 = vadd.f32 %v884, %v2452
      %v2454 = vpop.f32.mrb[0].mxu0
      %v2455 = vpop.f32.mrb[0].mxu0
      %v2456 = vadd.f32 %v884, %v2455
      %v2457 = vpop.f32.mrb[0].mxu0
      %2458 = vmatprep.mubr.bf16.mxu0 0
      %2459 = vmatmul.mubr.bf16.gmra.mrb[0].mxu0 %v1599
      %v2460 = vpop.f32.mrb[0].mxu0
      %v2461 = vadd.f32 %v884, %v2460
      %v2462 = vpop.f32.mrb[0].mxu0
      %v2463 = vpop.f32.mrb[0].mxu0
      %v2464 = vadd.f32 %v884, %v2463
      %v2465 = vpop.f32.mrb[0].mxu0
      %2466 = vmatprep.mubr.bf16.mxu0 0
      %2467 = vmatmul.mubr.bf16.gmra.mrb[0].mxu0 %v1600
      %v2468 = vpop.f32.mrb[0].mxu0
      %v2469 = vadd.f32 %v884, %v2468
      %v2470 = vpop.f32.mrb[0].mxu0
      %v2471 = vpop.f32.mrb[0].mxu0
      %v2472 = vadd.f32 %v884, %v2471
      %v2473 = vpop.f32.mrb[0].mxu0
      %2474 = vmatprep.mubr.bf16.mxu0 0
      %2475 = vmatmul.mubr.bf16.gmra.mrb[0].mxu0 %v1601
      %v2476 = vpop.f32.mrb[0].mxu0
      %v2477 = vadd.f32 %v884, %v2476
      %v2478 = vpop.f32.mrb[0].mxu0
      %v2479 = vpop.f32.mrb[0].mxu0
      %v2480 = vadd.f32 %v884, %v2479
      %v2481 = vpop.f32.mrb[0].mxu0
      %2482 = vmatprep.mubr.bf16.mxu0 0
      %2483 = vmatmul.mubr.bf16.gmra.mrb[0].mxu0 %v1602
      %v2484 = vpop.f32.mrb[0].mxu0
      %v2485 = vadd.f32 %v884, %v2484
      %v2486 = vpop.f32.mrb[0].mxu0
      %v2487 = vpop.f32.mrb[0].mxu0
      %v2488 = vadd.f32 %v884, %v2487
      %v2489 = vpop.f32.mrb[0].mxu0
      %2490 = vmatprep.mubr.bf16.mxu0 0
      %2491 = vmatmul.mubr.bf16.gmra.mrb[0].mxu0 %v1603
      %v2492 = vpop.f32.mrb[0].mxu0
      %v2493 = vadd.f32 %v884, %v2492
      %v2494 = vpop.f32.mrb[0].mxu0
      %v2495 = vpop.f32.mrb[0].mxu0
      %v2496 = vadd.f32 %v884, %v2495
      %v2497 = vpop.f32.mrb[0].mxu0
      %2498 = vmatprep.mubr.bf16.mxu0 0
      %2499 = vmatmul.mubr.bf16.gmra.mrb[0].mxu0 %v1604
      %v2500 = vpop.f32.mrb[0].mxu0
      %v2501 = vadd.f32 %v884, %v2500
      %v2502 = vpop.f32.mrb[0].mxu0
      %v2503 = vpop.f32.mrb[0].mxu0
      %v2504 = vadd.f32 %v884, %v2503
      %v2505 = vpop.f32.mrb[0].mxu0
      %2506 = vmatprep.mubr.bf16.mxu0 0
      %2507 = vmatmul.mubr.bf16.gmra.mrb[0].mxu0 %v1605
      %v2508 = vpop.f32.mrb[0].mxu0
      %v2509 = vadd.f32 %v884, %v2508
      %v2510 = vpop.f32.mrb[0].mxu0
      %v2511 = vpop.f32.mrb[0].mxu0
      %v2512 = vadd.f32 %v884, %v2511
      %v2513 = vpop.f32.mrb[0].mxu0
      %2514 = vmatprep.mubr.bf16.mxu0 0
      %2515 = vmatmul.mubr.bf16.gmra.mrb[0].mxu0 %v1606
      %v2516 = vpop.f32.mrb[0].mxu0
      %v2517 = vadd.f32 %v884, %v2516
      %v2518 = vpop.f32.mrb[0].mxu0
      %v2519 = vpop.f32.mrb[0].mxu0
      %v2520 = vadd.f32 %v884, %v2519
      %v2521 = vpop.f32.mrb[0].mxu0
      %2522 = vmatprep.mubr.bf16.mxu0 0
      %2523 = vmatmul.mubr.bf16.gmra.mrb[0].mxu0 %v1607
      %v2524 = vpop.f32.mrb[0].mxu0
      %v2525 = vadd.f32 %v884, %v2524
      %v2526 = vpop.f32.mrb[0].mxu0
      %v2527 = vpop.f32.mrb[0].mxu0
      %v2528 = vadd.f32 %v884, %v2527
      %v2529 = vpop.f32.mrb[0].mxu0
      %2530 = vmatprep.mubr.bf16.mxu0 0
      %2531 = vmatmul.mubr.bf16.gmra.mrb[0].mxu0 %v1608
      %v2532 = vpop.f32.mrb[0].mxu0
      %v2533 = vadd.f32 %v884, %v2532
      %v2534 = vpop.f32.mrb[0].mxu0
      %v2535 = vpop.f32.mrb[0].mxu0
      %v2536 = vadd.f32 %v884, %v2535
      %v2537 = vpop.f32.mrb[0].mxu0
      %2538 = vmatprep.mubr.bf16.mxu0 0
      %2539 = vmatmul.mubr.bf16.gmra.mrb[0].mxu0 %v1609
      %v2540 = vpop.f32.mrb[0].mxu0
      %v2541 = vadd.f32 %v884, %v2540
      %v2542 = vpop.f32.mrb[0].mxu0
      %v2543 = vpop.f32.mrb[0].mxu0
      %v2544 = vadd.f32 %v884, %v2543
      %v2545 = vpop.f32.mrb[0].mxu0
      %2546 = vmatprep.mubr.bf16.mxu0 0
      %2547 = vmatmul.mubr.bf16.gmra.mrb[0].mxu0 %v1610
      %v2548 = vpop.f32.mrb[0].mxu0
      %v2549 = vadd.f32 %v884, %v2548
      %v2550 = vpop.f32.mrb[0].mxu0
      %v2551 = vpop.f32.mrb[0].mxu0
      %v2552 = vadd.f32 %v884, %v2551
      %v2553 = vpop.f32.mrb[0].mxu0
      %2554 = vmatprep.mubr.bf16.mxu0 0
      %2555 = vmatmul.mubr.bf16.gmra.mrb[0].mxu0 %v1611
      %v2556 = vpop.f32.mrb[0].mxu0
      %v2557 = vadd.f32 %v884, %v2556
      %v2558 = vpop.f32.mrb[0].mxu0
      %v2559 = vpop.f32.mrb[0].mxu0
      %v2560 = vadd.f32 %v884, %v2559
      %v2561 = vpop.f32.mrb[0].mxu0
      %2562 = vmatprep.mubr.bf16.mxu0 0
      %2563 = vmatmul.mubr.bf16.gmra.mrb[0].mxu0 %v1612
      %v2564 = vpop.f32.mrb[0].mxu0
      %v2565 = vadd.f32 %v884, %v2564
      %v2566 = vpop.f32.mrb[0].mxu0
      %v2567 = vpop.f32.mrb[0].mxu0
      %v2568 = vadd.f32 %v884, %v2567
      %v2569 = vpop.f32.mrb[0].mxu0
      %2570 = vmatprep.mubr.bf16.mxu0 0
      %2571 = vmatmul.mubr.bf16.gmra.mrb[0].mxu0 %v1613
      %v2572 = vpop.f32.mrb[0].mxu0
      %v2573 = vadd.f32 %v884, %v2572
      %v2574 = vpop.f32.mrb[0].mxu0
      %v2575 = vpop.f32.mrb[0].mxu0
      %v2576 = vadd.f32 %v884, %v2575
      %v2577 = vpop.f32.mrb[0].mxu0
      %2578 = vmatprep.mubr.bf16.mxu0 0
      %2579 = vmatmul.mubr.bf16.gmra.mrb[0].mxu0 %v1614
      %v2580 = vpop.f32.mrb[0].mxu0
      %v2581 = vadd.f32 %v884, %v2580
      %v2582 = vpop.f32.mrb[0].mxu0
      %v2583 = vpop.f32.mrb[0].mxu0
      %v2584 = vadd.f32 %v884, %v2583
      %v2585 = vpop.f32.mrb[0].mxu0
      %2586 = vmatprep.mubr.bf16.mxu0 0
      %2587 = vmatmul.mubr.bf16.gmra.mrb[0].mxu0 %v1615
      %v2588 = vpop.f32.mrb[0].mxu0
      %v2589 = vadd.f32 %v884, %v2588
      %v2590 = vpop.f32.mrb[0].mxu0
      %v2591 = vpop.f32.mrb[0].mxu0
      %v2592 = vadd.f32 %v884, %v2591
      %v2593 = vpop.f32.mrb[0].mxu0
      %2594 = vmatprep.mubr.bf16.mxu0 0
      %2595 = vmatmul.mubr.bf16.gmra.mrb[0].mxu0 %v1616
      %v2596 = vpop.f32.mrb[0].mxu0
      %v2597 = vadd.f32 %v884, %v2596
      %v2598 = vpop.f32.mrb[0].mxu0
      %v2599 = vpop.f32.mrb[0].mxu0
      %v2600 = vadd.f32 %v884, %v2599
      %v2601 = vpop.f32.mrb[0].mxu0
      %2602 = vmatprep.mubr.bf16.mxu0 0
      %2603 = vmatmul.mubr.bf16.gmra.mrb[0].mxu0 %v1617
      %v2604 = vpop.f32.mrb[0].mxu0
      %v2605 = vadd.f32 %v884, %v2604
      %v2606 = vpop.f32.mrb[0].mxu0
      %v2607 = vpop.f32.mrb[0].mxu0
      %v2608 = vadd.f32 %v884, %v2607
      %v2609 = vpop.f32.mrb[0].mxu0
      %2610 = vmatprep.mubr.bf16.mxu0 0
      %2611 = vmatmul.mubr.bf16.gmra.mrb[0].mxu0 %v1618
      %v2612 = vpop.f32.mrb[0].mxu0
      %v2613 = vadd.f32 %v884, %v2612
      %v2614 = vpop.f32.mrb[0].mxu0
      %v2615 = vpop.f32.mrb[0].mxu0
      %v2616 = vadd.f32 %v884, %v2615
      %v2617 = vpop.f32.mrb[0].mxu0
      %2618 = vmatprep.mubr.bf16.mxu0 0
      %2619 = vmatmul.mubr.bf16.gmra.mrb[0].mxu0 %v1619
      %v2620 = vpop.f32.mrb[0].mxu0
      %v2621 = vadd.f32 %v884, %v2620
      %v2622 = vpop.f32.mrb[0].mxu0
      %v2623 = vpop.f32.mrb[0].mxu0
      %v2624 = vadd.f32 %v884, %v2623
      %v2625 = vpop.f32.mrb[0].mxu0
      %2626 = vmatprep.mubr.bf16.mxu0 0
      %2627 = vmatmul.mubr.bf16.gmra.mrb[0].mxu0 %v1620
      %v2628 = vpop.f32.mrb[0].mxu0
      %v2629 = vadd.f32 %v884, %v2628
      %v2630 = vpop.f32.mrb[0].mxu0
      %v2631 = vpop.f32.mrb[0].mxu0
      %v2632 = vadd.f32 %v884, %v2631
      %v2633 = vpop.f32.mrb[0].mxu0
      %2634 = vmatprep.mubr.bf16.mxu0 0
      %2635 = vmatmul.mubr.bf16.gmra.mrb[0].mxu0 %v1621
      %v2636 = vpop.f32.mrb[0].mxu0
      %v2637 = vadd.f32 %v884, %v2636
      %v2638 = vpop.f32.mrb[0].mxu0
      %v2639 = vpop.f32.mrb[0].mxu0
      %v2640 = vadd.f32 %v884, %v2639
      %v2641 = vpop.f32.mrb[0].mxu0
      %2642 = vmatprep.mubr.bf16.mxu0 0
      %2643 = vmatmul.mubr.bf16.gmra.mrb[0].mxu0 %v1622
      %v2644 = vpop.f32.mrb[0].mxu0
      %v2645 = vadd.f32 %v884, %v2644
      %v2646 = vpop.f32.mrb[0].mxu0
      %v2647 = vpop.f32.mrb[0].mxu0
      %v2648 = vadd.f32 %v884, %v2647
      %v2649 = vpop.f32.mrb[0].mxu0
      %2650 = vmatprep.mubr.bf16.mxu0 0
      %2651 = vmatmul.mubr.bf16.gmra.mrb[0].mxu0 %v1623
      %v2652 = vpop.f32.mrb[0].mxu0
      %v2653 = vadd.f32 %v884, %v2652
      %v2654 = vpop.f32.mrb[0].mxu0
      %v2655 = vpop.f32.mrb[0].mxu0
      %v2656 = vadd.f32 %v884, %v2655
      %v2657 = vpop.f32.mrb[0].mxu0
      %2658 = vmatprep.mubr.bf16.mxu0 0
      %2659 = vmatmul.mubr.bf16.gmra.mrb[0].mxu0 %v1624
      %v2660 = vpop.f32.mrb[0].mxu0
      %v2661 = vadd.f32 %v884, %v2660
      %v2662 = vpop.f32.mrb[0].mxu0
      %v2663 = vpop.f32.mrb[0].mxu0
      %v2664 = vadd.f32 %v884, %v2663
      %v2665 = vpop.f32.mrb[0].mxu0
      %2666 = vmatprep.mubr.bf16.mxu0 0
      %2667 = vmatmul.mubr.bf16.gmra.mrb[0].mxu0 %v1625
      %v2668 = vpop.f32.mrb[0].mxu0
      %v2669 = vadd.f32 %v884, %v2668
      %v2670 = vpop.f32.mrb[0].mxu0
      %v2671 = vpop.f32.mrb[0].mxu0
      %v2672 = vadd.f32 %v884, %v2671
      %v2673 = vpop.f32.mrb[0].mxu0
      %2674 = vmatprep.mubr.bf16.mxu0 0
      %2675 = vmatmul.mubr.bf16.gmra.mrb[0].mxu0 %v1626
      %v2676 = vpop.f32.mrb[0].mxu0
      %v2677 = vadd.f32 %v884, %v2676
      %v2678 = vpop.f32.mrb[0].mxu0
      %v2679 = vpop.f32.mrb[0].mxu0
      %v2680 = vadd.f32 %v884, %v2679
      %v2681 = vpop.f32.mrb[0].mxu0
      %2682 = vmatprep.mubr.bf16.mxu0 0
      %2683 = vmatmul.mubr.bf16.gmra.mrb[0].mxu0 %v1627
      %v2684 = vpop.f32.mrb[0].mxu0
      %v2685 = vadd.f32 %v884, %v2684
      %v2686 = vpop.f32.mrb[0].mxu0
      %v2687 = vpop.f32.mrb[0].mxu0
      %v2688 = vadd.f32 %v884, %v2687
      %v2689 = vpop.f32.mrb[0].mxu0
      %2690 = vmatprep.mubr.bf16.mxu0 0
      %2691 = vmatmul.mubr.bf16.gmra.mrb[0].mxu0 %v1628
      %v2692 = vpop.f32.mrb[0].mxu0
      %v2693 = vadd.f32 %v884, %v2692
      %v2694 = vpop.f32.mrb[0].mxu0
      %v2695 = vpop.f32.mrb[0].mxu0
      %v2696 = vadd.f32 %v884, %v2695
      %v2697 = vpop.f32.mrb[0].mxu0
      %2698 = vmatprep.mubr.bf16.mxu0 0
      %2699 = vmatmul.mubr.bf16.gmra.mrb[0].mxu0 %v1629
      %v2700 = vpop.f32.mrb[0].mxu0
      %v2701 = vadd.f32 %v884, %v2700
      %v2702 = vpop.f32.mrb[0].mxu0
      %v2703 = vpop.f32.mrb[0].mxu0
      %v2704 = vadd.f32 %v884, %v2703
      %v2705 = vpop.f32.mrb[0].mxu0
      %2706 = vmatprep.mubr.bf16.mxu0 0
      %2707 = vmatmul.mubr.bf16.gmra.mrb[0].mxu0 %v1630
      %v2708 = vpop.f32.mrb[0].mxu0
      %v2709 = vadd.f32 %v884, %v2708
      %v2710 = vpop.f32.mrb[0].mxu0
      %v2711 = vpop.f32.mrb[0].mxu0
      %v2712 = vadd.f32 %v884, %v2711
      %v2713 = vpop.f32.mrb[0].mxu0
      %2714 = vmatprep.mubr.bf16.mxu0 0
      %2715 = vmatmul.mubr.bf16.gmra.mrb[0].mxu0 %v1631
      %v2716 = vpop.f32.mrb[0].mxu0
      %v2717 = vadd.f32 %v884, %v2716
      %v2718 = vpop.f32.mrb[0].mxu0
      %v2719 = vpop.f32.mrb[0].mxu0
      %v2720 = vadd.f32 %v884, %v2719
      %v2721 = vpop.f32.mrb[0].mxu0
      %2722 = vmatprep.mubr.bf16.mxu0 0
      %2723 = vmatmul.mubr.bf16.gmra.mrb[0].mxu0 %v1632
      %v2724 = vpop.f32.mrb[0].mxu0
      %v2725 = vadd.f32 %v884, %v2724
      %v2726 = vpop.f32.mrb[0].mxu0
      %v2727 = vpop.f32.mrb[0].mxu0
      %v2728 = vadd.f32 %v884, %v2727
      %v2729 = vpop.f32.mrb[0].mxu0
      %2730 = vmatprep.mubr.bf16.mxu0 0
      %2731 = vmatmul.mubr.bf16.gmra.mrb[0].mxu0 %v1633
      %v2732 = vpop.f32.mrb[0].mxu0
      %v2733 = vadd.f32 %v884, %v2732
      %v2734 = vpop.f32.mrb[0].mxu0
      %v2735 = vpop.f32.mrb[0].mxu0
      %v2736 = vadd.f32 %v884, %v2735
      %v2737 = vpop.f32.mrb[0].mxu0
      %2738 = vmatprep.mubr.bf16.mxu0 0
      %2739 = vmatmul.mubr.bf16.gmra.mrb[0].mxu0 %v1634
      %v2740 = vpop.f32.mrb[0].mxu0
      %v2741 = vadd.f32 %v884, %v2740
      %v2742 = vpop.f32.mrb[0].mxu0
      %v2743 = vpop.f32.mrb[0].mxu0
      %v2744 = vadd.f32 %v884, %v2743
      %v2745 = vpop.f32.mrb[0].mxu0
      %2746 = vmatprep.mubr.bf16.mxu0 0
      %2747 = vmatmul.mubr.bf16.gmra.mrb[0].mxu0 %v1635
      %v2748 = vpop.f32.mrb[0].mxu0
      %v2749 = vadd.f32 %v884, %v2748
      %v2750 = vpop.f32.mrb[0].mxu0
      %v2751 = vpop.f32.mrb[0].mxu0
      %v2752 = vadd.f32 %v884, %v2751
      %v2753 = vpop.f32.mrb[0].mxu0
      %2754 = vmatprep.mubr.bf16.mxu0 0
      %2755 = vmatmul.mubr.bf16.gmra.mrb[0].mxu0 %v1636
      %v2756 = vpop.f32.mrb[0].mxu0
      %v2757 = vadd.f32 %v884, %v2756
      %v2758 = vpop.f32.mrb[0].mxu0
      %v2759 = vpop.f32.mrb[0].mxu0
      %v2760 = vadd.f32 %v884, %v2759
      %v2761 = vpop.f32.mrb[0].mxu0
      %2762 = vmatprep.mubr.bf16.mxu0 0
      %2763 = vmatmul.mubr.bf16.gmra.mrb[0].mxu0 %v1637
      %v2764 = vpop.f32.mrb[0].mxu0
      %v2765 = vadd.f32 %v884, %v2764
      %v2766 = vpop.f32.mrb[0].mxu0
      %v2767 = vpop.f32.mrb[0].mxu0
      %v2768 = vadd.f32 %v884, %v2767
      %v2769 = vpop.f32.mrb[0].mxu0
      %2770 = vmatprep.mubr.bf16.mxu0 0
      %2771 = vmatmul.mubr.bf16.gmra.mrb[0].mxu0 %v1638
      %v2772 = vpop.f32.mrb[0].mxu0
      %v2773 = vadd.f32 %v884, %v2772
      %v2774 = vpop.f32.mrb[0].mxu0
      %v2775 = vpop.f32.mrb[0].mxu0
      %v2776 = vadd.f32 %v884, %v2775
      %v2777 = vpop.f32.mrb[0].mxu0
      %2778 = vmatprep.mubr.bf16.mxu0 0
      %2779 = vmatmul.mubr.bf16.gmra.mrb[0].mxu0 %v1639
      %v2780 = vpop.f32.mrb[0].mxu0
      %v2781 = vadd.f32 %v884, %v2780
      %v2782 = vpop.f32.mrb[0].mxu0
      %v2783 = vpop.f32.mrb[0].mxu0
      %v2784 = vadd.f32 %v884, %v2783
      %v2785 = vpop.f32.mrb[0].mxu0
      %2786 = vmatprep.mubr.bf16.mxu0 0
      %2787 = vmatmul.mubr.bf16.gmra.mrb[0].mxu0 %v1640
      %v2788 = vpop.f32.mrb[0].mxu0
      %v2789 = vadd.f32 %v884, %v2788
      %v2790 = vpop.f32.mrb[0].mxu0
      %v2791 = vpop.f32.mrb[0].mxu0
      %v2792 = vadd.f32 %v884, %v2791
      %v2793 = vpop.f32.mrb[0].mxu0
      %2794 = vmatprep.mubr.bf16.mxu0 0
      %2795 = vmatmul.mubr.bf16.gmra.mrb[0].mxu0 %v1641
      %v2796 = vpop.f32.mrb[0].mxu0
      %v2797 = vadd.f32 %v884, %v2796
      %v2798 = vpop.f32.mrb[0].mxu0
      %v2799 = vpop.f32.mrb[0].mxu0
      %v2800 = vadd.f32 %v884, %v2799
      %v2801 = vpop.f32.mrb[0].mxu0
      %2802 = vmatprep.mubr.bf16.mxu0 0
      %2803 = vmatmul.mubr.bf16.gmra.mrb[0].mxu0 %v1642
      %v2804 = vpop.f32.mrb[0].mxu0
      %v2805 = vadd.f32 %v884, %v2804
      %v2806 = vpop.f32.mrb[0].mxu0
      %v2807 = vpop.f32.mrb[0].mxu0
      %v2808 = vadd.f32 %v884, %v2807
      %v2809 = vpop.f32.mrb[0].mxu0
      %2810 = vmatprep.mubr.bf16.mxu0 0
      %2811 = vmatmul.mubr.bf16.gmra.mrb[0].mxu0 %v1643
      %v2812 = vpop.f32.mrb[0].mxu0
      %v2813 = vadd.f32 %v884, %v2812
      %v2814 = vpop.f32.mrb[0].mxu0
      %v2815 = vpop.f32.mrb[0].mxu0
      %v2816 = vadd.f32 %v884, %v2815
      %v2817 = vpop.f32.mrb[0].mxu0
      %2818 = vmatprep.mubr.bf16.mxu0 0
      %2819 = vmatmul.mubr.bf16.gmra.mrb[0].mxu0 %v1644
      %v2820 = vpop.f32.mrb[0].mxu0
      %v2821 = vadd.f32 %v884, %v2820
      %v2822 = vpop.f32.mrb[0].mxu0
      %v2823 = vpop.f32.mrb[0].mxu0
      %v2824 = vadd.f32 %v884, %v2823
      %v2825 = vpop.f32.mrb[0].mxu0
      %2826 = vmatprep.mubr.bf16.mxu0 0
      %2827 = vmatmul.mubr.bf16.gmra.mrb[0].mxu0 %v1645
      %v2828 = vpop.f32.mrb[0].mxu0
      %v2829 = vadd.f32 %v884, %v2828
      %v2830 = vpop.f32.mrb[0].mxu0
      %v2831 = vpop.f32.mrb[0].mxu0
      %v2832 = vadd.f32 %v884, %v2831
      %v2833 = vpop.f32.mrb[0].mxu0
      %2834 = vmatprep.mubr.bf16.mxu0 0
      %2835 = vmatmul.mubr.bf16.gmra.mrb[0].mxu0 %v1646
      %v2836 = vpop.f32.mrb[0].mxu0
      %v2837 = vadd.f32 %v884, %v2836
      %v2838 = vpop.f32.mrb[0].mxu0
      %v2839 = vpop.f32.mrb[0].mxu0
      %v2840 = vadd.f32 %v884, %v2839
      %v2841 = vpop.f32.mrb[0].mxu0
      %2842 = vmatprep.mubr.bf16.mxu0 0
      %2843 = vmatmul.mubr.bf16.gmra.mrb[0].mxu0 %v1647
      %v2844 = vpop.f32.mrb[0].mxu0
      %v2845 = vadd.f32 %v884, %v2844
      %v2846 = vpop.f32.mrb[0].mxu0
      %v2847 = vpop.f32.mrb[0].mxu0
      %v2848 = vadd.f32 %v884, %v2847
      %v2849 = vpop.f32.mrb[0].mxu0
      %2850 = vmatprep.mubr.bf16.mxu0 0
      %2851 = vmatmul.mubr.bf16.gmra.mrb[0].mxu0 %v1648
      %v2852 = vpop.f32.mrb[0].mxu0
      %v2853 = vadd.f32 %v884, %v2852
      %v2854 = vpop.f32.mrb[0].mxu0
      %v2855 = vpop.f32.mrb[0].mxu0
      %v2856 = vadd.f32 %v884, %v2855
      %v2857 = vpop.f32.mrb[0].mxu0
      %2858 = vmatprep.mubr.bf16.mxu0 0
      %2859 = vmatmul.mubr.bf16.gmra.mrb[0].mxu0 %v1649
      %v2860 = vpop.f32.mrb[0].mxu0
      %v2861 = vadd.f32 %v884, %v2860
      %v2862 = vpop.f32.mrb[0].mxu0
      %v2863 = vpop.f32.mrb[0].mxu0
      %v2864 = vadd.f32 %v884, %v2863
      %v2865 = vpop.f32.mrb[0].mxu0
      %2866 = vmatprep.mubr.bf16.mxu0 0
      %2867 = vmatmul.mubr.bf16.gmra.mrb[0].mxu0 %v1650
      %v2868 = vpop.f32.mrb[0].mxu0
      %v2869 = vadd.f32 %v884, %v2868
      %v2870 = vpop.f32.mrb[0].mxu0
      %v2871 = vpop.f32.mrb[0].mxu0
      %v2872 = vadd.f32 %v884, %v2871
      %v2873 = vpop.f32.mrb[0].mxu0
      %2874 = vmatprep.mubr.bf16.mxu0 0
      %2875 = vmatmul.mubr.bf16.gmra.mrb[0].mxu0 %v1651
      %v2876 = vpop.f32.mrb[0].mxu0
      %v2877 = vadd.f32 %v884, %v2876
      %v2878 = vpop.f32.mrb[0].mxu0
      %v2879 = vpop.f32.mrb[0].mxu0
      %v2880 = vadd.f32 %v884, %v2879
      %v2881 = vpop.f32.mrb[0].mxu0
      %2882 = vmatprep.mubr.bf16.mxu0 0
      %2883 = vmatmul.mubr.bf16.gmra.mrb[0].mxu0 %v1652
      %v2884 = vpop.f32.mrb[0].mxu0
      %v2885 = vadd.f32 %v884, %v2884
      %v2886 = vpop.f32.mrb[0].mxu0
      %v2887 = vpop.f32.mrb[0].mxu0
      %v2888 = vadd.f32 %v884, %v2887
      %v2889 = vpop.f32.mrb[0].mxu0
      %2890 = vmatprep.mubr.bf16.mxu0 0
      %2891 = vmatmul.mubr.bf16.gmra.mrb[0].mxu0 %v1653
      %v2892 = vpop.f32.mrb[0].mxu0
      %v2893 = vadd.f32 %v884, %v2892
      %v2894 = vpop.f32.mrb[0].mxu0
      %v2895 = vpop.f32.mrb[0].mxu0
      %v2896 = vadd.f32 %v884, %v2895
      %v2897 = vpop.f32.mrb[0].mxu0
      %2898 = vmatprep.mubr.bf16.mxu0 0
      %2899 = vmatmul.mubr.bf16.gmra.mrb[0].mxu0 %v1654
      %v2900 = vpop.f32.mrb[0].mxu0
      %v2901 = vadd.f32 %v884, %v2900
      %v2902 = vpop.f32.mrb[0].mxu0
      %v2903 = vpop.f32.mrb[0].mxu0
      %v2904 = vadd.f32 %v884, %v2903
      %v2905 = vpop.f32.mrb[0].mxu0
      %2906 = vmatprep.mubr.bf16.mxu0 0
      %2907 = vmatmul.mubr.bf16.gmra.mrb[0].mxu0 %v1655
      %v2908 = vpop.f32.mrb[0].mxu0
      %v2909 = vadd.f32 %v884, %v2908
      %v2910 = vpop.f32.mrb[0].mxu0
      %v2911 = vpop.f32.mrb[0].mxu0
      %v2912 = vadd.f32 %v884, %v2911
      %v2913 = vpop.f32.mrb[0].mxu0
      %2914 = vmatprep.mubr.bf16.mxu0 0
      %2915 = vmatmul.mubr.bf16.gmra.mrb[0].mxu0 %v1656
      %v2916 = vpop.f32.mrb[0].mxu0
      %v2917 = vadd.f32 %v884, %v2916
      %v2918 = vpop.f32.mrb[0].mxu0
      %v2919 = vpop.f32.mrb[0].mxu0
      %v2920 = vadd.f32 %v884, %v2919
      %v2921 = vpop.f32.mrb[0].mxu0
      %2922 = vmatprep.mubr.bf16.mxu0 0
      %2923 = vmatmul.mubr.bf16.gmra.mrb[0].mxu0 %v1657
      %v2924 = vpop.f32.mrb[0].mxu0
      %v2925 = vadd.f32 %v884, %v2924
      %v2926 = vpop.f32.mrb[0].mxu0
      %v2927 = vpop.f32.mrb[0].mxu0
      %v2928 = vadd.f32 %v884, %v2927
      %v2929 = vpop.f32.mrb[0].mxu0
      %2930 = vmatprep.mubr.bf16.mxu0 0
      %2931 = vmatmul.mubr.bf16.gmra.mrb[0].mxu0 %v1658
      %v2932 = vpop.f32.mrb[0].mxu0
      %v2933 = vadd.f32 %v884, %v2932
      %v2934 = vpop.f32.mrb[0].mxu0
      %v2935 = vpop.f32.mrb[0].mxu0
      %v2936 = vadd.f32 %v884, %v2935
      %v2937 = vpop.f32.mrb[0].mxu0
      %2938 = vmatprep.mubr.bf16.mxu0 0
      %2939 = vmatmul.mubr.bf16.gmra.mrb[0].mxu0 %v1659
      %v2940 = vpop.f32.mrb[0].mxu0
      %v2941 = vadd.f32 %v884, %v2940
      %v2942 = vpop.f32.mrb[0].mxu0
      %v2943 = vpop.f32.mrb[0].mxu0
      %v2944 = vadd.f32 %v884, %v2943
      %v2945 = vpop.f32.mrb[0].mxu0
      %2946 = vmatprep.mubr.bf16.mxu0 0
      %2947 = vmatmul.mubr.bf16.gmra.mrb[0].mxu0 %v1660
      %v2948 = vpop.f32.mrb[0].mxu0
      %v2949 = vadd.f32 %v884, %v2948
      %v2950 = vpop.f32.mrb[0].mxu0
      %v2951 = vpop.f32.mrb[0].mxu0
      %v2952 = vadd.f32 %v884, %v2951
      %v2953 = vpop.f32.mrb[0].mxu0
      %2954 = vmatprep.mubr.bf16.mxu0 0
      %2955 = vmatmul.mubr.bf16.gmra.mrb[0].mxu0 %v1661
      %v2956 = vpop.f32.mrb[0].mxu0
      %v2957 = vadd.f32 %v884, %v2956
      %v2958 = vpop.f32.mrb[0].mxu0
      %v2959 = vpop.f32.mrb[0].mxu0
      %v2960 = vadd.f32 %v884, %v2959
      %v2961 = vpop.f32.mrb[0].mxu0
      %2962 = vmatprep.mubr.bf16.mxu0 0
      %2963 = vmatmul.mubr.bf16.gmra.mrb[0].mxu0 %v1662
      %v2964 = vpop.f32.mrb[0].mxu0
      %v2965 = vadd.f32 %v884, %v2964
      %v2966 = vpop.f32.mrb[0].mxu0
      %v2967 = vpop.f32.mrb[0].mxu0
      %v2968 = vadd.f32 %v884, %v2967
      %v2969 = vpop.f32.mrb[0].mxu0
      %2970 = vmatprep.mubr.bf16.mxu0 0
      %2971 = vmatmul.mubr.bf16.gmra.mrb[0].mxu0 %v1663
      %v2972 = vpop.f32.mrb[0].mxu0
      %v2973 = vadd.f32 %v884, %v2972
      %v2974 = vpop.f32.mrb[0].mxu0
      %v2975 = vpop.f32.mrb[0].mxu0
      %v2976 = vadd.f32 %v884, %v2975
      %v2977 = vpop.f32.mrb[0].mxu0
      %2978 = vmatprep.mubr.bf16.mxu0 0
      %2979 = vmatmul.mubr.bf16.gmra.mrb[0].mxu0 %v1664
      %v2980 = vpop.f32.mrb[0].mxu0
      %v2981 = vadd.f32 %v884, %v2980
      %v2982 = vpop.f32.mrb[0].mxu0
      %v2983 = vpop.f32.mrb[0].mxu0
      %v2984 = vadd.f32 %v884, %v2983
      %v2985 = vpop.f32.mrb[0].mxu0
      %2986 = vmatprep.mubr.bf16.mxu0 0
      %2987 = vmatmul.mubr.bf16.gmra.mrb[0].mxu0 %v1665
      %v2988 = vpop.f32.mrb[0].mxu0
      %v2989 = vadd.f32 %v884, %v2988
      %v2990 = vpop.f32.mrb[0].mxu0
      %v2991 = vpop.f32.mrb[0].mxu0
      %v2992 = vadd.f32 %v884, %v2991
      %v2993 = vpop.f32.mrb[0].mxu0
      %2994 = vmatprep.mubr.bf16.mxu0 0
      %2995 = vmatmul.mubr.bf16.gmra.mrb[0].mxu0 %v1666
      %v2996 = vpop.f32.mrb[0].mxu0
      %v2997 = vadd.f32 %v884, %v2996
      %v2998 = vpop.f32.mrb[0].mxu0
      %v2999 = vpop.f32.mrb[0].mxu0
      %v3000 = vadd.f32 %v884, %v2999
      %v3001 = vpop.f32.mrb[0].mxu0
      %3002 = vmatprep.mubr.bf16.mxu0 0
      %3003 = vmatmul.mubr.bf16.gmra.mrb[0].mxu0 %v1667
      %v3004 = vpop.f32.mrb[0].mxu0
      %v3005 = vadd.f32 %v884, %v3004
      %v3006 = vpop.f32.mrb[0].mxu0
      %v3007 = vpop.f32.mrb[0].mxu0
      %v3008 = vadd.f32 %v884, %v3007
      %v3009 = vpop.f32.mrb[0].mxu0
      %3010 = vmatprep.mubr.bf16.mxu0 0
      %3011 = vmatmul.mubr.bf16.gmra.mrb[0].mxu0 %v1668
      %v3012 = vpop.f32.mrb[0].mxu0
      %v3013 = vadd.f32 %v884, %v3012
      %v3014 = vpop.f32.mrb[0].mxu0
      %v3015 = vpop.f32.mrb[0].mxu0
      %v3016 = vadd.f32 %v884, %v3015
      %v3017 = vpop.f32.mrb[0].mxu0
      %3018 = vmatprep.mubr.bf16.mxu0 0
      %3019 = vmatmul.mubr.bf16.gmra.mrb[0].mxu0 %v1669
      %v3020 = vpop.f32.mrb[0].mxu0
      %v3021 = vadd.f32 %v884, %v3020
      %v3022 = vpop.f32.mrb[0].mxu0
      %v3023 = vpop.f32.mrb[0].mxu0
      %v3024 = vadd.f32 %v884, %v3023
      %v3025 = vpop.f32.mrb[0].mxu0
      %3026 = vmatprep.mubr.bf16.mxu0 0
      %3027 = vmatmul.mubr.bf16.gmra.mrb[0].mxu0 %v1670
      %v3028 = vpop.f32.mrb[0].mxu0
      %v3029 = vadd.f32 %v884, %v3028
      %v3030 = vpop.f32.mrb[0].mxu0
      %v3031 = vpop.f32.mrb[0].mxu0
      %v3032 = vadd.f32 %v884, %v3031
      %v3033 = vpop.f32.mrb[0].mxu0
      %3034 = vmatprep.mubr.bf16.mxu0 0
      %3035 = vmatmul.mubr.bf16.gmra.mrb[0].mxu0 %v1671
      %v3036 = vpop.f32.mrb[0].mxu0
      %v3037 = vadd.f32 %v884, %v3036
      %v3038 = vpop.f32.mrb[0].mxu0
      %v3039 = vpop.f32.mrb[0].mxu0
      %v3040 = vadd.f32 %v884, %v3039
      %v3041 = vpop.f32.mrb[0].mxu0
      %3042 = vmatprep.mubr.bf16.mxu0 0
      %3043 = vmatmul.mubr.bf16.gmra.mrb[0].mxu0 %v1672
      %v3044 = vpop.f32.mrb[0].mxu0
      %v3045 = vadd.f32 %v884, %v3044
      %v3046 = vpop.f32.mrb[0].mxu0
      %v3047 = vpop.f32.mrb[0].mxu0
      %v3048 = vadd.f32 %v884, %v3047
      %v3049 = vpop.f32.mrb[0].mxu0
      %3050 = vmatprep.mubr.bf16.mxu0 0
      %3051 = vmatmul.mubr.bf16.gmra.mrb[0].mxu0 %v1673
      %v3052 = vpop.f32.mrb[0].mxu0
      %v3053 = vadd.f32 %v884, %v3052
      %v3054 = vpop.f32.mrb[0].mxu0
      %v3055 = vpop.f32.mrb[0].mxu0
      %v3056 = vadd.f32 %v884, %v3055
      %v3057 = vpop.f32.mrb[0].mxu0
      %3058 = vmatprep.mubr.bf16.mxu0 0
      %3059 = vmatmul.mubr.bf16.gmra.mrb[0].mxu0 %v1674
      %v3060 = vpop.f32.mrb[0].mxu0
      %v3061 = vadd.f32 %v884, %v3060
      %v3062 = vpop.f32.mrb[0].mxu0
      %v3063 = vpop.f32.mrb[0].mxu0
      %v3064 = vadd.f32 %v884, %v3063
      %v3065 = vpop.f32.mrb[0].mxu0
      %3066 = vmatprep.mubr.bf16.mxu0 0
      %3067 = vmatmul.mubr.bf16.gmra.mrb[0].mxu0 %v1675
      %v3068 = vpop.f32.mrb[0].mxu0
      %v3069 = vadd.f32 %v884, %v3068
      %v3070 = vpop.f32.mrb[0].mxu0
      %v3071 = vpop.f32.mrb[0].mxu0
      %v3072 = vadd.f32 %v884, %v3071
      %v3073 = vpop.f32.mrb[0].mxu0
      %3074 = vmatprep.mubr.bf16.mxu0 0
      %3075 = vmatmul.mubr.bf16.gmra.mrb[0].mxu0 %v1676
      %v3076 = vpop.f32.mrb[0].mxu0
      %v3077 = vadd.f32 %v884, %v3076
      %v3078 = vpop.f32.mrb[0].mxu0
      %v3079 = vpop.f32.mrb[0].mxu0
      %v3080 = vadd.f32 %v884, %v3079
      %v3081 = vpop.f32.mrb[0].mxu0
      %3082 = vmatprep.mubr.bf16.mxu0 0
      %3083 = vmatmul.mubr.bf16.gmra.mrb[0].mxu0 %v1677
      %v3084 = vpop.f32.mrb[0].mxu0
      %v3085 = vadd.f32 %v884, %v3084
      %v3086 = vpop.f32.mrb[0].mxu0
      %v3087 = vpop.f32.mrb[0].mxu0
      %v3088 = vadd.f32 %v884, %v3087
      %v3089 = vpop.f32.mrb[0].mxu0
      %3090 = vmatprep.mubr.bf16.mxu0 0
      %3091 = vmatmul.mubr.bf16.gmra.mrb[0].mxu0 %v1678
      %v3092 = vpop.f32.mrb[0].mxu0
      %v3093 = vadd.f32 %v884, %v3092
      %v3094 = vpop.f32.mrb[0].mxu0
      %v3095 = vpop.f32.mrb[0].mxu0
      %v3096 = vadd.f32 %v884, %v3095
      %v3097 = vpop.f32.mrb[0].mxu0
      %3098 = vmatprep.mubr.bf16.mxu0 0
      %3099 = vmatmul.mubr.bf16.gmra.mrb[0].mxu0 %v1679
      %v3100 = vpop.f32.mrb[0].mxu0
      %v3101 = vadd.f32 %v884, %v3100
      %v3102 = vpop.f32.mrb[0].mxu0
      %v3103 = vpop.f32.mrb[0].mxu0
      %v3104 = vadd.f32 %v884, %v3103
      %v3105 = vpop.f32.mrb[0].mxu0
      %3106 = vmatprep.mubr.bf16.mxu0 0
      %3107 = vmatmul.mubr.bf16.gmra.mrb[0].mxu0 %v1680
      %v3108 = vpop.f32.mrb[0].mxu0
      %v3109 = vadd.f32 %v884, %v3108
      %v3110 = vpop.f32.mrb[0].mxu0
      %v3111 = vpop.f32.mrb[0].mxu0
      %v3112 = vadd.f32 %v884, %v3111
      %v3113 = vpop.f32.mrb[0].mxu0
      %3114 = vmatprep.mubr.bf16.mxu0 0
      %3115 = vmatmul.mubr.bf16.gmra.mrb[0].mxu0 %v1681
      %v3116 = vpop.f32.mrb[0].mxu0
      %v3117 = vadd.f32 %v884, %v3116
      %v3118 = vpop.f32.mrb[0].mxu0
      %v3119 = vpop.f32.mrb[0].mxu0
      %v3120 = vadd.f32 %v884, %v3119
      %v3121 = vpop.f32.mrb[0].mxu0
      %3122 = vmatprep.mubr.bf16.mxu0 0
      %3123 = vmatmul.mubr.bf16.gmra.mrb[0].mxu0 %v1682
      %v3124 = vpop.f32.mrb[0].mxu0
      %v3125 = vadd.f32 %v884, %v3124
      %v3126 = vpop.f32.mrb[0].mxu0
      %v3127 = vpop.f32.mrb[0].mxu0
      %v3128 = vadd.f32 %v884, %v3127
      %v3129 = vpop.f32.mrb[0].mxu0
      %3130 = vmatprep.mubr.bf16.mxu0 0
      %3131 = vmatmul.mubr.bf16.gmra.mrb[0].mxu0 %v1683
      %v3132 = vpop.f32.mrb[0].mxu0
      %v3133 = vadd.f32 %v884, %v3132
      %v3134 = vpop.f32.mrb[0].mxu0
      %v3135 = vpop.f32.mrb[0].mxu0
      %v3136 = vadd.f32 %v884, %v3135
      %v3137 = vpop.f32.mrb[0].mxu0
      %3138 = vmatprep.mubr.bf16.mxu0 0
      %3139 = vmatmul.mubr.bf16.gmra.mrb[0].mxu0 %v1684
      %v3140 = vpop.f32.mrb[0].mxu0
      %v3141 = vadd.f32 %v884, %v3140
      %v3142 = vpop.f32.mrb[0].mxu0
      %v3143 = vpop.f32.mrb[0].mxu0
      %v3144 = vadd.f32 %v884, %v3143
      %v3145 = vpop.f32.mrb[0].mxu0
      %3146 = vmatprep.mubr.bf16.mxu0 0
      %3147 = vmatmul.mubr.bf16.gmra.mrb[0].mxu0 %v1685
      %v3148 = vpop.f32.mrb[0].mxu0
      %v3149 = vadd.f32 %v884, %v3148
      %v3150 = vpop.f32.mrb[0].mxu0
      %v3151 = vpop.f32.mrb[0].mxu0
      %v3152 = vadd.f32 %v884, %v3151
      %v3153 = vpop.f32.mrb[0].mxu0
      %3154 = vmatprep.mubr.bf16.mxu0 0
      %3155 = vmatmul.mubr.bf16.gmra.mrb[0].mxu0 %v1686
      %v3156 = vpop.f32.mrb[0].mxu0
      %v3157 = vadd.f32 %v884, %v3156
      %v3158 = vpop.f32.mrb[0].mxu0
      %v3159 = vpop.f32.mrb[0].mxu0
      %v3160 = vadd.f32 %v884, %v3159
      %v3161 = vpop.f32.mrb[0].mxu0
      %3162 = vmatprep.mubr.bf16.mxu0 0
      %3163 = vmatmul.mubr.bf16.gmra.mrb[0].mxu0 %v1687
      %v3164 = vpop.f32.mrb[0].mxu0
      %v3165 = vadd.f32 %v884, %v3164
      %v3166 = vpop.f32.mrb[0].mxu0
      %v3167 = vpop.f32.mrb[0].mxu0
      %v3168 = vadd.f32 %v884, %v3167
      %v3169 = vpop.f32.mrb[0].mxu0
      %3170 = vmatprep.mubr.bf16.mxu0 0
      %3171 = vmatmul.mubr.bf16.gmra.mrb[0].mxu0 %v1688
      %v3172 = vpop.f32.mrb[0].mxu0
      %v3173 = vadd.f32 %v884, %v3172
      %v3174 = vpop.f32.mrb[0].mxu0
      %v3175 = vpop.f32.mrb[0].mxu0
      %v3176 = vadd.f32 %v884, %v3175
      %v3177 = vpop.f32.mrb[0].mxu0
      %3178 = vmatprep.mubr.bf16.mxu0 0
      %3179 = vmatmul.mubr.bf16.gmra.mrb[0].mxu0 %v1689
      %v3180 = vpop.f32.mrb[0].mxu0
      %v3181 = vadd.f32 %v884, %v3180
      %v3182 = vpop.f32.mrb[0].mxu0
      %v3183 = vpop.f32.mrb[0].mxu0
      %v3184 = vadd.f32 %v884, %v3183
      %v3185 = vpop.f32.mrb[0].mxu0
      %3186 = vmatprep.mubr.bf16.mxu0 0
      %3187 = vmatmul.mubr.bf16.gmra.mrb[0].mxu0 %v1690
      %v3188 = vpop.f32.mrb[0].mxu0
      %v3189 = vadd.f32 %v884, %v3188
      %v3190 = vpop.f32.mrb[0].mxu0
      %v3191 = vpop.f32.mrb[0].mxu0
      %v3192 = vadd.f32 %v884, %v3191
      %v3193 = vpop.f32.mrb[0].mxu0
      %3194 = vmatprep.mubr.bf16.mxu0 0
      %3195 = vmatmul.mubr.bf16.gmra.mrb[0].mxu0 %v1691
      %v3196 = vpop.f32.mrb[0].mxu0
      %v3197 = vadd.f32 %v884, %v3196
      %v3198 = vpop.f32.mrb[0].mxu0
      %v3199 = vpop.f32.mrb[0].mxu0
      %v3200 = vadd.f32 %v884, %v3199
      %v3201 = vpop.f32.mrb[0].mxu0
      %3202 = vmatprep.mubr.bf16.mxu0 0
      %3203 = vmatmul.mubr.bf16.gmra.mrb[0].mxu0 %v1692
      %v3204 = vpop.f32.mrb[0].mxu0
      %v3205 = vadd.f32 %v884, %v3204
      %v3206 = vpop.f32.mrb[0].mxu0
      %v3207 = vpop.f32.mrb[0].mxu0
      %v3208 = vadd.f32 %v884, %v3207
      %v3209 = vpop.f32.mrb[0].mxu0
      %3210 = vmatprep.mubr.bf16.mxu0 0
      %3211 = vmatmul.mubr.bf16.gmra.mrb[0].mxu0 %v1693
      %v3212 = vpop.f32.mrb[0].mxu0
      %v3213 = vadd.f32 %v884, %v3212
      %v3214 = vpop.f32.mrb[0].mxu0
      %v3215 = vpop.f32.mrb[0].mxu0
      %v3216 = vadd.f32 %v884, %v3215
      %v3217 = vpop.f32.mrb[0].mxu0
      %3218 = vmatprep.mubr.bf16.mxu0 0
      %3219 = vmatmul.mubr.bf16.gmra.mrb[0].mxu0 %v1694
      %v3220 = vpop.f32.mrb[0].mxu0
      %v3221 = vadd.f32 %v884, %v3220
      %v3222 = vpop.f32.mrb[0].mxu0
      %v3223 = vpop.f32.mrb[0].mxu0
      %v3224 = vadd.f32 %v884, %v3223
      %v3225 = vpop.f32.mrb[0].mxu0
      %3226 = vmatprep.mubr.bf16.mxu0 0
      %3227 = vmatmul.mubr.bf16.gmra.mrb[0].mxu0 %v1695
      %v3228 = vpop.f32.mrb[0].mxu0
      %v3229 = vadd.f32 %v884, %v3228
      %v3230 = vpop.f32.mrb[0].mxu0
      %v3231 = vpop.f32.mrb[0].mxu0
      %v3232 = vadd.f32 %v884, %v3231
      %v3233 = vpop.f32.mrb[0].mxu0
      %3234 = vdwg.mxu0
      %v3235 = vmax.f32 %v1941, 0.0
      %v3236 = vmax.f32 %v1944, 0.0
      %v3237 = vmax.f32 %v1949, 0.0
      %v3238 = vmax.f32 %v1952, 0.0
      %v3239 = vmax.f32 %v1957, 0.0
      %v3240 = vmax.f32 %v1960, 0.0
      %v3241 = vmax.f32 %v1965, 0.0
      %v3242 = vmax.f32 %v1968, 0.0
      %v3243 = vmax.f32 %v1973, 0.0
      %v3244 = vmax.f32 %v1976, 0.0
      %v3245 = vmax.f32 %v1981, 0.0
      %v3246 = vmax.f32 %v1984, 0.0
      %v3247 = vmax.f32 %v1989, 0.0
      %v3248 = vmax.f32 %v1992, 0.0
      %v3249 = vmax.f32 %v1997, 0.0
      %v3250 = vmax.f32 %v2000, 0.0
      %v3251 = vmax.f32 %v2005, 0.0
      %v3252 = vmax.f32 %v2008, 0.0
      %v3253 = vmax.f32 %v2013, 0.0
      %v3254 = vmax.f32 %v2016, 0.0
      %v3255 = vmax.f32 %v2021, 0.0
      %v3256 = vmax.f32 %v2024, 0.0
      %v3257 = vmax.f32 %v2029, 0.0
      %v3258 = vmax.f32 %v2032, 0.0
      %v3259 = vmax.f32 %v2037, 0.0
      %v3260 = vmax.f32 %v2040, 0.0
      %v3261 = vmax.f32 %v2045, 0.0
      %v3262 = vmax.f32 %v2048, 0.0
      %v3263 = vmax.f32 %v2053, 0.0
      %v3264 = vmax.f32 %v2056, 0.0
      %v3265 = vmax.f32 %v2061, 0.0
      %v3266 = vmax.f32 %v2064, 0.0
      %v3267 = vmax.f32 %v2069, 0.0
      %v3268 = vmax.f32 %v2072, 0.0
      %v3269 = vmax.f32 %v2077, 0.0
      %v3270 = vmax.f32 %v2080, 0.0
      %v3271 = vmax.f32 %v2085, 0.0
      %v3272 = vmax.f32 %v2088, 0.0
      %v3273 = vmax.f32 %v2093, 0.0
      %v3274 = vmax.f32 %v2096, 0.0
      %v3275 = vmax.f32 %v2101, 0.0
      %v3276 = vmax.f32 %v2104, 0.0
      %v3277 = vmax.f32 %v2109, 0.0
      %v3278 = vmax.f32 %v2112, 0.0
      %v3279 = vmax.f32 %v2117, 0.0
      %v3280 = vmax.f32 %v2120, 0.0
      %v3281 = vmax.f32 %v2125, 0.0
      %v3282 = vmax.f32 %v2128, 0.0
      %v3283 = vmax.f32 %v2133, 0.0
      %v3284 = vmax.f32 %v2136, 0.0
      %v3285 = vmax.f32 %v2141, 0.0
      %v3286 = vmax.f32 %v2144, 0.0
      %v3287 = vmax.f32 %v2149, 0.0
      %v3288 = vmax.f32 %v2152, 0.0
      %v3289 = vmax.f32 %v2157, 0.0
      %v3290 = vmax.f32 %v2160, 0.0
      %v3291 = vmax.f32 %v2165, 0.0
      %v3292 = vmax.f32 %v2168, 0.0
      %v3293 = vmax.f32 %v2173, 0.0
      %v3294 = vmax.f32 %v2176, 0.0
      %v3295 = vmax.f32 %v2181, 0.0
      %v3296 = vmax.f32 %v2184, 0.0
      %v3297 = vmax.f32 %v2189, 0.0
      %v3298 = vmax.f32 %v2192, 0.0
      %v3299 = vmax.f32 %v2197, 0.0
      %v3300 = vmax.f32 %v2200, 0.0
      %v3301 = vmax.f32 %v2205, 0.0
      %v3302 = vmax.f32 %v2208, 0.0
      %v3303 = vmax.f32 %v2213, 0.0
      %v3304 = vmax.f32 %v2216, 0.0
      %v3305 = vmax.f32 %v2221, 0.0
      %v3306 = vmax.f32 %v2224, 0.0
      %v3307 = vmax.f32 %v2229, 0.0
      %v3308 = vmax.f32 %v2232, 0.0
      %v3309 = vmax.f32 %v2237, 0.0
      %v3310 = vmax.f32 %v2240, 0.0
      %v3311 = vmax.f32 %v2245, 0.0
      %v3312 = vmax.f32 %v2248, 0.0
      %v3313 = vmax.f32 %v2253, 0.0
      %v3314 = vmax.f32 %v2256, 0.0
      %v3315 = vmax.f32 %v2261, 0.0
      %v3316 = vmax.f32 %v2264, 0.0
      %v3317 = vmax.f32 %v2269, 0.0
      %v3318 = vmax.f32 %v2272, 0.0
      %v3319 = vmax.f32 %v2277, 0.0
      %v3320 = vmax.f32 %v2280, 0.0
      %v3321 = vmax.f32 %v2285, 0.0
      %v3322 = vmax.f32 %v2288, 0.0
      %v3323 = vmax.f32 %v2293, 0.0
      %v3324 = vmax.f32 %v2296, 0.0
      %v3325 = vmax.f32 %v2301, 0.0
      %v3326 = vmax.f32 %v2304, 0.0
      %v3327 = vmax.f32 %v2309, 0.0
      %v3328 = vmax.f32 %v2312, 0.0
      %v3329 = vmax.f32 %v2317, 0.0
      %v3330 = vmax.f32 %v2320, 0.0
      %v3331 = vmax.f32 %v2325, 0.0
      %v3332 = vmax.f32 %v2328, 0.0
      %v3333 = vmax.f32 %v2333, 0.0
      %v3334 = vmax.f32 %v2336, 0.0
      %v3335 = vmax.f32 %v2341, 0.0
      %v3336 = vmax.f32 %v2344, 0.0
      %v3337 = vmax.f32 %v2349, 0.0
      %v3338 = vmax.f32 %v2352, 0.0
      %v3339 = vmax.f32 %v2357, 0.0
      %v3340 = vmax.f32 %v2360, 0.0
      %v3341 = vmax.f32 %v2365, 0.0
      %v3342 = vmax.f32 %v2368, 0.0
      %v3343 = vmax.f32 %v2373, 0.0
      %v3344 = vmax.f32 %v2376, 0.0
      %v3345 = vmax.f32 %v2381, 0.0
      %v3346 = vmax.f32 %v2384, 0.0
      %v3347 = vmax.f32 %v2389, 0.0
      %v3348 = vmax.f32 %v2392, 0.0
      %v3349 = vmax.f32 %v2397, 0.0
      %v3350 = vmax.f32 %v2400, 0.0
      %v3351 = vmax.f32 %v2405, 0.0
      %v3352 = vmax.f32 %v2408, 0.0
      %v3353 = vmax.f32 %v2413, 0.0
      %v3354 = vmax.f32 %v2416, 0.0
      %v3355 = vmax.f32 %v2421, 0.0
      %v3356 = vmax.f32 %v2424, 0.0
      %v3357 = vmax.f32 %v2429, 0.0
      %v3358 = vmax.f32 %v2432, 0.0
      %v3359 = vmax.f32 %v2437, 0.0
      %v3360 = vmax.f32 %v2440, 0.0
      %v3361 = vmax.f32 %v2445, 0.0
      %v3362 = vmax.f32 %v2448, 0.0
      %v3363 = vmax.f32 %v2453, 0.0
      %v3364 = vmax.f32 %v2456, 0.0
      %v3365 = vmax.f32 %v2461, 0.0
      %v3366 = vmax.f32 %v2464, 0.0
      %v3367 = vmax.f32 %v2469, 0.0
      %v3368 = vmax.f32 %v2472, 0.0
      %v3369 = vmax.f32 %v2477, 0.0
      %v3370 = vmax.f32 %v2480, 0.0
      %v3371 = vmax.f32 %v2485, 0.0
      %v3372 = vmax.f32 %v2488, 0.0
      %v3373 = vmax.f32 %v2493, 0.0
      %v3374 = vmax.f32 %v2496, 0.0
      %v3375 = vmax.f32 %v2501, 0.0
      %v3376 = vmax.f32 %v2504, 0.0
      %v3377 = vmax.f32 %v2509, 0.0
      %v3378 = vmax.f32 %v2512, 0.0
      %v3379 = vmax.f32 %v2517, 0.0
      %v3380 = vmax.f32 %v2520, 0.0
      %v3381 = vmax.f32 %v2525, 0.0
      %v3382 = vmax.f32 %v2528, 0.0
      %v3383 = vmax.f32 %v2533, 0.0
      %v3384 = vmax.f32 %v2536, 0.0
      %v3385 = vmax.f32 %v2541, 0.0
      %v3386 = vmax.f32 %v2544, 0.0
      %v3387 = vmax.f32 %v2549, 0.0
      %v3388 = vmax.f32 %v2552, 0.0
      %v3389 = vmax.f32 %v2557, 0.0
      %v3390 = vmax.f32 %v2560, 0.0
      %v3391 = vmax.f32 %v2565, 0.0
      %v3392 = vmax.f32 %v2568, 0.0
      %v3393 = vmax.f32 %v2573, 0.0
      %v3394 = vmax.f32 %v2576, 0.0
      %v3395 = vmax.f32 %v2581, 0.0
      %v3396 = vmax.f32 %v2584, 0.0
      %v3397 = vmax.f32 %v2589, 0.0
      %v3398 = vmax.f32 %v2592, 0.0
      %v3399 = vmax.f32 %v2597, 0.0
      %v3400 = vmax.f32 %v2600, 0.0
      %v3401 = vmax.f32 %v2605, 0.0
      %v3402 = vmax.f32 %v2608, 0.0
      %v3403 = vmax.f32 %v2613, 0.0
      %v3404 = vmax.f32 %v2616, 0.0
      %v3405 = vmax.f32 %v2621, 0.0
      %v3406 = vmax.f32 %v2624, 0.0
      %v3407 = vmax.f32 %v2629, 0.0
      %v3408 = vmax.f32 %v2632, 0.0
      %v3409 = vmax.f32 %v2637, 0.0
      %v3410 = vmax.f32 %v2640, 0.0
      %v3411 = vmax.f32 %v2645, 0.0
      %v3412 = vmax.f32 %v2648, 0.0
      %v3413 = vmax.f32 %v2653, 0.0
      %v3414 = vmax.f32 %v2656, 0.0
      %v3415 = vmax.f32 %v2661, 0.0
      %v3416 = vmax.f32 %v2664, 0.0
      %v3417 = vmax.f32 %v2669, 0.0
      %v3418 = vmax.f32 %v2672, 0.0
      %v3419 = vmax.f32 %v2677, 0.0
      %v3420 = vmax.f32 %v2680, 0.0
      %v3421 = vmax.f32 %v2685, 0.0
      %v3422 = vmax.f32 %v2688, 0.0
      %v3423 = vmax.f32 %v2693, 0.0
      %v3424 = vmax.f32 %v2696, 0.0
      %v3425 = vmax.f32 %v2701, 0.0
      %v3426 = vmax.f32 %v2704, 0.0
      %v3427 = vmax.f32 %v2709, 0.0
      %v3428 = vmax.f32 %v2712, 0.0
      %v3429 = vmax.f32 %v2717, 0.0
      %v3430 = vmax.f32 %v2720, 0.0
      %v3431 = vmax.f32 %v2725, 0.0
      %v3432 = vmax.f32 %v2728, 0.0
      %v3433 = vmax.f32 %v2733, 0.0
      %v3434 = vmax.f32 %v2736, 0.0
      %v3435 = vmax.f32 %v2741, 0.0
      %v3436 = vmax.f32 %v2744, 0.0
      %v3437 = vmax.f32 %v2749, 0.0
      %v3438 = vmax.f32 %v2752, 0.0
      %v3439 = vmax.f32 %v2757, 0.0
      %v3440 = vmax.f32 %v2760, 0.0
      %v3441 = vmax.f32 %v2765, 0.0
      %v3442 = vmax.f32 %v2768, 0.0
      %v3443 = vmax.f32 %v2773, 0.0
      %v3444 = vmax.f32 %v2776, 0.0
      %v3445 = vmax.f32 %v2781, 0.0
      %v3446 = vmax.f32 %v2784, 0.0
      %v3447 = vmax.f32 %v2789, 0.0
      %v3448 = vmax.f32 %v2792, 0.0
      %v3449 = vmax.f32 %v2797, 0.0
      %v3450 = vmax.f32 %v2800, 0.0
      %v3451 = vmax.f32 %v2805, 0.0
      %v3452 = vmax.f32 %v2808, 0.0
      %v3453 = vmax.f32 %v2813, 0.0
      %v3454 = vmax.f32 %v2816, 0.0
      %v3455 = vmax.f32 %v2821, 0.0
      %v3456 = vmax.f32 %v2824, 0.0
      %v3457 = vmax.f32 %v2829, 0.0
      %v3458 = vmax.f32 %v2832, 0.0
      %v3459 = vmax.f32 %v2837, 0.0
      %v3460 = vmax.f32 %v2840, 0.0
      %v3461 = vmax.f32 %v2845, 0.0
      %v3462 = vmax.f32 %v2848, 0.0
      %v3463 = vmax.f32 %v2853, 0.0
      %v3464 = vmax.f32 %v2856, 0.0
      %v3465 = vmax.f32 %v2861, 0.0
      %v3466 = vmax.f32 %v2864, 0.0
      %v3467 = vmax.f32 %v2869, 0.0
      %v3468 = vmax.f32 %v2872, 0.0
      %v3469 = vmax.f32 %v2877, 0.0
      %v3470 = vmax.f32 %v2880, 0.0
      %v3471 = vmax.f32 %v2885, 0.0
      %v3472 = vmax.f32 %v2888, 0.0
      %v3473 = vmax.f32 %v2893, 0.0
      %v3474 = vmax.f32 %v2896, 0.0
      %v3475 = vmax.f32 %v2901, 0.0
      %v3476 = vmax.f32 %v2904, 0.0
      %v3477 = vmax.f32 %v2909, 0.0
      %v3478 = vmax.f32 %v2912, 0.0
      %v3479 = vmax.f32 %v2917, 0.0
      %v3480 = vmax.f32 %v2920, 0.0
      %v3481 = vmax.f32 %v2925, 0.0
      %v3482 = vmax.f32 %v2928, 0.0
      %v3483 = vmax.f32 %v2933, 0.0
      %v3484 = vmax.f32 %v2936, 0.0
      %v3485 = vmax.f32 %v2941, 0.0
      %v3486 = vmax.f32 %v2944, 0.0
      %v3487 = vmax.f32 %v2949, 0.0
      %v3488 = vmax.f32 %v2952, 0.0
      %v3489 = vmax.f32 %v2957, 0.0
      %v3490 = vmax.f32 %v2960, 0.0
      %v3491 = vmax.f32 %v2965, 0.0
      %v3492 = vmax.f32 %v2968, 0.0
      %v3493 = vmax.f32 %v2973, 0.0
      %v3494 = vmax.f32 %v2976, 0.0
      %v3495 = vmax.f32 %v2981, 0.0
      %v3496 = vmax.f32 %v2984, 0.0
      %v3497 = vmax.f32 %v2989, 0.0
      %v3498 = vmax.f32 %v2992, 0.0
      %v3499 = vmax.f32 %v2997, 0.0
      %v3500 = vmax.f32 %v3000, 0.0
      %v3501 = vmax.f32 %v3005, 0.0
      %v3502 = vmax.f32 %v3008, 0.0
      %v3503 = vmax.f32 %v3013, 0.0
      %v3504 = vmax.f32 %v3016, 0.0
      %v3505 = vmax.f32 %v3021, 0.0
      %v3506 = vmax.f32 %v3024, 0.0
      %v3507 = vmax.f32 %v3029, 0.0
      %v3508 = vmax.f32 %v3032, 0.0
      %v3509 = vmax.f32 %v3037, 0.0
      %v3510 = vmax.f32 %v3040, 0.0
      %v3511 = vmax.f32 %v3045, 0.0
      %v3512 = vmax.f32 %v3048, 0.0
      %v3513 = vmax.f32 %v3053, 0.0
      %v3514 = vmax.f32 %v3056, 0.0
      %v3515 = vmax.f32 %v3061, 0.0
      %v3516 = vmax.f32 %v3064, 0.0
      %v3517 = vmax.f32 %v3069, 0.0
      %v3518 = vmax.f32 %v3072, 0.0
      %v3519 = vmax.f32 %v3077, 0.0
      %v3520 = vmax.f32 %v3080, 0.0
      %v3521 = vmax.f32 %v3085, 0.0
      %v3522 = vmax.f32 %v3088, 0.0
      %v3523 = vmax.f32 %v3093, 0.0
      %v3524 = vmax.f32 %v3096, 0.0
      %v3525 = vmax.f32 %v3101, 0.0
      %v3526 = vmax.f32 %v3104, 0.0
      %v3527 = vmax.f32 %v3109, 0.0
      %v3528 = vmax.f32 %v3112, 0.0
      %v3529 = vmax.f32 %v3117, 0.0
      %v3530 = vmax.f32 %v3120, 0.0
      %v3531 = vmax.f32 %v3125, 0.0
      %v3532 = vmax.f32 %v3128, 0.0
      %v3533 = vmax.f32 %v3133, 0.0
      %v3534 = vmax.f32 %v3136, 0.0
      %v3535 = vmax.f32 %v3141, 0.0
      %v3536 = vmax.f32 %v3144, 0.0
      %v3537 = vmax.f32 %v3149, 0.0
      %v3538 = vmax.f32 %v3152, 0.0
      %v3539 = vmax.f32 %v3157, 0.0
      %v3540 = vmax.f32 %v3160, 0.0
      %v3541 = vmax.f32 %v3165, 0.0
      %v3542 = vmax.f32 %v3168, 0.0
      %v3543 = vmax.f32 %v3173, 0.0
      %v3544 = vmax.f32 %v3176, 0.0
      %v3545 = vmax.f32 %v3181, 0.0
      %v3546 = vmax.f32 %v3184, 0.0
      %v3547 = vmax.f32 %v3189, 0.0
      %v3548 = vmax.f32 %v3192, 0.0
      %v3549 = vmax.f32 %v3197, 0.0
      %v3550 = vmax.f32 %v3200, 0.0
      %v3551 = vmax.f32 %v3205, 0.0
      %v3552 = vmax.f32 %v3208, 0.0
      %v3553 = vmax.f32 %v3213, 0.0
      %v3554 = vmax.f32 %v3216, 0.0
      %v3555 = vmax.f32 %v3221, 0.0
      %v3556 = vmax.f32 %v3224, 0.0
      %v3557 = vmax.f32 %v3229, 0.0
      %v3558 = vmax.f32 %v3232, 0.0
      %v3559 = vpack.c.bf16 %v3236, %v3235
      %v3560 = vpack.c.bf16 %v3238, %v3237
      %v3561 = vpack.c.bf16 %v3240, %v3239
      %v3562 = vpack.c.bf16 %v3242, %v3241
      %v3563 = vpack.c.bf16 %v3244, %v3243
      %v3564 = vpack.c.bf16 %v3246, %v3245
      %v3565 = vpack.c.bf16 %v3248, %v3247
      %v3566 = vpack.c.bf16 %v3250, %v3249
      %v3567 = vpack.c.bf16 %v3252, %v3251
      %v3568 = vpack.c.bf16 %v3254, %v3253
      %v3569 = vpack.c.bf16 %v3256, %v3255
      %v3570 = vpack.c.bf16 %v3258, %v3257
      %v3571 = vpack.c.bf16 %v3260, %v3259
      %v3572 = vpack.c.bf16 %v3262, %v3261
      %v3573 = vpack.c.bf16 %v3264, %v3263
      %v3574 = vpack.c.bf16 %v3266, %v3265
      %v3575 = vpack.c.bf16 %v3268, %v3267
      %v3576 = vpack.c.bf16 %v3270, %v3269
      %v3577 = vpack.c.bf16 %v3272, %v3271
      %v3578 = vpack.c.bf16 %v3274, %v3273
      %v3579 = vpack.c.bf16 %v3276, %v3275
      %v3580 = vpack.c.bf16 %v3278, %v3277
      %v3581 = vpack.c.bf16 %v3280, %v3279
      %v3582 = vpack.c.bf16 %v3282, %v3281
      %v3583 = vpack.c.bf16 %v3284, %v3283
      %v3584 = vpack.c.bf16 %v3286, %v3285
      %v3585 = vpack.c.bf16 %v3288, %v3287
      %v3586 = vpack.c.bf16 %v3290, %v3289
      %v3587 = vpack.c.bf16 %v3292, %v3291
      %v3588 = vpack.c.bf16 %v3294, %v3293
      %v3589 = vpack.c.bf16 %v3296, %v3295
      %v3590 = vpack.c.bf16 %v3298, %v3297
      %v3591 = vpack.c.bf16 %v3300, %v3299
      %v3592 = vpack.c.bf16 %v3302, %v3301
      %v3593 = vpack.c.bf16 %v3304, %v3303
      %v3594 = vpack.c.bf16 %v3306, %v3305
      %v3595 = vpack.c.bf16 %v3308, %v3307
      %v3596 = vpack.c.bf16 %v3310, %v3309
      %v3597 = vpack.c.bf16 %v3312, %v3311
      %v3598 = vpack.c.bf16 %v3314, %v3313
      %v3599 = vpack.c.bf16 %v3316, %v3315
      %v3600 = vpack.c.bf16 %v3318, %v3317
      %v3601 = vpack.c.bf16 %v3320, %v3319
      %v3602 = vpack.c.bf16 %v3322, %v3321
      %v3603 = vpack.c.bf16 %v3324, %v3323
      %v3604 = vpack.c.bf16 %v3326, %v3325
      %v3605 = vpack.c.bf16 %v3328, %v3327
      %v3606 = vpack.c.bf16 %v3330, %v3329
      %v3607 = vpack.c.bf16 %v3332, %v3331
      %v3608 = vpack.c.bf16 %v3334, %v3333
      %v3609 = vpack.c.bf16 %v3336, %v3335
      %v3610 = vpack.c.bf16 %v3338, %v3337
      %v3611 = vpack.c.bf16 %v3340, %v3339
      %v3612 = vpack.c.bf16 %v3342, %v3341
      %v3613 = vpack.c.bf16 %v3344, %v3343
      %v3614 = vpack.c.bf16 %v3346, %v3345
      %v3615 = vpack.c.bf16 %v3348, %v3347
      %v3616 = vpack.c.bf16 %v3350, %v3349
      %v3617 = vpack.c.bf16 %v3352, %v3351
      %v3618 = vpack.c.bf16 %v3354, %v3353
      %v3619 = vpack.c.bf16 %v3356, %v3355
      %v3620 = vpack.c.bf16 %v3358, %v3357
      %v3621 = vpack.c.bf16 %v3360, %v3359
      %v3622 = vpack.c.bf16 %v3362, %v3361
      %v3623 = vpack.c.bf16 %v3364, %v3363
      %v3624 = vpack.c.bf16 %v3366, %v3365
      %v3625 = vpack.c.bf16 %v3368, %v3367
      %v3626 = vpack.c.bf16 %v3370, %v3369
      %v3627 = vpack.c.bf16 %v3372, %v3371
      %v3628 = vpack.c.bf16 %v3374, %v3373
      %v3629 = vpack.c.bf16 %v3376, %v3375
      %v3630 = vpack.c.bf16 %v3378, %v3377
      %v3631 = vpack.c.bf16 %v3380, %v3379
      %v3632 = vpack.c.bf16 %v3382, %v3381
      %v3633 = vpack.c.bf16 %v3384, %v3383
      %v3634 = vpack.c.bf16 %v3386, %v3385
      %v3635 = vpack.c.bf16 %v3388, %v3387
      %v3636 = vpack.c.bf16 %v3390, %v3389
      %v3637 = vpack.c.bf16 %v3392, %v3391
      %v3638 = vpack.c.bf16 %v3394, %v3393
      %v3639 = vpack.c.bf16 %v3396, %v3395
      %v3640 = vpack.c.bf16 %v3398, %v3397
      %v3641 = vpack.c.bf16 %v3400, %v3399
      %v3642 = vpack.c.bf16 %v3402, %v3401
      %v3643 = vpack.c.bf16 %v3404, %v3403
      %v3644 = vpack.c.bf16 %v3406, %v3405
      %v3645 = vpack.c.bf16 %v3408, %v3407
      %v3646 = vpack.c.bf16 %v3410, %v3409
      %v3647 = vpack.c.bf16 %v3412, %v3411
      %v3648 = vpack.c.bf16 %v3414, %v3413
      %v3649 = vpack.c.bf16 %v3416, %v3415
      %v3650 = vpack.c.bf16 %v3418, %v3417
      %v3651 = vpack.c.bf16 %v3420, %v3419
      %v3652 = vpack.c.bf16 %v3422, %v3421
      %v3653 = vpack.c.bf16 %v3424, %v3423
      %v3654 = vpack.c.bf16 %v3426, %v3425
      %v3655 = vpack.c.bf16 %v3428, %v3427
      %v3656 = vpack.c.bf16 %v3430, %v3429
      %v3657 = vpack.c.bf16 %v3432, %v3431
      %v3658 = vpack.c.bf16 %v3434, %v3433
      %v3659 = vpack.c.bf16 %v3436, %v3435
      %v3660 = vpack.c.bf16 %v3438, %v3437
      %v3661 = vpack.c.bf16 %v3440, %v3439
      %v3662 = vpack.c.bf16 %v3442, %v3441
      %v3663 = vpack.c.bf16 %v3444, %v3443
      %v3664 = vpack.c.bf16 %v3446, %v3445
      %v3665 = vpack.c.bf16 %v3448, %v3447
      %v3666 = vpack.c.bf16 %v3450, %v3449
      %v3667 = vpack.c.bf16 %v3452, %v3451
      %v3668 = vpack.c.bf16 %v3454, %v3453
      %v3669 = vpack.c.bf16 %v3456, %v3455
      %v3670 = vpack.c.bf16 %v3458, %v3457
      %v3671 = vpack.c.bf16 %v3460, %v3459
      %v3672 = vpack.c.bf16 %v3462, %v3461
      %v3673 = vpack.c.bf16 %v3464, %v3463
      %v3674 = vpack.c.bf16 %v3466, %v3465
      %v3675 = vpack.c.bf16 %v3468, %v3467
      %v3676 = vpack.c.bf16 %v3470, %v3469
      %v3677 = vpack.c.bf16 %v3472, %v3471
      %v3678 = vpack.c.bf16 %v3474, %v3473
      %v3679 = vpack.c.bf16 %v3476, %v3475
      %v3680 = vpack.c.bf16 %v3478, %v3477
      %v3681 = vpack.c.bf16 %v3480, %v3479
      %v3682 = vpack.c.bf16 %v3482, %v3481
      %v3683 = vpack.c.bf16 %v3484, %v3483
      %v3684 = vpack.c.bf16 %v3486, %v3485
      %v3685 = vpack.c.bf16 %v3488, %v3487
      %v3686 = vpack.c.bf16 %v3490, %v3489
      %v3687 = vpack.c.bf16 %v3492, %v3491
      %v3688 = vpack.c.bf16 %v3494, %v3493
      %v3689 = vpack.c.bf16 %v3496, %v3495
      %v3690 = vpack.c.bf16 %v3498, %v3497
      %v3691 = vpack.c.bf16 %v3500, %v3499
      %v3692 = vpack.c.bf16 %v3502, %v3501
      %v3693 = vpack.c.bf16 %v3504, %v3503
      %v3694 = vpack.c.bf16 %v3506, %v3505
      %v3695 = vpack.c.bf16 %v3508, %v3507
      %v3696 = vpack.c.bf16 %v3510, %v3509
      %v3697 = vpack.c.bf16 %v3512, %v3511
      %v3698 = vpack.c.bf16 %v3514, %v3513
      %v3699 = vpack.c.bf16 %v3516, %v3515
      %v3700 = vpack.c.bf16 %v3518, %v3517
      %v3701 = vpack.c.bf16 %v3520, %v3519
      %v3702 = vpack.c.bf16 %v3522, %v3521
      %v3703 = vpack.c.bf16 %v3524, %v3523
      %v3704 = vpack.c.bf16 %v3526, %v3525
      %v3705 = vpack.c.bf16 %v3528, %v3527
      %v3706 = vpack.c.bf16 %v3530, %v3529
      %v3707 = vpack.c.bf16 %v3532, %v3531
      %v3708 = vpack.c.bf16 %v3534, %v3533
      %v3709 = vpack.c.bf16 %v3536, %v3535
      %v3710 = vpack.c.bf16 %v3538, %v3537
      %v3711 = vpack.c.bf16 %v3540, %v3539
      %v3712 = vpack.c.bf16 %v3542, %v3541
      %v3713 = vpack.c.bf16 %v3544, %v3543
      %v3714 = vpack.c.bf16 %v3546, %v3545
      %v3715 = vpack.c.bf16 %v3548, %v3547
      %v3716 = vpack.c.bf16 %v3550, %v3549
      %v3717 = vpack.c.bf16 %v3552, %v3551
      %v3718 = vpack.c.bf16 %v3554, %v3553
      %v3719 = vpack.c.bf16 %v3556, %v3555
      %v3720 = vpack.c.bf16 %v3558, %v3557
      %v3721 = vmax.bf16 %v3559, %v3577
      %v3722 = vmax.bf16 %v3560, %v3578
      %v3723 = vmax.bf16 %v3561, %v3579
      %v3724 = vmax.bf16 %v3562, %v3580
      %v3725 = vmax.bf16 %v3563, %v3581
      %v3726 = vmax.bf16 %v3564, %v3582
      %v3727 = vmax.bf16 %v3565, %v3583
      %v3728 = vmax.bf16 %v3566, %v3584
      %v3729 = vmax.bf16 %v3567, %v3585
      %v3730 = vmax.bf16 %v3568, %v3586
      %v3731 = vmax.bf16 %v3569, %v3587
      %v3732 = vmax.bf16 %v3570, %v3588
      %v3733 = vmax.bf16 %v3571, %v3589
      %v3734 = vmax.bf16 %v3572, %v3590
      %v3735 = vmax.bf16 %v3573, %v3591
      %v3736 = vmax.bf16 %v3574, %v3592
      %v3737 = vmax.bf16 %v3575, %v3593
      %v3738 = vmax.bf16 %v3576, %v3594
      %v3739 = vmax.bf16 %v3721, %v3595
      %v3740 = vmax.bf16 %v3722, %v3596
      %v3741 = vmax.bf16 %v3723, %v3597
      %v3742 = vmax.bf16 %v3724, %v3598
      %v3743 = vmax.bf16 %v3725, %v3599
      %v3744 = vmax.bf16 %v3726, %v3600
      %v3745 = vmax.bf16 %v3727, %v3601
      %v3746 = vmax.bf16 %v3728, %v3602
      %v3747 = vmax.bf16 %v3729, %v3603
      %v3748 = vmax.bf16 %v3730, %v3604
      %v3749 = vmax.bf16 %v3731, %v3605
      %v3750 = vmax.bf16 %v3732, %v3606
      %v3751 = vmax.bf16 %v3733, %v3607
      %v3752 = vmax.bf16 %v3734, %v3608
      %v3753 = vmax.bf16 %v3735, %v3609
      %v3754 = vmax.bf16 %v3736, %v3610
      %v3755 = vmax.bf16 %v3737, %v3611
      %v3756 = vmax.bf16 %v3738, %v3612
      %v3757 = vmax.bf16 %v3739, %v3613
      %v3758 = vmax.bf16 %v3740, %v3614
      %v3759 = vmax.bf16 %v3741, %v3615
      %v3760 = vmax.bf16 %v3742, %v3616
      %v3761 = vmax.bf16 %v3743, %v3617
      %v3762 = vmax.bf16 %v3744, %v3618
      %v3763 = vmax.bf16 %v3745, %v3619
      %v3764 = vmax.bf16 %v3746, %v3620
      %v3765 = vmax.bf16 %v3747, %v3621
      %v3766 = vmax.bf16 %v3748, %v3622
      %v3767 = vmax.bf16 %v3749, %v3623
      %v3768 = vmax.bf16 %v3750, %v3624
      %v3769 = vmax.bf16 %v3751, %v3625
      %v3770 = vmax.bf16 %v3752, %v3626
      %v3771 = vmax.bf16 %v3753, %v3627
      %v3772 = vmax.bf16 %v3754, %v3628
      %v3773 = vmax.bf16 %v3755, %v3629
      %v3774 = vmax.bf16 %v3756, %v3630
      %v3775 = vmax.bf16 %v3757, %v3631
      %v3776 = vmax.bf16 %v3758, %v3632
      %v3777 = vmax.bf16 %v3759, %v3633
      %v3778 = vmax.bf16 %v3760, %v3634
      %v3779 = vmax.bf16 %v3761, %v3635
      %v3780 = vmax.bf16 %v3762, %v3636
      %v3781 = vmax.bf16 %v3763, %v3637
      %v3782 = vmax.bf16 %v3764, %v3638
      %v3783 = vmax.bf16 %v3765, %v3639
      %v3784 = vmax.bf16 %v3766, %v3640
      %v3785 = vmax.bf16 %v3767, %v3641
      %v3786 = vmax.bf16 %v3768, %v3642
      %v3787 = vmax.bf16 %v3769, %v3643
      %v3788 = vmax.bf16 %v3770, %v3644
      %v3789 = vmax.bf16 %v3771, %v3645
      %v3790 = vmax.bf16 %v3772, %v3646
      %v3791 = vmax.bf16 %v3773, %v3647
      %v3792 = vmax.bf16 %v3774, %v3648
      %v3793 = vmax.bf16 %v3775, %v3649
      %v3794 = vmax.bf16 %v3776, %v3650
      %v3795 = vmax.bf16 %v3777, %v3651
      %v3796 = vmax.bf16 %v3778, %v3652
      %v3797 = vmax.bf16 %v3779, %v3653
      %v3798 = vmax.bf16 %v3780, %v3654
      %v3799 = vmax.bf16 %v3781, %v3655
      %v3800 = vmax.bf16 %v3782, %v3656
      %v3801 = vmax.bf16 %v3783, %v3657
      %v3802 = vmax.bf16 %v3784, %v3658
      %v3803 = vmax.bf16 %v3785, %v3659
      %v3804 = vmax.bf16 %v3786, %v3660
      %v3805 = vmax.bf16 %v3787, %v3661
      %v3806 = vmax.bf16 %v3788, %v3662
      %v3807 = vmax.bf16 %v3789, %v3663
      %v3808 = vmax.bf16 %v3790, %v3664
      %v3809 = vmax.bf16 %v3791, %v3665
      %v3810 = vmax.bf16 %v3792, %v3666
      %v3811 = vmax.bf16 %v3793, %v3667
      %v3812 = vmax.bf16 %v3794, %v3668
      %v3813 = vmax.bf16 %v3795, %v3669
      %v3814 = vmax.bf16 %v3796, %v3670
      %v3815 = vmax.bf16 %v3797, %v3671
      %v3816 = vmax.bf16 %v3798, %v3672
      %v3817 = vmax.bf16 %v3799, %v3673
      %v3818 = vmax.bf16 %v3800, %v3674
      %v3819 = vmax.bf16 %v3801, %v3675
      %v3820 = vmax.bf16 %v3802, %v3676
      %v3821 = vmax.bf16 %v3803, %v3677
      %v3822 = vmax.bf16 %v3804, %v3678
      %v3823 = vmax.bf16 %v3805, %v3679
      %v3824 = vmax.bf16 %v3806, %v3680
      %v3825 = vmax.bf16 %v3807, %v3681
      %v3826 = vmax.bf16 %v3808, %v3682
      %v3827 = vmax.bf16 %v3809, %v3683
      %v3828 = vmax.bf16 %v3810, %v3684
      %v3829 = vmax.bf16 %v3811, %v3685
      %v3830 = vmax.bf16 %v3812, %v3686
      %v3831 = vmax.bf16 %v3813, %v3687
      %v3832 = vmax.bf16 %v3814, %v3688
      %v3833 = vmax.bf16 %v3815, %v3689
      %v3834 = vmax.bf16 %v3816, %v3690
      %v3835 = vmax.bf16 %v3817, %v3691
      %v3836 = vmax.bf16 %v3818, %v3692
      %v3837 = vmax.bf16 %v3819, %v3693
      %v3838 = vmax.bf16 %v3820, %v3694
      %v3839 = vmax.bf16 %v3821, %v3695
      %v3840 = vmax.bf16 %v3822, %v3696
      %v3841 = vmax.bf16 %v3823, %v3697
      %v3842 = vmax.bf16 %v3824, %v3698
      %v3843 = vmax.bf16 %v3825, %v3699
      %v3844 = vmax.bf16 %v3826, %v3700
      %v3845 = vmax.bf16 %v3827, %v3701
      %v3846 = vmax.bf16 %v3828, %v3702
      %v3847 = vmax.bf16 %v3829, %v3703
      %v3848 = vmax.bf16 %v3830, %v3704
      %v3849 = vmax.bf16 %v3831, %v3705
      %v3850 = vmax.bf16 %v3832, %v3706
      %v3851 = vmax.bf16 %v3833, %v3707
      %v3852 = vmax.bf16 %v3834, %v3708
      %v3853 = vmax.bf16 %v3835, %v3709
      %v3854 = vmax.bf16 %v3836, %v3710
      %v3855 = vmax.bf16 %v3837, %v3711
      %v3856 = vmax.bf16 %v3838, %v3712
      %v3857 = vmax.bf16 %v3839, %v3713
      %v3858 = vmax.bf16 %v3840, %v3714
      %v3859 = vmax.bf16 %v3841, %v3715
      %v3860 = vmax.bf16 %v3842, %v3716
      %v3861 = vmax.bf16 %v3843, %v3717
      %v3862 = vmax.bf16 %v3844, %v3718
      %v3863 = vmax.bf16 %v3845, %v3719
      %v3864 = vmax.bf16 %v3846, %v3720
      %3865 = vst [vmem:[#allocation2] sm:$0xff] %v3847
      %3866 = vst [vmem:[#allocation2 + $0x48] sm:$0xff] %v3848
      %3867 = vst [vmem:[#allocation2 + $0x8] sm:$0xff] %v3849
      %3868 = vst [vmem:[#allocation2 + $0x50] sm:$0xff] %v3850
      %3869 = vst [vmem:[#allocation2 + $0x10] sm:$0xff] %v3851
      %3870 = vst [vmem:[#allocation2 + $0x58] sm:$0xff] %v3852
      %3871 = vst [vmem:[#allocation2 + $0x18] sm:$0xff] %v3853
      %3872 = vst [vmem:[#allocation2 + $0x60] sm:$0xff] %v3854
      %3873 = vst [vmem:[#allocation2 + $0x20] sm:$0xff] %v3855
      %3874 = vst [vmem:[#allocation2 + $0x68] sm:$0xff] %v3856
      %3875 = vst [vmem:[#allocation2 + $0x28] sm:$0xff] %v3857
      %3876 = vst [vmem:[#allocation2 + $0x70] sm:$0xff] %v3858
      %3877 = vst [vmem:[#allocation2 + $0x30] sm:$0xff] %v3859
      %3878 = vst [vmem:[#allocation2 + $0x78] sm:$0xff] %v3860
      %3879 = vst [vmem:[#allocation2 + $0x38] sm:$0xff] %v3861
      %3880 = vst [vmem:[#allocation2 + $0x80] sm:$0xff] %v3862
      %3881 = vst [vmem:[#allocation2 + $0x40] sm:$0xff] %v3863
      %3882 = vst [vmem:[#allocation2 + $0x88] sm:$0xff] %v3864
      %v3883 = vld [vmem:[#allocation2] sm:$0xff]
      %v3884 = vld [vmem:[#allocation2 + $0x8] sm:$0xff]
      %v3885 = vld [vmem:[#allocation2 + $0x10] sm:$0xff]
      %v3886 = vld [vmem:[#allocation2 + $0x18] sm:$0xff]
      %v3887 = vld [vmem:[#allocation2 + $0x20] sm:$0xff]
      %v3888 = vld [vmem:[#allocation2 + $0x28] sm:$0xff]
      %v3889 = vld [vmem:[#allocation2 + $0x30] sm:$0xff]
      %v3890 = vld [vmem:[#allocation2 + $0x38] sm:$0xff]
      %v3891 = vld [vmem:[#allocation2 + $0x40] sm:$0xff]
      %v3892 = vld [vmem:[#allocation2 + $0x48] sm:$0xff]
      %v3893 = vld [vmem:[#allocation2 + $0x50] sm:$0xff]
      %v3894 = vld [vmem:[#allocation2 + $0x58] sm:$0xff]
      %v3895 = vld [vmem:[#allocation2 + $0x60] sm:$0xff]
      %v3896 = vld [vmem:[#allocation2 + $0x68] sm:$0xff]
      %v3897 = vld [vmem:[#allocation2 + $0x70] sm:$0xff]
      %v3898 = vld [vmem:[#allocation2 + $0x78] sm:$0xff]
      %v3899 = vld [vmem:[#allocation2 + $0x80] sm:$0xff]
      %v3900 = vld [vmem:[#allocation2 + $0x88] sm:$0xff]
      %v3901 = vld [vmem:[%s505] sm:$0xf]
      %v3902 = vld [vmem:[%s505 + $0x4] sm:$0xf]
      %v3903 = vld [vmem:[%s505 + $0x8] sm:$0xf]
      %v3904 = vld [vmem:[%s505 + $0xc] sm:$0xf]
      %v3905 = vld [vmem:[%s505 + $0x10] sm:$0xf]
      %v3906 = vld [vmem:[%s505 + $0x14] sm:$0xf]
      %v3907 = vld [vmem:[%s505 + $0x18] sm:$0xf]
      %v3908 = vld [vmem:[%s505 + $0x1c] sm:$0xf]
      %v3909 = vld [vmem:[%s505 + $0x20] sm:$0xf]
      %v3910 = vld [vmem:[%s505 + $0x24] sm:$0xf]
      %v3911 = vld [vmem:[%s505 + $0x28] sm:$0xf]
      %v3912 = vld [vmem:[%s505 + $0x2c] sm:$0xf]
      %v3913 = vld [vmem:[%s505 + $0x30] sm:$0xf]
      %v3914 = vld [vmem:[%s505 + $0x34] sm:$0xf]
      %v3915 = vld [vmem:[%s505 + $0x38] sm:$0xf]
      %v3916 = vld [vmem:[%s505 + $0x3c] sm:$0xf]
      %v3917 = vld [vmem:[%s505 + $0x40] sm:$0xf]
      %v3918 = vld [vmem:[%s505 + $0x44] sm:$0xf]
      %v3919 = vld [vmem:[%s505 + $0x48] sm:$0xf]
      %v3920 = vld [vmem:[%s505 + $0x4c] sm:$0xf]
      %v3921 = vld [vmem:[%s505 + $0x50] sm:$0xf]
      %v3922 = vld [vmem:[%s505 + $0x54] sm:$0xf]
      %v3923 = vld [vmem:[%s505 + $0x58] sm:$0xf]
      %v3924 = vld [vmem:[%s505 + $0x5c] sm:$0xf]
      %v3925 = vld [vmem:[%s505 + $0x60] sm:$0xf]
      %v3926 = vld [vmem:[%s505 + $0x64] sm:$0xf]
      %v3927 = vld [vmem:[%s505 + $0x68] sm:$0xf]
      %v3928 = vld [vmem:[%s505 + $0x6c] sm:$0xf]
      %v3929 = vld [vmem:[%s505 + $0x70] sm:$0xf]
      %v3930 = vld [vmem:[%s505 + $0x74] sm:$0xf]
      %v3931 = vld [vmem:[%s505 + $0x78] sm:$0xf]
      %v3932 = vld [vmem:[%s505 + $0x7c] sm:$0xf]
      %v3933 = vld [vmem:[%s505 + $0x80] sm:$0xf]
      %v3934 = vld [vmem:[%s505 + $0x84] sm:$0xf]
      %v3935 = vld [vmem:[%s505 + $0x88] sm:$0xf]
      %v3936 = vld [vmem:[%s505 + $0x8c] sm:$0xf]
      %v3937 = vld [vmem:[%s505 + $0x90] sm:$0xf]
      %v3938 = vld [vmem:[%s505 + $0x94] sm:$0xf]
      %v3939 = vld [vmem:[%s505 + $0x98] sm:$0xf]
      %v3940 = vld [vmem:[%s505 + $0x9c] sm:$0xf]
      %v3941 = vld [vmem:[%s505 + $0xa0] sm:$0xf]
      %v3942 = vld [vmem:[%s505 + $0xa4] sm:$0xf]
      %v3943 = vld [vmem:[%s505 + $0xa8] sm:$0xf]
      %v3944 = vld [vmem:[%s505 + $0xac] sm:$0xf]
      %v3945 = vld [vmem:[%s505 + $0xb0] sm:$0xf]
      %v3946 = vld [vmem:[%s505 + $0xb4] sm:$0xf]
      %v3947 = vld [vmem:[%s505 + $0xb8] sm:$0xf]
      %v3948 = vld [vmem:[%s505 + $0xbc] sm:$0xf]
      %v3949 = vld [vmem:[%s505 + $0xc0] sm:$0xf]
      %v3950 = vld [vmem:[%s505 + $0xc4] sm:$0xf]
      %v3951 = vld [vmem:[%s505 + $0xc8] sm:$0xf]
      %v3952 = vld [vmem:[%s505 + $0xcc] sm:$0xf]
      %v3953 = vld [vmem:[%s505 + $0xd0] sm:$0xf]
      %v3954 = vld [vmem:[%s505 + $0xd4] sm:$0xf]
      %v3955 = vld [vmem:[%s505 + $0xd8] sm:$0xf]
      %v3956 = vld [vmem:[%s505 + $0xdc] sm:$0xf]
      %v3957 = vld [vmem:[%s505 + $0xe0] sm:$0xf]
      %v3958 = vld [vmem:[%s505 + $0xe4] sm:$0xf]
      %v3959 = vld [vmem:[%s505 + $0xe8] sm:$0xf]
      %v3960 = vld [vmem:[%s505 + $0xec] sm:$0xf]
      %v3961 = vld [vmem:[%s505 + $0xf0] sm:$0xf]
      %v3962 = vld [vmem:[%s505 + $0xf4] sm:$0xf]
      %v3963 = vld [vmem:[%s505 + $0xf8] sm:$0xf]
      %v3964 = vld [vmem:[%s505 + $0xfc] sm:$0xf]
      %v3965 = vld [vmem:[%s505 + $0x100] sm:$0xf]
      %v3966 = vld [vmem:[%s505 + $0x104] sm:$0xf]
      %v3967 = vld [vmem:[%s505 + $0x108] sm:$0xf]
      %v3968 = vld [vmem:[%s505 + $0x10c] sm:$0xf]
      %v3969 = vld [vmem:[%s505 + $0x110] sm:$0xf]
      %v3970 = vld [vmem:[%s505 + $0x114] sm:$0xf]
      %v3971 = vld [vmem:[%s505 + $0x118] sm:$0xf]
      %v3972 = vld [vmem:[%s505 + $0x11c] sm:$0xf]
      %v3973 = vld [vmem:[%s505 + $0x120] sm:$0xf]
      %v3974 = vld [vmem:[%s505 + $0x124] sm:$0xf]
      %v3975 = vld [vmem:[%s505 + $0x128] sm:$0xf]
      %v3976 = vld [vmem:[%s505 + $0x12c] sm:$0xf]
      %v3977 = vld [vmem:[%s505 + $0x130] sm:$0xf]
      %v3978 = vld [vmem:[%s505 + $0x134] sm:$0xf]
      %v3979 = vld [vmem:[%s505 + $0x138] sm:$0xf]
      %v3980 = vld [vmem:[%s505 + $0x13c] sm:$0xf]
      %v3981 = vld [vmem:[%s505 + $0x140] sm:$0xf]
      %v3982 = vld [vmem:[%s505 + $0x144] sm:$0xf]
      %v3983 = vld [vmem:[%s505 + $0x148] sm:$0xf]
      %v3984 = vld [vmem:[%s505 + $0x14c] sm:$0xf]
      %v3985 = vld [vmem:[%s505 + $0x150] sm:$0xf]
      %v3986 = vld [vmem:[%s505 + $0x154] sm:$0xf]
      %v3987 = vld [vmem:[%s505 + $0x158] sm:$0xf]
      %v3988 = vld [vmem:[%s505 + $0x15c] sm:$0xf]
      %v3989 = vld [vmem:[%s505 + $0x160] sm:$0xf]
      %v3990 = vld [vmem:[%s505 + $0x164] sm:$0xf]
      %v3991 = vld [vmem:[%s505 + $0x168] sm:$0xf]
      %v3992 = vld [vmem:[%s505 + $0x16c] sm:$0xf]
      %v3993 = vld [vmem:[%s505 + $0x170] sm:$0xf]
      %v3994 = vld [vmem:[%s505 + $0x174] sm:$0xf]
      %v3995 = vld [vmem:[%s505 + $0x178] sm:$0xf]
      %v3996 = vld [vmem:[%s505 + $0x17c] sm:$0xf]
      %v3997 = vld [vmem:[%s505 + $0x180] sm:$0xf]
      %v3998 = vld [vmem:[%s505 + $0x184] sm:$0xf]
      %v3999 = vld [vmem:[%s505 + $0x188] sm:$0xf]
      %v4000 = vld [vmem:[%s505 + $0x18c] sm:$0xf]
      %v4001 = vld [vmem:[%s505 + $0x190] sm:$0xf]
      %v4002 = vld [vmem:[%s505 + $0x194] sm:$0xf]
      %v4003 = vld [vmem:[%s505 + $0x198] sm:$0xf]
      %v4004 = vld [vmem:[%s505 + $0x19c] sm:$0xf]
      %v4005 = vld [vmem:[%s505 + $0x1a0] sm:$0xf]
      %v4006 = vld [vmem:[%s505 + $0x1a4] sm:$0xf]
      %v4007 = vld [vmem:[%s505 + $0x1a8] sm:$0xf]
      %v4008 = vld [vmem:[%s505 + $0x1ac] sm:$0xf]
      %v4009 = vld [vmem:[%s505 + $0x1b0] sm:$0xf]
      %v4010 = vld [vmem:[%s505 + $0x1b4] sm:$0xf]
      %v4011 = vld [vmem:[%s505 + $0x1b8] sm:$0xf]
      %v4012 = vld [vmem:[%s505 + $0x1bc] sm:$0xf]
      %v4013 = vld [vmem:[%s505 + $0x1c0] sm:$0xf]
      %v4014 = vld [vmem:[%s505 + $0x1c4] sm:$0xf]
      %v4015 = vld [vmem:[%s505 + $0x1c8] sm:$0xf]
      %v4016 = vld [vmem:[%s505 + $0x1cc] sm:$0xf]
      %v4017 = vld [vmem:[%s505 + $0x1d0] sm:$0xf]
      %v4018 = vld [vmem:[%s505 + $0x1d4] sm:$0xf]
      %v4019 = vld [vmem:[%s505 + $0x1d8] sm:$0xf]
      %v4020 = vld [vmem:[%s505 + $0x1dc] sm:$0xf]
      %v4021 = vld [vmem:[%s505 + $0x1e0] sm:$0xf]
      %v4022 = vld [vmem:[%s505 + $0x1e4] sm:$0xf]
      %v4023 = vld [vmem:[%s505 + $0x1e8] sm:$0xf]
      %v4024 = vld [vmem:[%s505 + $0x1ec] sm:$0xf]
      %v4025 = vld [vmem:[%s505 + $0x1f0] sm:$0xf]
      %v4026 = vld [vmem:[%s505 + $0x1f4] sm:$0xf]
      %v4027 = vld [vmem:[%s505 + $0x1f8] sm:$0xf]
      %v4028 = vld [vmem:[%s505 + $0x1fc] sm:$0xf]
      %v4029 = vld [vmem:[%s505 + $0x200] sm:$0xf]
      %v4030 = vld [vmem:[%s505 + $0x204] sm:$0xf]
      %v4031 = vld [vmem:[%s505 + $0x208] sm:$0xf]
      %v4032 = vld [vmem:[%s505 + $0x20c] sm:$0xf]
      %v4033 = vld [vmem:[%s505 + $0x210] sm:$0xf]
      %v4034 = vld [vmem:[%s505 + $0x214] sm:$0xf]
      %v4035 = vld [vmem:[%s505 + $0x218] sm:$0xf]
      %v4036 = vld [vmem:[%s505 + $0x21c] sm:$0xf]
      %v4037 = vld [vmem:[%s505 + $0x220] sm:$0xf]
      %v4038 = vld [vmem:[%s505 + $0x224] sm:$0xf]
      %v4039 = vld [vmem:[%s505 + $0x228] sm:$0xf]
      %v4040 = vld [vmem:[%s505 + $0x22c] sm:$0xf]
      %v4041 = vld [vmem:[%s505 + $0x230] sm:$0xf]
      %v4042 = vld [vmem:[%s505 + $0x234] sm:$0xf]
      %v4043 = vld [vmem:[%s505 + $0x238] sm:$0xf]
      %v4044 = vld [vmem:[%s505 + $0x23c] sm:$0xf]
      %v4045 = vld [vmem:[%s508] sm:$0x1]
      %v4047 = vlaneseq
      %v4048 = vshrl.u32 %v4047, 7
      %v4049 = vsub.s32 0, %v4048
      %v4050 = vrot.slane %v4045, %v4049
      %v4196 = vunpack.c.l.b16 %v3901
      %v4197 = vunpack.c.l.b16 %v3902
      %v4198 = vunpack.c.l.b16 %v3903
      %v4199 = vunpack.c.l.b16 %v3904
      %v4200 = vunpack.c.l.b16 %v3905
      %v4201 = vunpack.c.l.b16 %v3906
      %v4202 = vunpack.c.l.b16 %v3907
      %v4203 = vunpack.c.l.b16 %v3908
      %v4204 = vunpack.c.l.b16 %v3909
      %v4205 = vunpack.c.l.b16 %v3910
      %v4206 = vunpack.c.l.b16 %v3911
      %v4207 = vunpack.c.l.b16 %v3912
      %v4208 = vunpack.c.l.b16 %v3913
      %v4209 = vunpack.c.l.b16 %v3914
      %v4210 = vunpack.c.l.b16 %v3915
      %v4211 = vunpack.c.l.b16 %v3916
      %v4212 = vunpack.c.l.b16 %v3917
      %v4213 = vunpack.c.l.b16 %v3918
      %v4214 = vunpack.c.l.b16 %v3919
      %v4215 = vunpack.c.l.b16 %v3920
      %v4216 = vunpack.c.l.b16 %v3921
      %v4217 = vunpack.c.l.b16 %v3922
      %v4218 = vunpack.c.l.b16 %v3923
      %v4219 = vunpack.c.l.b16 %v3924
      %v4220 = vunpack.c.l.b16 %v3925
      %v4221 = vunpack.c.l.b16 %v3926
      %v4222 = vunpack.c.l.b16 %v3927
      %v4223 = vunpack.c.l.b16 %v3928
      %v4224 = vunpack.c.l.b16 %v3929
      %v4225 = vunpack.c.l.b16 %v3930
      %v4226 = vunpack.c.l.b16 %v3931
      %v4227 = vunpack.c.l.b16 %v3932
      %v4228 = vunpack.c.l.b16 %v3933
      %v4229 = vunpack.c.l.b16 %v3934
      %v4230 = vunpack.c.l.b16 %v3935
      %v4231 = vunpack.c.l.b16 %v3936
      %v4232 = vunpack.c.l.b16 %v3937
      %v4233 = vunpack.c.l.b16 %v3938
      %v4234 = vunpack.c.l.b16 %v3939
      %v4235 = vunpack.c.l.b16 %v3940
      %v4236 = vunpack.c.l.b16 %v3941
      %v4237 = vunpack.c.l.b16 %v3942
      %v4238 = vunpack.c.l.b16 %v3943
      %v4239 = vunpack.c.l.b16 %v3944
      %v4240 = vunpack.c.l.b16 %v3945
      %v4241 = vunpack.c.l.b16 %v3946
      %v4242 = vunpack.c.l.b16 %v3947
      %v4243 = vunpack.c.l.b16 %v3948
      %v4244 = vunpack.c.l.b16 %v3949
      %v4245 = vunpack.c.l.b16 %v3950
      %v4246 = vunpack.c.l.b16 %v3951
      %v4247 = vunpack.c.l.b16 %v3952
      %v4248 = vunpack.c.l.b16 %v3953
      %v4249 = vunpack.c.l.b16 %v3954
      %v4250 = vunpack.c.l.b16 %v3955
      %v4251 = vunpack.c.l.b16 %v3956
      %v4252 = vunpack.c.l.b16 %v3957
      %v4253 = vunpack.c.l.b16 %v3958
      %v4254 = vunpack.c.l.b16 %v3959
      %v4255 = vunpack.c.l.b16 %v3960
      %v4256 = vunpack.c.l.b16 %v3961
      %v4257 = vunpack.c.l.b16 %v3962
      %v4258 = vunpack.c.l.b16 %v3963
      %v4259 = vunpack.c.l.b16 %v3964
      %v4260 = vunpack.c.l.b16 %v3965
      %v4261 = vunpack.c.l.b16 %v3966
      %v4262 = vunpack.c.l.b16 %v3967
      %v4263 = vunpack.c.l.b16 %v3968
      %v4264 = vunpack.c.l.b16 %v3969
      %v4265 = vunpack.c.l.b16 %v3970
      %v4266 = vunpack.c.l.b16 %v3971
      %v4267 = vunpack.c.l.b16 %v3972
      %v4268 = vunpack.c.l.b16 %v3973
      %v4269 = vunpack.c.l.b16 %v3974
      %v4270 = vunpack.c.l.b16 %v3975
      %v4271 = vunpack.c.l.b16 %v3976
      %v4272 = vunpack.c.l.b16 %v3977
      %v4273 = vunpack.c.l.b16 %v3978
      %v4274 = vunpack.c.l.b16 %v3979
      %v4275 = vunpack.c.l.b16 %v3980
      %v4276 = vunpack.c.l.b16 %v3981
      %v4277 = vunpack.c.l.b16 %v3982
      %v4278 = vunpack.c.l.b16 %v3983
      %v4279 = vunpack.c.l.b16 %v3984
      %v4280 = vunpack.c.l.b16 %v3985
      %v4281 = vunpack.c.l.b16 %v3986
      %v4282 = vunpack.c.l.b16 %v3987
      %v4283 = vunpack.c.l.b16 %v3988
      %v4284 = vunpack.c.l.b16 %v3989
      %v4285 = vunpack.c.l.b16 %v3990
      %v4286 = vunpack.c.l.b16 %v3991
      %v4287 = vunpack.c.l.b16 %v3992
      %v4288 = vunpack.c.l.b16 %v3993
      %v4289 = vunpack.c.l.b16 %v3994
      %v4290 = vunpack.c.l.b16 %v3995
      %v4291 = vunpack.c.l.b16 %v3996
      %v4292 = vunpack.c.l.b16 %v3997
      %v4293 = vunpack.c.l.b16 %v3998
      %v4294 = vunpack.c.l.b16 %v3999
      %v4295 = vunpack.c.l.b16 %v4000
      %v4296 = vunpack.c.l.b16 %v4001
      %v4297 = vunpack.c.l.b16 %v4002
      %v4298 = vunpack.c.l.b16 %v4003
      %v4299 = vunpack.c.l.b16 %v4004
      %v4300 = vunpack.c.l.b16 %v4005
      %v4301 = vunpack.c.l.b16 %v4006
      %v4302 = vunpack.c.l.b16 %v4007
      %v4303 = vunpack.c.l.b16 %v4008
      %v4304 = vunpack.c.l.b16 %v4009
      %v4305 = vunpack.c.l.b16 %v4010
      %v4306 = vunpack.c.l.b16 %v4011
      %v4307 = vunpack.c.l.b16 %v4012
      %v4308 = vunpack.c.l.b16 %v4013
      %v4309 = vunpack.c.l.b16 %v4014
      %v4310 = vunpack.c.l.b16 %v4015
      %v4311 = vunpack.c.l.b16 %v4016
      %v4312 = vunpack.c.l.b16 %v4017
      %v4313 = vunpack.c.l.b16 %v4018
      %v4314 = vunpack.c.l.b16 %v4019
      %v4315 = vunpack.c.l.b16 %v4020
      %v4316 = vunpack.c.l.b16 %v4021
      %v4317 = vunpack.c.l.b16 %v4022
      %v4318 = vunpack.c.l.b16 %v4023
      %v4319 = vunpack.c.l.b16 %v4024
      %v4320 = vunpack.c.l.b16 %v4025
      %v4321 = vunpack.c.l.b16 %v4026
      %v4322 = vunpack.c.l.b16 %v4027
      %v4323 = vunpack.c.l.b16 %v4028
      %v4324 = vunpack.c.l.b16 %v4029
      %v4325 = vunpack.c.l.b16 %v4030
      %v4326 = vunpack.c.l.b16 %v4031
      %v4327 = vunpack.c.l.b16 %v4032
      %v4328 = vunpack.c.l.b16 %v4033
      %v4329 = vunpack.c.l.b16 %v4034
      %v4330 = vunpack.c.l.b16 %v4035
      %v4331 = vunpack.c.l.b16 %v4036
      %v4332 = vunpack.c.l.b16 %v4037
      %v4333 = vunpack.c.l.b16 %v4038
      %v4334 = vunpack.c.l.b16 %v4039
      %v4335 = vunpack.c.l.b16 %v4040
      %v4336 = vunpack.c.l.b16 %v4041
      %v4337 = vunpack.c.l.b16 %v4042
      %v4338 = vunpack.c.l.b16 %v4043
      %v4339 = vunpack.c.l.b16 %v4044
      %v4340 = vpack.c.b16 %v4197, %v4196
      %v4341 = vpack.c.b16 %v4199, %v4198
      %v4342 = vpack.c.b16 %v4201, %v4200
      %v4343 = vpack.c.b16 %v4203, %v4202
      %v4344 = vpack.c.b16 %v4205, %v4204
      %v4345 = vpack.c.b16 %v4207, %v4206
      %v4346 = vpack.c.b16 %v4209, %v4208
      %v4347 = vpack.c.b16 %v4211, %v4210
      %v4348 = vpack.c.b16 %v4213, %v4212
      %v4349 = vpack.c.b16 %v4215, %v4214
      %v4350 = vpack.c.b16 %v4217, %v4216
      %v4351 = vpack.c.b16 %v4219, %v4218
      %v4352 = vpack.c.b16 %v4221, %v4220
      %v4353 = vpack.c.b16 %v4223, %v4222
      %v4354 = vpack.c.b16 %v4225, %v4224
      %v4355 = vpack.c.b16 %v4227, %v4226
      %v4356 = vpack.c.b16 %v4229, %v4228
      %v4357 = vpack.c.b16 %v4231, %v4230
      %v4358 = vpack.c.b16 %v4233, %v4232
      %v4359 = vpack.c.b16 %v4235, %v4234
      %v4360 = vpack.c.b16 %v4237, %v4236
      %v4361 = vpack.c.b16 %v4239, %v4238
      %v4362 = vpack.c.b16 %v4241, %v4240
      %v4363 = vpack.c.b16 %v4243, %v4242
      %v4364 = vpack.c.b16 %v4245, %v4244
      %v4365 = vpack.c.b16 %v4247, %v4246
      %v4366 = vpack.c.b16 %v4249, %v4248
      %v4367 = vpack.c.b16 %v4251, %v4250
      %v4368 = vpack.c.b16 %v4253, %v4252
      %v4369 = vpack.c.b16 %v4255, %v4254
      %v4370 = vpack.c.b16 %v4257, %v4256
      %v4371 = vpack.c.b16 %v4259, %v4258
      %v4372 = vpack.c.b16 %v4261, %v4260
      %v4373 = vpack.c.b16 %v4263, %v4262
      %v4374 = vpack.c.b16 %v4265, %v4264
      %v4375 = vpack.c.b16 %v4267, %v4266
      %v4376 = vpack.c.b16 %v4269, %v4268
      %v4377 = vpack.c.b16 %v4271, %v4270
      %v4378 = vpack.c.b16 %v4273, %v4272
      %v4379 = vpack.c.b16 %v4275, %v4274
      %v4380 = vpack.c.b16 %v4277, %v4276
      %v4381 = vpack.c.b16 %v4279, %v4278
      %v4382 = vpack.c.b16 %v4281, %v4280
      %v4383 = vpack.c.b16 %v4283, %v4282
      %v4384 = vpack.c.b16 %v4285, %v4284
      %v4385 = vpack.c.b16 %v4287, %v4286
      %v4386 = vpack.c.b16 %v4289, %v4288
      %v4387 = vpack.c.b16 %v4291, %v4290
      %v4388 = vpack.c.b16 %v4293, %v4292
      %v4389 = vpack.c.b16 %v4295, %v4294
      %v4390 = vpack.c.b16 %v4297, %v4296
      %v4391 = vpack.c.b16 %v4299, %v4298
      %v4392 = vpack.c.b16 %v4301, %v4300
      %v4393 = vpack.c.b16 %v4303, %v4302
      %v4394 = vpack.c.b16 %v4305, %v4304
      %v4395 = vpack.c.b16 %v4307, %v4306
      %v4396 = vpack.c.b16 %v4309, %v4308
      %v4397 = vpack.c.b16 %v4311, %v4310
      %v4398 = vpack.c.b16 %v4313, %v4312
      %v4399 = vpack.c.b16 %v4315, %v4314
      %v4400 = vpack.c.b16 %v4317, %v4316
      %v4401 = vpack.c.b16 %v4319, %v4318
      %v4402 = vpack.c.b16 %v4321, %v4320
      %v4403 = vpack.c.b16 %v4323, %v4322
      %v4404 = vpack.c.b16 %v4325, %v4324
      %v4405 = vpack.c.b16 %v4327, %v4326
      %v4406 = vpack.c.b16 %v4329, %v4328
      %v4407 = vpack.c.b16 %v4331, %v4330
      %v4408 = vpack.c.b16 %v4333, %v4332
      %v4409 = vpack.c.b16 %v4335, %v4334
      %v4410 = vpack.c.b16 %v4337, %v4336
      %v4411 = vpack.c.b16 %v4339, %v4338
      %4484 = vmatprep.subr.bf16.mxu0 0
      %4485 = vmatpush1.bf16.msra.mxu0 %v4340
      %4486 = vmatprep.subr.bf16.mxu0 0
      %4487 = vmatpush1.bf16.msra.mxu0 %v4341
      %4488 = vmatprep.subr.bf16.mxu0 0
      %4489 = vmatpush1.bf16.msra.mxu0 %v4342
      %4490 = vmatprep.subr.bf16.mxu0 0
      %4491 = vmatpush1.bf16.msra.mxu0 %v4343
      %4492 = vmatprep.subr.bf16.mxu0 0
      %4493 = vmatpush1.bf16.msra.mxu0 %v4344
      %4494 = vmatprep.subr.bf16.mxu0 0
      %4495 = vmatpush1.bf16.msra.mxu0 %v4345
      %4496 = vmatprep.subr.bf16.mxu0 0
      %4497 = vmatpush1.bf16.msra.mxu0 %v4346
      %4498 = vmatprep.subr.bf16.mxu0 0
      %4499 = vmatpush1.bf16.msra.mxu0 %v4347
      %4500 = vmatprep.subr.bf16.mxu0 0
      %4501 = vmatpush1.bf16.msra.mxu0 %v4348
      %4502 = vmatprep.subr.bf16.mxu0 0
      %4503 = vmatpush1.bf16.msra.mxu0 %v4349
      %4504 = vmatprep.subr.bf16.mxu0 0
      %4505 = vmatpush1.bf16.msra.mxu0 %v4350
      %4506 = vmatprep.subr.bf16.mxu0 0
      %4507 = vmatpush1.bf16.msra.mxu0 %v4351
      %4508 = vmatprep.subr.bf16.mxu0 0
      %4509 = vmatpush1.bf16.msra.mxu0 %v4352
      %4510 = vmatprep.subr.bf16.mxu0 0
      %4511 = vmatpush1.bf16.msra.mxu0 %v4353
      %4512 = vmatprep.subr.bf16.mxu0 0
      %4513 = vmatpush1.bf16.msra.mxu0 %v4354
      %4514 = vmatprep.subr.bf16.mxu0 0
      %4515 = vmatpush1.bf16.msra.mxu0 %v4355
      %4516 = vmatprep.mubr.bf16.mxu0 %v3884
      %4517 = vmatmul.mubr.bf16.gmra.mrb[0].mxu0 %v3883
      %v4518 = vpop.f32.mrb[0].mxu0
      %v4519 = vadd.f32 %v4050, %v4518
      %v4520 = vpop.f32.mrb[0].mxu0
      %v4521 = vpop.f32.mrb[0].mxu0
      %v4522 = vadd.f32 %v4050, %v4521
      %v4523 = vpop.f32.mrb[0].mxu0
      %4524 = vmatprep.mubr.bf16.mxu0 %v3893
      %4525 = vmatmul.mubr.bf16.gmra.mrb[0].mxu0 %v3892
      %v4526 = vpop.f32.mrb[0].mxu0
      %v4527 = vadd.f32 %v4050, %v4526
      %v4528 = vpop.f32.mrb[0].mxu0
      %v4529 = vpop.f32.mrb[0].mxu0
      %v4530 = vadd.f32 %v4050, %v4529
      %v4531 = vpop.f32.mrb[0].mxu0
      %4532 = vdwg.mxu0
      %4533 = vmatprep.subr.bf16.mxu0 0
      %4534 = vmatpush1.bf16.msra.mxu0 %v4356
      %4535 = vmatprep.subr.bf16.mxu0 0
      %4536 = vmatpush1.bf16.msra.mxu0 %v4357
      %4537 = vmatprep.subr.bf16.mxu0 0
      %4538 = vmatpush1.bf16.msra.mxu0 %v4358
      %4539 = vmatprep.subr.bf16.mxu0 0
      %4540 = vmatpush1.bf16.msra.mxu0 %v4359
      %4541 = vmatprep.subr.bf16.mxu0 0
      %4542 = vmatpush1.bf16.msra.mxu0 %v4360
      %4543 = vmatprep.subr.bf16.mxu0 0
      %4544 = vmatpush1.bf16.msra.mxu0 %v4361
      %4545 = vmatprep.subr.bf16.mxu0 0
      %4546 = vmatpush1.bf16.msra.mxu0 %v4362
      %4547 = vmatprep.subr.bf16.mxu0 0
      %4548 = vmatpush1.bf16.msra.mxu0 %v4363
      %4549 = vmatprep.subr.bf16.mxu0 0
      %4550 = vmatpush1.bf16.msra.mxu0 %v4364
      %4551 = vmatprep.subr.bf16.mxu0 0
      %4552 = vmatpush1.bf16.msra.mxu0 %v4365
      %4553 = vmatprep.subr.bf16.mxu0 0
      %4554 = vmatpush1.bf16.msra.mxu0 %v4366
      %4555 = vmatprep.subr.bf16.mxu0 0
      %4556 = vmatpush1.bf16.msra.mxu0 %v4367
      %4557 = vmatprep.subr.bf16.mxu0 0
      %4558 = vmatpush1.bf16.msra.mxu0 %v4368
      %4559 = vmatprep.subr.bf16.mxu0 0
      %4560 = vmatpush1.bf16.msra.mxu0 %v4369
      %4561 = vmatprep.subr.bf16.mxu0 0
      %4562 = vmatpush1.bf16.msra.mxu0 %v4370
      %4563 = vmatprep.subr.bf16.mxu0 0
      %4564 = vmatpush1.bf16.msra.mxu0 %v4371
      %4565 = vmatprep.mubr.bf16.mxu0 %v3886
      %4566 = vmatmul.mubr.bf16.gmra.mrb[0].mxu0 %v3885
      %v4567 = vpop.f32.mrb[0].mxu0
      %v4568 = vadd.f32 %v4519, %v4567
      %v4569 = vpop.f32.mrb[0].mxu0
      %v4570 = vpop.f32.mrb[0].mxu0
      %v4571 = vadd.f32 %v4522, %v4570
      %v4572 = vpop.f32.mrb[0].mxu0
      %4573 = vmatprep.mubr.bf16.mxu0 %v3895
      %4574 = vmatmul.mubr.bf16.gmra.mrb[0].mxu0 %v3894
      %v4575 = vpop.f32.mrb[0].mxu0
      %v4576 = vadd.f32 %v4527, %v4575
      %v4577 = vpop.f32.mrb[0].mxu0
      %v4578 = vpop.f32.mrb[0].mxu0
      %v4579 = vadd.f32 %v4530, %v4578
      %v4580 = vpop.f32.mrb[0].mxu0
      %4581 = vdwg.mxu0
      %4582 = vmatprep.subr.bf16.mxu0 0
      %4583 = vmatpush1.bf16.msra.mxu0 %v4372
      %4584 = vmatprep.subr.bf16.mxu0 0
      %4585 = vmatpush1.bf16.msra.mxu0 %v4373
      %4586 = vmatprep.subr.bf16.mxu0 0
      %4587 = vmatpush1.bf16.msra.mxu0 %v4374
      %4588 = vmatprep.subr.bf16.mxu0 0
      %4589 = vmatpush1.bf16.msra.mxu0 %v4375
      %4590 = vmatprep.subr.bf16.mxu0 0
      %4591 = vmatpush1.bf16.msra.mxu0 %v4376
      %4592 = vmatprep.subr.bf16.mxu0 0
      %4593 = vmatpush1.bf16.msra.mxu0 %v4377
      %4594 = vmatprep.subr.bf16.mxu0 0
      %4595 = vmatpush1.bf16.msra.mxu0 %v4378
      %4596 = vmatprep.subr.bf16.mxu0 0
      %4597 = vmatpush1.bf16.msra.mxu0 %v4379
      %4598 = vmatprep.subr.bf16.mxu0 0
      %4599 = vmatpush1.bf16.msra.mxu0 %v4380
      %4600 = vmatprep.subr.bf16.mxu0 0
      %4601 = vmatpush1.bf16.msra.mxu0 %v4381
      %4602 = vmatprep.subr.bf16.mxu0 0
      %4603 = vmatpush1.bf16.msra.mxu0 %v4382
      %4604 = vmatprep.subr.bf16.mxu0 0
      %4605 = vmatpush1.bf16.msra.mxu0 %v4383
      %4606 = vmatprep.subr.bf16.mxu0 0
      %4607 = vmatpush1.bf16.msra.mxu0 %v4384
      %4608 = vmatprep.subr.bf16.mxu0 0
      %4609 = vmatpush1.bf16.msra.mxu0 %v4385
      %4610 = vmatprep.subr.bf16.mxu0 0
      %4611 = vmatpush1.bf16.msra.mxu0 %v4386
      %4612 = vmatprep.subr.bf16.mxu0 0
      %4613 = vmatpush1.bf16.msra.mxu0 %v4387
      %4614 = vmatprep.mubr.bf16.mxu0 %v3888
      %4615 = vmatmul.mubr.bf16.gmra.mrb[0].mxu0 %v3887
      %v4616 = vpop.f32.mrb[0].mxu0
      %v4617 = vadd.f32 %v4568, %v4616
      %v4618 = vpop.f32.mrb[0].mxu0
      %v4619 = vpop.f32.mrb[0].mxu0
      %v4620 = vadd.f32 %v4571, %v4619
      %v4621 = vpop.f32.mrb[0].mxu0
      %4622 = vmatprep.mubr.bf16.mxu0 %v3897
      %4623 = vmatmul.mubr.bf16.gmra.mrb[0].mxu0 %v3896
      %v4624 = vpop.f32.mrb[0].mxu0
      %v4625 = vadd.f32 %v4576, %v4624
      %v4626 = vpop.f32.mrb[0].mxu0
      %v4627 = vpop.f32.mrb[0].mxu0
      %v4628 = vadd.f32 %v4579, %v4627
      %v4629 = vpop.f32.mrb[0].mxu0
      %4630 = vdwg.mxu0
      %4631 = vmatprep.subr.bf16.mxu0 0
      %4632 = vmatpush1.bf16.msra.mxu0 %v4388
      %4633 = vmatprep.subr.bf16.mxu0 0
      %4634 = vmatpush1.bf16.msra.mxu0 %v4389
      %4635 = vmatprep.subr.bf16.mxu0 0
      %4636 = vmatpush1.bf16.msra.mxu0 %v4390
      %4637 = vmatprep.subr.bf16.mxu0 0
      %4638 = vmatpush1.bf16.msra.mxu0 %v4391
      %4639 = vmatprep.subr.bf16.mxu0 0
      %4640 = vmatpush1.bf16.msra.mxu0 %v4392
      %4641 = vmatprep.subr.bf16.mxu0 0
      %4642 = vmatpush1.bf16.msra.mxu0 %v4393
      %4643 = vmatprep.subr.bf16.mxu0 0
      %4644 = vmatpush1.bf16.msra.mxu0 %v4394
      %4645 = vmatprep.subr.bf16.mxu0 0
      %4646 = vmatpush1.bf16.msra.mxu0 %v4395
      %4647 = vmatprep.subr.bf16.mxu0 0
      %4648 = vmatpush1.bf16.msra.mxu0 %v4396
      %4649 = vmatprep.subr.bf16.mxu0 0
      %4650 = vmatpush1.bf16.msra.mxu0 %v4397
      %4651 = vmatprep.subr.bf16.mxu0 0
      %4652 = vmatpush1.bf16.msra.mxu0 %v4398
      %4653 = vmatprep.subr.bf16.mxu0 0
      %4654 = vmatpush1.bf16.msra.mxu0 %v4399
      %4655 = vmatprep.subr.bf16.mxu0 0
      %4656 = vmatpush1.bf16.msra.mxu0 %v4400
      %4657 = vmatprep.subr.bf16.mxu0 0
      %4658 = vmatpush1.bf16.msra.mxu0 %v4401
      %4659 = vmatprep.subr.bf16.mxu0 0
      %4660 = vmatpush1.bf16.msra.mxu0 %v4402
      %4661 = vmatprep.subr.bf16.mxu0 0
      %4662 = vmatpush1.bf16.msra.mxu0 %v4403
      %4663 = vmatprep.mubr.bf16.mxu0 %v3890
      %4664 = vmatmul.mubr.bf16.gmra.mrb[0].mxu0 %v3889
      %v4665 = vpop.f32.mrb[0].mxu0
      %v4666 = vadd.f32 %v4617, %v4665
      %v4667 = vpop.f32.mrb[0].mxu0
      %v4668 = vpop.f32.mrb[0].mxu0
      %v4669 = vadd.f32 %v4620, %v4668
      %v4670 = vpop.f32.mrb[0].mxu0
      %4671 = vmatprep.mubr.bf16.mxu0 %v3899
      %4672 = vmatmul.mubr.bf16.gmra.mrb[0].mxu0 %v3898
      %v4673 = vpop.f32.mrb[0].mxu0
      %v4674 = vadd.f32 %v4625, %v4673
      %v4675 = vpop.f32.mrb[0].mxu0
      %v4676 = vpop.f32.mrb[0].mxu0
      %v4677 = vadd.f32 %v4628, %v4676
      %v4678 = vpop.f32.mrb[0].mxu0
      %4679 = vdwg.mxu0
      %4680 = vmatprep.subr.bf16.mxu0 0
      %4681 = vmatpush1.bf16.msra.mxu0 %v4404
      %4682 = vmatprep.subr.bf16.mxu0 0
      %4683 = vmatpush1.bf16.msra.mxu0 %v4405
      %4684 = vmatprep.subr.bf16.mxu0 0
      %4685 = vmatpush1.bf16.msra.mxu0 %v4406
      %4686 = vmatprep.subr.bf16.mxu0 0
      %4687 = vmatpush1.bf16.msra.mxu0 %v4407
      %4688 = vmatprep.subr.bf16.mxu0 0
      %4689 = vmatpush1.bf16.msra.mxu0 %v4408
      %4690 = vmatprep.subr.bf16.mxu0 0
      %4691 = vmatpush1.bf16.msra.mxu0 %v4409
      %4692 = vmatprep.subr.bf16.mxu0 0
      %4693 = vmatpush1.bf16.msra.mxu0 %v4410
      %4694 = vmatprep.subr.bf16.mxu0 0
      %4695 = vmatpush1.bf16.msra.mxu0 %v4411
      %4696 = vmatprep.subr.bf16.mxu0 0
      %4697 = vmatpush1.bf16.msra.mxu0 0
      %4698 = vmatprep.subr.bf16.mxu0 0
      %4699 = vmatpush1.bf16.msra.mxu0 0
      %4700 = vmatprep.subr.bf16.mxu0 0
      %4701 = vmatpush1.bf16.msra.mxu0 0
      %4702 = vmatprep.subr.bf16.mxu0 0
      %4703 = vmatpush1.bf16.msra.mxu0 0
      %4704 = vmatprep.subr.bf16.mxu0 0
      %4705 = vmatpush1.bf16.msra.mxu0 0
      %4706 = vmatprep.subr.bf16.mxu0 0
      %4707 = vmatpush1.bf16.msra.mxu0 0
      %4708 = vmatprep.subr.bf16.mxu0 0
      %4709 = vmatpush1.bf16.msra.mxu0 0
      %4710 = vmatprep.subr.bf16.mxu0 0
      %4711 = vmatpush1.bf16.msra.mxu0 0
      %4712 = vmatprep.mubr.bf16.mxu0 0
      %4713 = vmatmul.mubr.bf16.gmra.mrb[0].mxu0 %v3891
      %v4714 = vpop.f32.mrb[0].mxu0
      %v4715 = vadd.f32 %v4666, %v4714
      %v4716 = vpop.f32.mrb[0].mxu0
      %v4717 = vpop.f32.mrb[0].mxu0
      %v4718 = vadd.f32 %v4669, %v4717
      %v4719 = vpop.f32.mrb[0].mxu0
      %4720 = vmatprep.mubr.bf16.mxu0 0
      %4721 = vmatmul.mubr.bf16.gmra.mrb[0].mxu0 %v3900
      %v4722 = vpop.f32.mrb[0].mxu0
      %v4723 = vadd.f32 %v4674, %v4722
      %v4724 = vpop.f32.mrb[0].mxu0
      %v4725 = vpop.f32.mrb[0].mxu0
      %v4726 = vadd.f32 %v4677, %v4725
      %v4727 = vpop.f32.mrb[0].mxu0
      %4728 = vdwg.mxu0
      %v4729 = vmax.f32 %v4715, 0.0
      %v4730 = vmax.f32 %v4718, 0.0
      %v4731 = vmax.f32 %v4723, 0.0
      %v4732 = vmax.f32 %v4726, 0.0
      %vm4733 = vcmask 523264
      %v4734 = vsel %vm4733, %v4729, -inf
      %v4735 = vsel %vm4733, %v4730, -inf
      %v4736 = vmax.f32 %v4734, %v4735
      %v4737 = vrot.slane %v4736, 4
      %v4738 = vmax.f32 %v4736, %v4737
      %v4739 = vrot.slane %v4738, 2
      %v4740 = vmax.f32 %v4738, %v4739
      %v4741 = vrot.slane %v4740, 1
      %v4742 = vmax.f32 %v4740, %v4741
      %v4743 = vsel %vm4733, %v4731, -inf
      %v4744 = vsel %vm4733, %v4732, -inf
      %v4745 = vmax.f32 %v4743, %v4744
      %v4746 = vrot.slane %v4745, 4
      %v4747 = vmax.f32 %v4745, %v4746
      %v4748 = vrot.slane %v4747, 2
      %v4749 = vmax.f32 %v4747, %v4748
      %v4750 = vrot.slane %v4749, 1
      %v4751 = vmax.f32 %v4749, %v4750
      %vm4752 = vcmask 1040384
      %v4753 = vsel %vm4752, %v4742, %v4751
      %v4754 = vpack.c.bf16 %v4753, %v4753
      %v4755 = vld [vmem:[%s513] sm:$0xff]
      %v4756 = vld [vmem:[%s513 + $0x8] sm:$0xff]
      %v4757 = vld [vmem:[%s513 + $0x10] sm:$0xff]
      %v4758 = vld [vmem:[%s513 + $0x18] sm:$0xff]
      %v4759 = vld [vmem:[%s513 + $0x20] sm:$0xff]
      %v4760 = vld [vmem:[%s513 + $0x28] sm:$0xff]
      %v4761 = vld [vmem:[%s513 + $0x30] sm:$0xff]
      %v4762 = vld [vmem:[%s513 + $0x38] sm:$0xff]
      %v4763 = vld [vmem:[%s513 + $0x40] sm:$0xff]
      %v4764 = vld [vmem:[%s513 + $0x48] sm:$0xff]
      %v4765 = vld [vmem:[%s513 + $0x50] sm:$0xff]
      %v4766 = vld [vmem:[%s513 + $0x58] sm:$0xff]
      %v4767 = vld [vmem:[%s513 + $0x60] sm:$0xff]
      %v4768 = vld [vmem:[%s513 + $0x68] sm:$0xff]
      %v4769 = vld [vmem:[%s513 + $0x70] sm:$0xff]
      %v4770 = vld [vmem:[%s513 + $0x78] sm:$0xff]
      %v4771 = vld [vmem:[%s513 + $0x80] sm:$0xff]
      %v4772 = vld [vmem:[%s513 + $0x88] sm:$0xff]
      %v4773 = vld [vmem:[%s513 + $0x90] sm:$0xff]
      %v4774 = vld [vmem:[%s513 + $0x98] sm:$0xff]
      %v4775 = vld [vmem:[%s513 + $0xa0] sm:$0xff]
      %v4776 = vld [vmem:[%s513 + $0xa8] sm:$0xff]
      %v4777 = vld [vmem:[%s513 + $0xb0] sm:$0xff]
      %v4778 = vld [vmem:[%s513 + $0xb8] sm:$0xff]
      %v4779 = vld [vmem:[%s517] sm:$0x3f]
      %v4781 = vlaneseq
      %v4782 = vshrl.u32 %v4781, 7
      %v4783 = vsub.s32 0, %v4782
      %v4784 = vrot.slane %v4779, %v4783
      %v4785 = vlaneseq
      %v4786 = vshrl.u32 %v4785, 7
      %v4787 = vsub.s32 1, %v4786
      %v4788 = vrot.slane %v4779, %v4787
      %v4789 = vlaneseq
      %v4790 = vshrl.u32 %v4789, 7
      %v4791 = vsub.s32 2, %v4790
      %v4792 = vrot.slane %v4779, %v4791
      %v4793 = vlaneseq
      %v4794 = vshrl.u32 %v4793, 7
      %v4795 = vsub.s32 3, %v4794
      %v4796 = vrot.slane %v4779, %v4795
      %v4797 = vlaneseq
      %v4798 = vshrl.u32 %v4797, 7
      %v4799 = vsub.s32 4, %v4798
      %v4800 = vrot.slane %v4779, %v4799
      %v4801 = vlaneseq
      %v4802 = vshrl.u32 %v4801, 7
      %v4803 = vsub.s32 5, %v4802
      %v4804 = vrot.slane %v4779, %v4803
      %v4835 = vunpack.c.l.b16 %v4755
      %v4836 = vunpack.c.h.b16 %v4755
      %v4837 = vunpack.c.l.b16 %v4756
      %v4838 = vunpack.c.h.b16 %v4756
      %v4839 = vunpack.c.l.b16 %v4757
      %v4840 = vunpack.c.h.b16 %v4757
      %v4841 = vunpack.c.l.b16 %v4758
      %v4842 = vunpack.c.h.b16 %v4758
      %v4843 = vunpack.c.l.b16 %v4759
      %v4844 = vunpack.c.h.b16 %v4759
      %v4845 = vunpack.c.l.b16 %v4760
      %v4846 = vunpack.c.h.b16 %v4760
      %v4847 = vunpack.c.l.b16 %v4761
      %v4848 = vunpack.c.h.b16 %v4761
      %v4849 = vunpack.c.l.b16 %v4762
      %v4850 = vunpack.c.h.b16 %v4762
      %v4851 = vunpack.c.l.b16 %v4763
      %v4852 = vunpack.c.h.b16 %v4763
      %v4853 = vunpack.c.l.b16 %v4764
      %v4854 = vunpack.c.h.b16 %v4764
      %v4855 = vunpack.c.l.b16 %v4765
      %v4856 = vunpack.c.h.b16 %v4765
      %v4857 = vunpack.c.l.b16 %v4766
      %v4858 = vunpack.c.h.b16 %v4766
      %v4859 = vunpack.c.l.b16 %v4767
      %v4860 = vunpack.c.h.b16 %v4767
      %v4861 = vunpack.c.l.b16 %v4768
      %v4862 = vunpack.c.h.b16 %v4768
      %v4863 = vunpack.c.l.b16 %v4769
      %v4864 = vunpack.c.h.b16 %v4769
      %v4865 = vunpack.c.l.b16 %v4770
      %v4866 = vunpack.c.h.b16 %v4770
      %v4867 = vunpack.c.l.b16 %v4771
      %v4868 = vunpack.c.h.b16 %v4771
      %v4869 = vunpack.c.l.b16 %v4772
      %v4870 = vunpack.c.h.b16 %v4772
      %v4871 = vunpack.c.l.b16 %v4773
      %v4872 = vunpack.c.h.b16 %v4773
      %v4873 = vunpack.c.l.b16 %v4774
      %v4874 = vunpack.c.h.b16 %v4774
      %v4875 = vunpack.c.l.b16 %v4775
      %v4876 = vunpack.c.h.b16 %v4775
      %v4877 = vunpack.c.l.b16 %v4776
      %v4878 = vunpack.c.h.b16 %v4776
      %v4879 = vunpack.c.l.b16 %v4777
      %v4880 = vunpack.c.h.b16 %v4777
      %v4881 = vunpack.c.l.b16 %v4778
      %v4882 = vunpack.c.h.b16 %v4778
      %v4883 = vpack.c.b16 %v4841, %v4835
      %v4884 = vpack.c.b16 %v4842, %v4836
      %v4885 = vpack.c.b16 %v4843, %v4837
      %v4886 = vpack.c.b16 %v4844, %v4838
      %v4887 = vpack.c.b16 %v4845, %v4839
      %v4888 = vpack.c.b16 %v4846, %v4840
      %v4889 = vpack.c.b16 %v4853, %v4847
      %v4890 = vpack.c.b16 %v4854, %v4848
      %v4891 = vpack.c.b16 %v4855, %v4849
      %v4892 = vpack.c.b16 %v4856, %v4850
      %v4893 = vpack.c.b16 %v4857, %v4851
      %v4894 = vpack.c.b16 %v4858, %v4852
      %v4895 = vpack.c.b16 %v4865, %v4859
      %v4896 = vpack.c.b16 %v4866, %v4860
      %v4897 = vpack.c.b16 %v4867, %v4861
      %v4898 = vpack.c.b16 %v4868, %v4862
      %v4899 = vpack.c.b16 %v4869, %v4863
      %v4900 = vpack.c.b16 %v4870, %v4864
      %v4901 = vpack.c.b16 %v4877, %v4871
      %v4902 = vpack.c.b16 %v4878, %v4872
      %v4903 = vpack.c.b16 %v4879, %v4873
      %v4904 = vpack.c.b16 %v4880, %v4874
      %v4905 = vpack.c.b16 %v4881, %v4875
      %v4906 = vpack.c.b16 %v4882, %v4876
      %v4932 = vsel %vm4733, %v4754, 0
      %4934 = vmatprep.subr.bf16.mxu0 %v4884
      %4935 = vmatpush1.bf16.msra.mxu0 %v4883
      %4936 = vmatprep.subr.bf16.mxu0 %v4890
      %4937 = vmatpush1.bf16.msra.mxu0 %v4889
      %4938 = vmatprep.subr.bf16.mxu0 %v4896
      %4939 = vmatpush1.bf16.msra.mxu0 %v4895
      %4940 = vmatprep.subr.bf16.mxu0 %v4902
      %4941 = vmatpush1.bf16.msra.mxu0 %v4901
      %4942 = vmatprep.subr.bf16.mxu0 0
      %4943 = vmatpush1.bf16.msra.mxu0 0
      %4944 = vmatprep.subr.bf16.mxu0 0
      %4945 = vmatpush1.bf16.msra.mxu0 0
      %4946 = vmatprep.subr.bf16.mxu0 0
      %4947 = vmatpush1.bf16.msra.mxu0 0
      %4948 = vmatprep.subr.bf16.mxu0 0
      %4949 = vmatpush1.bf16.msra.mxu0 0
      %4950 = vmatprep.subr.bf16.mxu0 0
      %4951 = vmatpush1.bf16.msra.mxu0 0
      %4952 = vmatprep.subr.bf16.mxu0 0
      %4953 = vmatpush1.bf16.msra.mxu0 0
      %4954 = vmatprep.subr.bf16.mxu0 0
      %4955 = vmatpush1.bf16.msra.mxu0 0
      %4956 = vmatprep.subr.bf16.mxu0 0
      %4957 = vmatpush1.bf16.msra.mxu0 0
      %4958 = vmatprep.subr.bf16.mxu0 0
      %4959 = vmatpush1.bf16.msra.mxu0 0
      %4960 = vmatprep.subr.bf16.mxu0 0
      %4961 = vmatpush1.bf16.msra.mxu0 0
      %4962 = vmatprep.subr.bf16.mxu0 0
      %4963 = vmatpush1.bf16.msra.mxu0 0
      %4964 = vmatprep.subr.bf16.mxu0 0
      %4965 = vmatpush1.bf16.msra.mxu0 0
      %4966 = vmatprep.mubr.bf16.mxu0 0
      %4967 = vmatmul.mubr.bf16.gmra.mrb[0].mxu0 %v4932
      %v4968 = vpop.f32.mrb[0].mxu0
      %v4969 = vadd.f32 %v4784, %v4968
      %v4970 = vpop.f32.mrb[0].mxu0
      %v4971 = vadd.f32 %v4788, %v4970
      %v4972 = vpop.f32.mrb[0].mxu0
      %v4973 = vpop.f32.mrb[0].mxu0
      %4974 = vdwg.mxu0
      %4975 = vmatprep.subr.bf16.mxu0 %v4886
      %4976 = vmatpush1.bf16.msra.mxu0 %v4885
      %4977 = vmatprep.subr.bf16.mxu0 %v4892
      %4978 = vmatpush1.bf16.msra.mxu0 %v4891
      %4979 = vmatprep.subr.bf16.mxu0 %v4898
      %4980 = vmatpush1.bf16.msra.mxu0 %v4897
      %4981 = vmatprep.subr.bf16.mxu0 %v4904
      %4982 = vmatpush1.bf16.msra.mxu0 %v4903
      %4983 = vmatprep.subr.bf16.mxu0 0
      %4984 = vmatpush1.bf16.msra.mxu0 0
      %4985 = vmatprep.subr.bf16.mxu0 0
      %4986 = vmatpush1.bf16.msra.mxu0 0
      %4987 = vmatprep.subr.bf16.mxu0 0
      %4988 = vmatpush1.bf16.msra.mxu0 0
      %4989 = vmatprep.subr.bf16.mxu0 0
      %4990 = vmatpush1.bf16.msra.mxu0 0
      %4991 = vmatprep.subr.bf16.mxu0 0
      %4992 = vmatpush1.bf16.msra.mxu0 0
      %4993 = vmatprep.subr.bf16.mxu0 0
      %4994 = vmatpush1.bf16.msra.mxu0 0
      %4995 = vmatprep.subr.bf16.mxu0 0
      %4996 = vmatpush1.bf16.msra.mxu0 0
      %4997 = vmatprep.subr.bf16.mxu0 0
      %4998 = vmatpush1.bf16.msra.mxu0 0
      %4999 = vmatprep.subr.bf16.mxu0 0
      %5000 = vmatpush1.bf16.msra.mxu0 0
      %5001 = vmatprep.subr.bf16.mxu0 0
      %5002 = vmatpush1.bf16.msra.mxu0 0
      %5003 = vmatprep.subr.bf16.mxu0 0
      %5004 = vmatpush1.bf16.msra.mxu0 0
      %5005 = vmatprep.subr.bf16.mxu0 0
      %5006 = vmatpush1.bf16.msra.mxu0 0
      %5007 = vmatprep.mubr.bf16.mxu0 0
      %5008 = vmatmul.mubr.bf16.gmra.mrb[0].mxu0 %v4932
      %v5009 = vpop.f32.mrb[0].mxu0
      %v5010 = vadd.f32 %v4792, %v5009
      %v5011 = vpop.f32.mrb[0].mxu0
      %v5012 = vadd.f32 %v4796, %v5011
      %v5013 = vpop.f32.mrb[0].mxu0
      %v5014 = vpop.f32.mrb[0].mxu0
      %5015 = vdwg.mxu0
      %5016 = vmatprep.subr.bf16.mxu0 %v4888
      %5017 = vmatpush1.bf16.msra.mxu0 %v4887
      %5018 = vmatprep.subr.bf16.mxu0 %v4894
      %5019 = vmatpush1.bf16.msra.mxu0 %v4893
      %5020 = vmatprep.subr.bf16.mxu0 %v4900
      %5021 = vmatpush1.bf16.msra.mxu0 %v4899
      %5022 = vmatprep.subr.bf16.mxu0 %v4906
      %5023 = vmatpush1.bf16.msra.mxu0 %v4905
      %5024 = vmatprep.subr.bf16.mxu0 0
      %5025 = vmatpush1.bf16.msra.mxu0 0
      %5026 = vmatprep.subr.bf16.mxu0 0
      %5027 = vmatpush1.bf16.msra.mxu0 0
      %5028 = vmatprep.subr.bf16.mxu0 0
      %5029 = vmatpush1.bf16.msra.mxu0 0
      %5030 = vmatprep.subr.bf16.mxu0 0
      %5031 = vmatpush1.bf16.msra.mxu0 0
      %5032 = vmatprep.subr.bf16.mxu0 0
      %5033 = vmatpush1.bf16.msra.mxu0 0
      %5034 = vmatprep.subr.bf16.mxu0 0
      %5035 = vmatpush1.bf16.msra.mxu0 0
      %5036 = vmatprep.subr.bf16.mxu0 0
      %5037 = vmatpush1.bf16.msra.mxu0 0
      %5038 = vmatprep.subr.bf16.mxu0 0
      %5039 = vmatpush1.bf16.msra.mxu0 0
      %5040 = vmatprep.subr.bf16.mxu0 0
      %5041 = vmatpush1.bf16.msra.mxu0 0
      %5042 = vmatprep.subr.bf16.mxu0 0
      %5043 = vmatpush1.bf16.msra.mxu0 0
      %5044 = vmatprep.subr.bf16.mxu0 0
      %5045 = vmatpush1.bf16.msra.mxu0 0
      %5046 = vmatprep.subr.bf16.mxu0 0
      %5047 = vmatpush1.bf16.msra.mxu0 0
      %5048 = vmatprep.mubr.bf16.mxu0 0
      %5049 = vmatmul.mubr.bf16.gmra.mrb[0].mxu0 %v4932
      %v5050 = vpop.f32.mrb[0].mxu0
      %v5051 = vadd.f32 %v4800, %v5050
      %v5052 = vpop.f32.mrb[0].mxu0
      %v5053 = vadd.f32 %v4804, %v5052
      %v5054 = vpop.f32.mrb[0].mxu0
      %v5055 = vpop.f32.mrb[0].mxu0
      %5056 = vdwg.mxu0
      %v5057 = vmax.f32 %v4969, 0.0
      %v5058 = vmax.f32 %v4971, 0.0
      %v5059 = vmax.f32 %v5010, 0.0
      %v5060 = vmax.f32 %v5012, 0.0
      %v5061 = vmax.f32 %v5051, 0.0
      %v5062 = vmax.f32 %v5053, 0.0
      %v5063 = vpack.c.bf16 %v5057, %v5057
      %v5064 = vpack.c.bf16 %v5058, %v5058
      %v5065 = vpack.c.bf16 %v5059, %v5059
      %v5066 = vpack.c.bf16 %v5060, %v5060
      %v5067 = vpack.c.bf16 %v5061, %v5061
      %v5068 = vpack.c.bf16 %v5062, %v5062
      %v5069 = vld [vmem:[%s522] sm:$0xf]
      %v5070 = vld [vmem:[%s522 + $0x4] sm:$0xf]
      %v5071 = vld [vmem:[%s522 + $0x8] sm:$0xf]
      %v5072 = vld [vmem:[%s522 + $0xc] sm:$0xf]
      %v5073 = vld [vmem:[%s522 + $0x10] sm:$0xf]
      %v5074 = vld [vmem:[%s522 + $0x14] sm:$0xf]
      %v5075 = vld [vmem:[%s522 + $0x18] sm:$0xf]
      %v5076 = vld [vmem:[%s522 + $0x1c] sm:$0xf]
      %v5077 = vld [vmem:[%s522 + $0x20] sm:$0xf]
      %v5078 = vld [vmem:[%s522 + $0x24] sm:$0xf]
      %v5079 = vld [vmem:[%s522 + $0x28] sm:$0xf]
      %v5080 = vld [vmem:[%s522 + $0x2c] sm:$0xf]
      %v5081 = vld [vmem:[%s522 + $0x30] sm:$0xf]
      %v5082 = vld [vmem:[%s522 + $0x34] sm:$0xf]
      %v5083 = vld [vmem:[%s522 + $0x38] sm:$0xf]
      %v5084 = vld [vmem:[%s522 + $0x3c] sm:$0xf]
      %v5085 = vld [vmem:[%s522 + $0x40] sm:$0xf]
      %v5086 = vld [vmem:[%s522 + $0x44] sm:$0xf]
      %v5087 = vld [vmem:[%s522 + $0x48] sm:$0xf]
      %v5088 = vld [vmem:[%s522 + $0x4c] sm:$0xf]
      %v5089 = vld [vmem:[%s522 + $0x50] sm:$0xf]
      %v5090 = vld [vmem:[%s522 + $0x54] sm:$0xf]
      %v5091 = vld [vmem:[%s522 + $0x58] sm:$0xf]
      %v5092 = vld [vmem:[%s522 + $0x5c] sm:$0xf]
      %v5093 = vld [vmem:[%s522 + $0x60] sm:$0xf]
      %v5094 = vld [vmem:[%s522 + $0x64] sm:$0xf]
      %v5095 = vld [vmem:[%s522 + $0x68] sm:$0xf]
      %v5096 = vld [vmem:[%s522 + $0x6c] sm:$0xf]
      %v5097 = vld [vmem:[%s522 + $0x70] sm:$0xf]
      %v5098 = vld [vmem:[%s522 + $0x74] sm:$0xf]
      %v5099 = vld [vmem:[%s522 + $0x78] sm:$0xf]
      %v5100 = vld [vmem:[%s522 + $0x7c] sm:$0xf]
      %v5101 = vld [vmem:[%s522 + $0x80] sm:$0xf]
      %v5102 = vld [vmem:[%s522 + $0x84] sm:$0xf]
      %v5103 = vld [vmem:[%s522 + $0x88] sm:$0xf]
      %v5104 = vld [vmem:[%s522 + $0x8c] sm:$0xf]
      %v5105 = vld [vmem:[%s522 + $0x90] sm:$0xf]
      %v5106 = vld [vmem:[%s522 + $0x94] sm:$0xf]
      %v5107 = vld [vmem:[%s522 + $0x98] sm:$0xf]
      %v5108 = vld [vmem:[%s522 + $0x9c] sm:$0xf]
      %v5109 = vld [vmem:[%s522 + $0xa0] sm:$0xf]
      %v5110 = vld [vmem:[%s522 + $0xa4] sm:$0xf]
      %v5111 = vld [vmem:[%s522 + $0xa8] sm:$0xf]
      %v5112 = vld [vmem:[%s522 + $0xac] sm:$0xf]
      %v5113 = vld [vmem:[%s522 + $0xb0] sm:$0xf]
      %v5114 = vld [vmem:[%s522 + $0xb4] sm:$0xf]
      %v5115 = vld [vmem:[%s522 + $0xb8] sm:$0xf]
      %v5116 = vld [vmem:[%s522 + $0xbc] sm:$0xf]
      %v5117 = vld [vmem:[%s522 + $0xc0] sm:$0xf]
      %v5118 = vld [vmem:[%s522 + $0xc4] sm:$0xf]
      %v5119 = vld [vmem:[%s522 + $0xc8] sm:$0xf]
      %v5120 = vld [vmem:[%s522 + $0xcc] sm:$0xf]
      %v5121 = vld [vmem:[%s522 + $0xd0] sm:$0xf]
      %v5122 = vld [vmem:[%s522 + $0xd4] sm:$0xf]
      %v5123 = vld [vmem:[%s522 + $0xd8] sm:$0xf]
      %v5124 = vld [vmem:[%s522 + $0xdc] sm:$0xf]
      %v5125 = vld [vmem:[%s522 + $0xe0] sm:$0xf]
      %v5126 = vld [vmem:[%s522 + $0xe4] sm:$0xf]
      %v5127 = vld [vmem:[%s522 + $0xe8] sm:$0xf]
      %v5128 = vld [vmem:[%s522 + $0xec] sm:$0xf]
      %v5129 = vld [vmem:[%s522 + $0xf0] sm:$0xf]
      %v5130 = vld [vmem:[%s522 + $0xf4] sm:$0xf]
      %v5131 = vld [vmem:[%s522 + $0xf8] sm:$0xf]
      %v5132 = vld [vmem:[%s522 + $0xfc] sm:$0xf]
      %v5133 = vld [vmem:[%s522 + $0x100] sm:$0xf]
      %v5134 = vld [vmem:[%s522 + $0x104] sm:$0xf]
      %v5135 = vld [vmem:[%s522 + $0x108] sm:$0xf]
      %v5136 = vld [vmem:[%s522 + $0x10c] sm:$0xf]
      %v5137 = vld [vmem:[%s522 + $0x110] sm:$0xf]
      %v5138 = vld [vmem:[%s522 + $0x114] sm:$0xf]
      %v5139 = vld [vmem:[%s522 + $0x118] sm:$0xf]
      %v5140 = vld [vmem:[%s522 + $0x11c] sm:$0xf]
      %v5141 = vld [vmem:[%s522 + $0x120] sm:$0xf]
      %v5142 = vld [vmem:[%s522 + $0x124] sm:$0xf]
      %v5143 = vld [vmem:[%s522 + $0x128] sm:$0xf]
      %v5144 = vld [vmem:[%s522 + $0x12c] sm:$0xf]
      %v5145 = vld [vmem:[%s522 + $0x130] sm:$0xf]
      %v5146 = vld [vmem:[%s522 + $0x134] sm:$0xf]
      %v5147 = vld [vmem:[%s522 + $0x138] sm:$0xf]
      %v5148 = vld [vmem:[%s522 + $0x13c] sm:$0xf]
      %v5149 = vld [vmem:[%s522 + $0x140] sm:$0xf]
      %v5150 = vld [vmem:[%s522 + $0x144] sm:$0xf]
      %v5151 = vld [vmem:[%s522 + $0x148] sm:$0xf]
      %v5152 = vld [vmem:[%s522 + $0x14c] sm:$0xf]
      %v5153 = vld [vmem:[%s522 + $0x150] sm:$0xf]
      %v5154 = vld [vmem:[%s522 + $0x154] sm:$0xf]
      %v5155 = vld [vmem:[%s522 + $0x158] sm:$0xf]
      %v5156 = vld [vmem:[%s522 + $0x15c] sm:$0xf]
      %v5157 = vld [vmem:[%s522 + $0x160] sm:$0xf]
      %v5158 = vld [vmem:[%s522 + $0x164] sm:$0xf]
      %v5159 = vld [vmem:[%s522 + $0x168] sm:$0xf]
      %v5160 = vld [vmem:[%s522 + $0x16c] sm:$0xf]
      %v5161 = vld [vmem:[%s522 + $0x170] sm:$0xf]
      %v5162 = vld [vmem:[%s522 + $0x174] sm:$0xf]
      %v5163 = vld [vmem:[%s522 + $0x178] sm:$0xf]
      %v5164 = vld [vmem:[%s522 + $0x17c] sm:$0xf]
      %v5165 = vld [vmem:[%s525] sm:$0x1]
      %v5167 = vlaneseq
      %v5168 = vshrl.u32 %v5167, 7
      %v5169 = vsub.s32 0, %v5168
      %v5170 = vrot.slane %v5165, %v5169
      %v5268 = vunpack.c.l.b16 %v5069
      %v5269 = vunpack.c.l.b16 %v5070
      %v5270 = vunpack.c.l.b16 %v5071
      %v5271 = vunpack.c.l.b16 %v5072
      %v5272 = vunpack.c.l.b16 %v5073
      %v5273 = vunpack.c.l.b16 %v5074
      %v5274 = vunpack.c.l.b16 %v5075
      %v5275 = vunpack.c.l.b16 %v5076
      %v5276 = vunpack.c.l.b16 %v5077
      %v5277 = vunpack.c.l.b16 %v5078
      %v5278 = vunpack.c.l.b16 %v5079
      %v5279 = vunpack.c.l.b16 %v5080
      %v5280 = vunpack.c.l.b16 %v5081
      %v5281 = vunpack.c.l.b16 %v5082
      %v5282 = vunpack.c.l.b16 %v5083
      %v5283 = vunpack.c.l.b16 %v5084
      %v5284 = vunpack.c.l.b16 %v5085
      %v5285 = vunpack.c.l.b16 %v5086
      %v5286 = vunpack.c.l.b16 %v5087
      %v5287 = vunpack.c.l.b16 %v5088
      %v5288 = vunpack.c.l.b16 %v5089
      %v5289 = vunpack.c.l.b16 %v5090
      %v5290 = vunpack.c.l.b16 %v5091
      %v5291 = vunpack.c.l.b16 %v5092
      %v5292 = vunpack.c.l.b16 %v5093
      %v5293 = vunpack.c.l.b16 %v5094
      %v5294 = vunpack.c.l.b16 %v5095
      %v5295 = vunpack.c.l.b16 %v5096
      %v5296 = vunpack.c.l.b16 %v5097
      %v5297 = vunpack.c.l.b16 %v5098
      %v5298 = vunpack.c.l.b16 %v5099
      %v5299 = vunpack.c.l.b16 %v5100
      %v5300 = vunpack.c.l.b16 %v5101
      %v5301 = vunpack.c.l.b16 %v5102
      %v5302 = vunpack.c.l.b16 %v5103
      %v5303 = vunpack.c.l.b16 %v5104
      %v5304 = vunpack.c.l.b16 %v5105
      %v5305 = vunpack.c.l.b16 %v5106
      %v5306 = vunpack.c.l.b16 %v5107
      %v5307 = vunpack.c.l.b16 %v5108
      %v5308 = vunpack.c.l.b16 %v5109
      %v5309 = vunpack.c.l.b16 %v5110
      %v5310 = vunpack.c.l.b16 %v5111
      %v5311 = vunpack.c.l.b16 %v5112
      %v5312 = vunpack.c.l.b16 %v5113
      %v5313 = vunpack.c.l.b16 %v5114
      %v5314 = vunpack.c.l.b16 %v5115
      %v5315 = vunpack.c.l.b16 %v5116
      %v5316 = vunpack.c.l.b16 %v5117
      %v5317 = vunpack.c.l.b16 %v5118
      %v5318 = vunpack.c.l.b16 %v5119
      %v5319 = vunpack.c.l.b16 %v5120
      %v5320 = vunpack.c.l.b16 %v5121
      %v5321 = vunpack.c.l.b16 %v5122
      %v5322 = vunpack.c.l.b16 %v5123
      %v5323 = vunpack.c.l.b16 %v5124
      %v5324 = vunpack.c.l.b16 %v5125
      %v5325 = vunpack.c.l.b16 %v5126
      %v5326 = vunpack.c.l.b16 %v5127
      %v5327 = vunpack.c.l.b16 %v5128
      %v5328 = vunpack.c.l.b16 %v5129
      %v5329 = vunpack.c.l.b16 %v5130
      %v5330 = vunpack.c.l.b16 %v5131
      %v5331 = vunpack.c.l.b16 %v5132
      %v5332 = vunpack.c.l.b16 %v5133
      %v5333 = vunpack.c.l.b16 %v5134
      %v5334 = vunpack.c.l.b16 %v5135
      %v5335 = vunpack.c.l.b16 %v5136
      %v5336 = vunpack.c.l.b16 %v5137
      %v5337 = vunpack.c.l.b16 %v5138
      %v5338 = vunpack.c.l.b16 %v5139
      %v5339 = vunpack.c.l.b16 %v5140
      %v5340 = vunpack.c.l.b16 %v5141
      %v5341 = vunpack.c.l.b16 %v5142
      %v5342 = vunpack.c.l.b16 %v5143
      %v5343 = vunpack.c.l.b16 %v5144
      %v5344 = vunpack.c.l.b16 %v5145
      %v5345 = vunpack.c.l.b16 %v5146
      %v5346 = vunpack.c.l.b16 %v5147
      %v5347 = vunpack.c.l.b16 %v5148
      %v5348 = vunpack.c.l.b16 %v5149
      %v5349 = vunpack.c.l.b16 %v5150
      %v5350 = vunpack.c.l.b16 %v5151
      %v5351 = vunpack.c.l.b16 %v5152
      %v5352 = vunpack.c.l.b16 %v5153
      %v5353 = vunpack.c.l.b16 %v5154
      %v5354 = vunpack.c.l.b16 %v5155
      %v5355 = vunpack.c.l.b16 %v5156
      %v5356 = vunpack.c.l.b16 %v5157
      %v5357 = vunpack.c.l.b16 %v5158
      %v5358 = vunpack.c.l.b16 %v5159
      %v5359 = vunpack.c.l.b16 %v5160
      %v5360 = vunpack.c.l.b16 %v5161
      %v5361 = vunpack.c.l.b16 %v5162
      %v5362 = vunpack.c.l.b16 %v5163
      %v5363 = vunpack.c.l.b16 %v5164
      %v5364 = vpack.c.b16 %v5269, %v5268
      %v5365 = vpack.c.b16 %v5271, %v5270
      %v5366 = vpack.c.b16 %v5273, %v5272
      %v5367 = vpack.c.b16 %v5275, %v5274
      %v5368 = vpack.c.b16 %v5277, %v5276
      %v5369 = vpack.c.b16 %v5279, %v5278
      %v5370 = vpack.c.b16 %v5281, %v5280
      %v5371 = vpack.c.b16 %v5283, %v5282
      %v5372 = vpack.c.b16 %v5285, %v5284
      %v5373 = vpack.c.b16 %v5287, %v5286
      %v5374 = vpack.c.b16 %v5289, %v5288
      %v5375 = vpack.c.b16 %v5291, %v5290
      %v5376 = vpack.c.b16 %v5293, %v5292
      %v5377 = vpack.c.b16 %v5295, %v5294
      %v5378 = vpack.c.b16 %v5297, %v5296
      %v5379 = vpack.c.b16 %v5299, %v5298
      %v5380 = vpack.c.b16 %v5301, %v5300
      %v5381 = vpack.c.b16 %v5303, %v5302
      %v5382 = vpack.c.b16 %v5305, %v5304
      %v5383 = vpack.c.b16 %v5307, %v5306
      %v5384 = vpack.c.b16 %v5309, %v5308
      %v5385 = vpack.c.b16 %v5311, %v5310
      %v5386 = vpack.c.b16 %v5313, %v5312
      %v5387 = vpack.c.b16 %v5315, %v5314
      %v5388 = vpack.c.b16 %v5317, %v5316
      %v5389 = vpack.c.b16 %v5319, %v5318
      %v5390 = vpack.c.b16 %v5321, %v5320
      %v5391 = vpack.c.b16 %v5323, %v5322
      %v5392 = vpack.c.b16 %v5325, %v5324
      %v5393 = vpack.c.b16 %v5327, %v5326
      %v5394 = vpack.c.b16 %v5329, %v5328
      %v5395 = vpack.c.b16 %v5331, %v5330
      %v5396 = vpack.c.b16 %v5333, %v5332
      %v5397 = vpack.c.b16 %v5335, %v5334
      %v5398 = vpack.c.b16 %v5337, %v5336
      %v5399 = vpack.c.b16 %v5339, %v5338
      %v5400 = vpack.c.b16 %v5341, %v5340
      %v5401 = vpack.c.b16 %v5343, %v5342
      %v5402 = vpack.c.b16 %v5345, %v5344
      %v5403 = vpack.c.b16 %v5347, %v5346
      %v5404 = vpack.c.b16 %v5349, %v5348
      %v5405 = vpack.c.b16 %v5351, %v5350
      %v5406 = vpack.c.b16 %v5353, %v5352
      %v5407 = vpack.c.b16 %v5355, %v5354
      %v5408 = vpack.c.b16 %v5357, %v5356
      %v5409 = vpack.c.b16 %v5359, %v5358
      %v5410 = vpack.c.b16 %v5361, %v5360
      %v5411 = vpack.c.b16 %v5363, %v5362
      %5460 = vmatprep.subr.bf16.mxu0 0
      %5461 = vmatpush1.bf16.msra.mxu0 %v5364
      %5462 = vmatprep.subr.bf16.mxu0 0
      %5463 = vmatpush1.bf16.msra.mxu0 %v5365
      %5464 = vmatprep.subr.bf16.mxu0 0
      %5465 = vmatpush1.bf16.msra.mxu0 %v5366
      %5466 = vmatprep.subr.bf16.mxu0 0
      %5467 = vmatpush1.bf16.msra.mxu0 %v5367
      %5468 = vmatprep.subr.bf16.mxu0 0
      %5469 = vmatpush1.bf16.msra.mxu0 %v5368
      %5470 = vmatprep.subr.bf16.mxu0 0
      %5471 = vmatpush1.bf16.msra.mxu0 %v5369
      %5472 = vmatprep.subr.bf16.mxu0 0
      %5473 = vmatpush1.bf16.msra.mxu0 %v5370
      %5474 = vmatprep.subr.bf16.mxu0 0
      %5475 = vmatpush1.bf16.msra.mxu0 %v5371
      %5476 = vmatprep.subr.bf16.mxu0 0
      %5477 = vmatpush1.bf16.msra.mxu0 %v5372
      %5478 = vmatprep.subr.bf16.mxu0 0
      %5479 = vmatpush1.bf16.msra.mxu0 %v5373
      %5480 = vmatprep.subr.bf16.mxu0 0
      %5481 = vmatpush1.bf16.msra.mxu0 %v5374
      %5482 = vmatprep.subr.bf16.mxu0 0
      %5483 = vmatpush1.bf16.msra.mxu0 %v5375
      %5484 = vmatprep.subr.bf16.mxu0 0
      %5485 = vmatpush1.bf16.msra.mxu0 %v5376
      %5486 = vmatprep.subr.bf16.mxu0 0
      %5487 = vmatpush1.bf16.msra.mxu0 %v5377
      %5488 = vmatprep.subr.bf16.mxu0 0
      %5489 = vmatpush1.bf16.msra.mxu0 %v5378
      %5490 = vmatprep.subr.bf16.mxu0 0
      %5491 = vmatpush1.bf16.msra.mxu0 %v5379
      %5492 = vmatprep.mubr.bf16.mxu0 %v5064
      %5493 = vmatmul.mubr.bf16.gmra.mrb[0].mxu0 %v5063
      %v5494 = vpop.f32.mrb[0].mxu0
      %v5495 = vadd.f32 %v5170, %v5494
      %v5496 = vpop.f32.mrb[0].mxu0
      %v5497 = vpop.f32.mrb[0].mxu0
      %v5498 = vpop.f32.mrb[0].mxu0
      %5499 = vdwg.mxu0
      %5500 = vmatprep.subr.bf16.mxu0 0
      %5501 = vmatpush1.bf16.msra.mxu0 %v5380
      %5502 = vmatprep.subr.bf16.mxu0 0
      %5503 = vmatpush1.bf16.msra.mxu0 %v5381
      %5504 = vmatprep.subr.bf16.mxu0 0
      %5505 = vmatpush1.bf16.msra.mxu0 %v5382
      %5506 = vmatprep.subr.bf16.mxu0 0
      %5507 = vmatpush1.bf16.msra.mxu0 %v5383
      %5508 = vmatprep.subr.bf16.mxu0 0
      %5509 = vmatpush1.bf16.msra.mxu0 %v5384
      %5510 = vmatprep.subr.bf16.mxu0 0
      %5511 = vmatpush1.bf16.msra.mxu0 %v5385
      %5512 = vmatprep.subr.bf16.mxu0 0
      %5513 = vmatpush1.bf16.msra.mxu0 %v5386
      %5514 = vmatprep.subr.bf16.mxu0 0
      %5515 = vmatpush1.bf16.msra.mxu0 %v5387
      %5516 = vmatprep.subr.bf16.mxu0 0
      %5517 = vmatpush1.bf16.msra.mxu0 %v5388
      %5518 = vmatprep.subr.bf16.mxu0 0
      %5519 = vmatpush1.bf16.msra.mxu0 %v5389
      %5520 = vmatprep.subr.bf16.mxu0 0
      %5521 = vmatpush1.bf16.msra.mxu0 %v5390
      %5522 = vmatprep.subr.bf16.mxu0 0
      %5523 = vmatpush1.bf16.msra.mxu0 %v5391
      %5524 = vmatprep.subr.bf16.mxu0 0
      %5525 = vmatpush1.bf16.msra.mxu0 %v5392
      %5526 = vmatprep.subr.bf16.mxu0 0
      %5527 = vmatpush1.bf16.msra.mxu0 %v5393
      %5528 = vmatprep.subr.bf16.mxu0 0
      %5529 = vmatpush1.bf16.msra.mxu0 %v5394
      %5530 = vmatprep.subr.bf16.mxu0 0
      %5531 = vmatpush1.bf16.msra.mxu0 %v5395
      %5532 = vmatprep.mubr.bf16.mxu0 %v5066
      %5533 = vmatmul.mubr.bf16.gmra.mrb[0].mxu0 %v5065
      %v5534 = vpop.f32.mrb[0].mxu0
      %v5535 = vadd.f32 %v5495, %v5534
      %v5536 = vpop.f32.mrb[0].mxu0
      %v5537 = vpop.f32.mrb[0].mxu0
      %v5538 = vpop.f32.mrb[0].mxu0
      %5539 = vdwg.mxu0
      %5540 = vmatprep.subr.bf16.mxu0 0
      %5541 = vmatpush1.bf16.msra.mxu0 %v5396
      %5542 = vmatprep.subr.bf16.mxu0 0
      %5543 = vmatpush1.bf16.msra.mxu0 %v5397
      %5544 = vmatprep.subr.bf16.mxu0 0
      %5545 = vmatpush1.bf16.msra.mxu0 %v5398
      %5546 = vmatprep.subr.bf16.mxu0 0
      %5547 = vmatpush1.bf16.msra.mxu0 %v5399
      %5548 = vmatprep.subr.bf16.mxu0 0
      %5549 = vmatpush1.bf16.msra.mxu0 %v5400
      %5550 = vmatprep.subr.bf16.mxu0 0
      %5551 = vmatpush1.bf16.msra.mxu0 %v5401
      %5552 = vmatprep.subr.bf16.mxu0 0
      %5553 = vmatpush1.bf16.msra.mxu0 %v5402
      %5554 = vmatprep.subr.bf16.mxu0 0
      %5555 = vmatpush1.bf16.msra.mxu0 %v5403
      %5556 = vmatprep.subr.bf16.mxu0 0
      %5557 = vmatpush1.bf16.msra.mxu0 %v5404
      %5558 = vmatprep.subr.bf16.mxu0 0
      %5559 = vmatpush1.bf16.msra.mxu0 %v5405
      %5560 = vmatprep.subr.bf16.mxu0 0
      %5561 = vmatpush1.bf16.msra.mxu0 %v5406
      %5562 = vmatprep.subr.bf16.mxu0 0
      %5563 = vmatpush1.bf16.msra.mxu0 %v5407
      %5564 = vmatprep.subr.bf16.mxu0 0
      %5565 = vmatpush1.bf16.msra.mxu0 %v5408
      %5566 = vmatprep.subr.bf16.mxu0 0
      %5567 = vmatpush1.bf16.msra.mxu0 %v5409
      %5568 = vmatprep.subr.bf16.mxu0 0
      %5569 = vmatpush1.bf16.msra.mxu0 %v5410
      %5570 = vmatprep.subr.bf16.mxu0 0
      %5571 = vmatpush1.bf16.msra.mxu0 %v5411
      %5572 = vmatprep.mubr.bf16.mxu0 %v5068
      %5573 = vmatmul.mubr.bf16.gmra.mrb[0].mxu0 %v5067
      %v5574 = vpop.f32.mrb[0].mxu0
      %v5575 = vadd.f32 %v5535, %v5574
      %v5576 = vpop.f32.mrb[0].mxu0
      %v5577 = vpop.f32.mrb[0].mxu0
      %v5578 = vpop.f32.mrb[0].mxu0
      %5579 = vdwg.mxu0
      %v5580 = vmax.f32 %v5575, 0.0
      %v5581 = vpack.c.bf16 %v5580, %v5580
      %v5582 = vld [vmem:[%s530] sm:$0xf]
      %v5583 = vld [vmem:[%s530 + $0x4] sm:$0xf]
      %v5584 = vld [vmem:[%s530 + $0x8] sm:$0xf]
      %v5585 = vld [vmem:[%s530 + $0xc] sm:$0xf]
      %v5586 = vld [vmem:[%s530 + $0x10] sm:$0xf]
      %v5587 = vld [vmem:[%s530 + $0x14] sm:$0xf]
      %v5588 = vld [vmem:[%s530 + $0x18] sm:$0xf]
      %v5589 = vld [vmem:[%s530 + $0x1c] sm:$0xf]
      %v5590 = vld [vmem:[%s530 + $0x20] sm:$0xf]
      %v5591 = vld [vmem:[%s530 + $0x24] sm:$0xf]
      %v5592 = vld [vmem:[%s530 + $0x28] sm:$0xf]
      %v5593 = vld [vmem:[%s530 + $0x2c] sm:$0xf]
      %v5594 = vld [vmem:[%s530 + $0x30] sm:$0xf]
      %v5595 = vld [vmem:[%s530 + $0x34] sm:$0xf]
      %v5596 = vld [vmem:[%s530 + $0x38] sm:$0xf]
      %v5597 = vld [vmem:[%s530 + $0x3c] sm:$0xf]
      %v5598 = vld [vmem:[%s533] sm:$0x1]
      %v5600 = vlaneseq
      %v5601 = vshrl.u32 %v5600, 7
      %v5602 = vsub.s32 0, %v5601
      %v5603 = vrot.slane %v5598, %v5602
      %v5621 = vunpack.c.l.b16 %v5582
      %v5622 = vunpack.c.l.b16 %v5583
      %v5623 = vunpack.c.l.b16 %v5584
      %v5624 = vunpack.c.l.b16 %v5585
      %v5625 = vunpack.c.l.b16 %v5586
      %v5626 = vunpack.c.l.b16 %v5587
      %v5627 = vunpack.c.l.b16 %v5588
      %v5628 = vunpack.c.l.b16 %v5589
      %v5629 = vunpack.c.l.b16 %v5590
      %v5630 = vunpack.c.l.b16 %v5591
      %v5631 = vunpack.c.l.b16 %v5592
      %v5632 = vunpack.c.l.b16 %v5593
      %v5633 = vunpack.c.l.b16 %v5594
      %v5634 = vunpack.c.l.b16 %v5595
      %v5635 = vunpack.c.l.b16 %v5596
      %v5636 = vunpack.c.l.b16 %v5597
      %v5637 = vpack.c.b16 %v5622, %v5621
      %v5638 = vpack.c.b16 %v5624, %v5623
      %v5639 = vpack.c.b16 %v5626, %v5625
      %v5640 = vpack.c.b16 %v5628, %v5627
      %v5641 = vpack.c.b16 %v5630, %v5629
      %v5642 = vpack.c.b16 %v5632, %v5631
      %v5643 = vpack.c.b16 %v5634, %v5633
      %v5644 = vpack.c.b16 %v5636, %v5635
      %5653 = vmatprep.subr.bf16.mxu0 0
      %5654 = vmatpush1.bf16.msra.mxu0 %v5637
      %5655 = vmatprep.subr.bf16.mxu0 0
      %5656 = vmatpush1.bf16.msra.mxu0 %v5638
      %5657 = vmatprep.subr.bf16.mxu0 0
      %5658 = vmatpush1.bf16.msra.mxu0 %v5639
      %5659 = vmatprep.subr.bf16.mxu0 0
      %5660 = vmatpush1.bf16.msra.mxu0 %v5640
      %5661 = vmatprep.subr.bf16.mxu0 0
      %5662 = vmatpush1.bf16.msra.mxu0 %v5641
      %5663 = vmatprep.subr.bf16.mxu0 0
      %5664 = vmatpush1.bf16.msra.mxu0 %v5642
      %5665 = vmatprep.subr.bf16.mxu0 0
      %5666 = vmatpush1.bf16.msra.mxu0 %v5643
      %5667 = vmatprep.subr.bf16.mxu0 0
      %5668 = vmatpush1.bf16.msra.mxu0 %v5644
      %5669 = vmatprep.subr.bf16.mxu0 0
      %5670 = vmatpush1.bf16.msra.mxu0 0
      %5671 = vmatprep.subr.bf16.mxu0 0
      %5672 = vmatpush1.bf16.msra.mxu0 0
      %5673 = vmatprep.subr.bf16.mxu0 0
      %5674 = vmatpush1.bf16.msra.mxu0 0
      %5675 = vmatprep.subr.bf16.mxu0 0
      %5676 = vmatpush1.bf16.msra.mxu0 0
      %5677 = vmatprep.subr.bf16.mxu0 0
      %5678 = vmatpush1.bf16.msra.mxu0 0
      %5679 = vmatprep.subr.bf16.mxu0 0
      %5680 = vmatpush1.bf16.msra.mxu0 0
      %5681 = vmatprep.subr.bf16.mxu0 0
      %5682 = vmatpush1.bf16.msra.mxu0 0
      %5683 = vmatprep.subr.bf16.mxu0 0
      %5684 = vmatpush1.bf16.msra.mxu0 0
      %5685 = vmatprep.mubr.bf16.mxu0 0
      %5686 = vmatmul.mubr.bf16.gmra.mrb[0].mxu0 %v5581
      %v5687 = vpop.f32.mrb[0].mxu0
      %v5688 = vadd.f32 %v5603, %v5687
      %v5689 = vpop.f32.mrb[0].mxu0
      %v5690 = vpop.f32.mrb[0].mxu0
      %v5691 = vpop.f32.mrb[0].mxu0
      %5692 = vdwg.mxu0
      %vm5693 = vcmask 1041408
      %v5694 = vsel %vm5693, %v5688, -inf
      %5695 = vmax.xlane.f32.xlu0 %v5694
      %v5696 = vpop.xlane.xlu0 %5695
      %v5697 = vsub.f32 %v5688, %v5696
      %v5698 = vmul.f32 %v5697, 1.442695
      %v5699 = vpow.pop %v5698
      %v5700 = vsel %vm5693, %v5699, 0.0
      %5701 = vadd.xlane.f32.xlu0 %v5700
      %v5702 = vpop.xlane.xlu0 %5701
      %v5703 = vrcp.pop %v5702
      %v5704 = vmul.f32 %v5699, %v5703
      %5705 = vst [vmem:[%s537] sm:$0x3] %v5704
      %p5706 = scmp.lt.s32.totalorder %s22, 1
      %s5707 = scalar_select %p5706, %s22, 1
      %s5708 = smul.addr %s5707, 2
      %s5709 = scalar_lea.vmem %s11, %s5708
      // Predicated region
      $region65: #{minigrid_cnn_forward.1} parent=63 // pred_check
        %p5710 = pneg %p321
      $region66: #{minigrid_cnn_forward.1} parent=63 // pred_check_branch
        %5712 = sbr.rel (%p5710) target = $region68
      $region67: #{minigrid_cnn_forward.1} parent=63 // pred_region
        _
      $region68: #{minigrid_cnn_forward.1} parent=63 // pred_fallthru
        _
    $region64: #{minigrid_cnn_forward.1} parent=5 // pred_fallthru
      _
    %p5713 = scmp.le.s32.totalorder 2, %s17
    // Predicated region
    $region69: #{minigrid_cnn_forward.1} parent=5 // pred_check
      %p5714 = pneg %p5713
    $region70: #{minigrid_cnn_forward.1} parent=5 // pred_check_branch
      %5716 = sbr.rel (%p5714) target = $region72
    $region71: #{minigrid_cnn_forward.1} parent=5 // pred_region
      %s5717 = ssub.s32 %s17, 2
      // Predicated region
      $region73: #{minigrid_cnn_forward.1} parent=71 // pred_check
        %p5718 = pneg %p327
      $region74: #{minigrid_cnn_forward.1} parent=71 // pred_check_branch
        %5720 = sbr.rel (%p5718) target = $region76
      $region75: #{minigrid_cnn_forward.1} parent=71 // pred_region
        %p5721 = scmp.lt.s32.totalorder %s23, 1
        %s5722 = scalar_select %p5721, %s23, 1
        %s5723 = smul.addr %s5722, 2
        %s5724 = scalar_lea.vmem %s11, %s5723
      $region76: #{minigrid_cnn_forward.1} parent=71 // pred_fallthru
        _
    $region72: #{minigrid_cnn_forward.1} parent=5 // pred_fallthru
      _
  $region6: #{minigrid_cnn_forward.1} parent=0 // loop_footer
    %s21 = sadd.s32 1, %s17
  $region7: #{minigrid_cnn_forward.1} parent=0 // loop_footer_branch
    %16 = sbr.rel target = $region3
  $region8: #{minigrid_cnn_forward.1} parent=0 // loop_exit
    _

</llo_original>
